<compile_context>
chip_gen: v7x
topology: tpu7x:2x2x1
jax: 0.10.0
libtpu: 0.0.40
codegen_flags: <defaults>
</compile_context>

<pallas_src>
import functools

import jax
import jax.numpy as jnp
import numpy as np
from jax.experimental import pallas as pl
from jax.experimental.pallas import tpu as pltpu

LANE = 128


def _dot(a, b):
    return jnp.dot(a, b, preferred_element_type=jnp.float32)


def net_kernel(x_l_ref, x_a_ref, x_v_ref,
               wgv_ref, bgv_ref, wga_ref, bga_ref,
               w_in_l_ref, w_in_a_ref, w_in_v_ref, b_gate_ref,
               w_rec_ref, w_att_ref, b_att_ref, coef_a_ref, coef_b_ref,
               w_zg1_ref, b_zg1_ref, w_zg2_ref, b_zg2_ref,
               w_p1_ref, b_p1_ref, w_p2_ref, b_p2_ref,
               o_ref, *, batch, seq_len, lane):
    # ---- hoisted, time-invariant input work: (T*B, d) batched matmuls ----------
    x_l = x_l_ref[...]                                   # (T*B, d_l)
    x_a = x_a_ref[...]                                   # (T*B, d_a)
    x_v = x_v_ref[...]                                   # (T*B, d_v)

    # GateMechanism: x * sigmoid(Linear(x)), applied to whole sequences (as in ref).
    xg_v = x_v * jax.nn.sigmoid(_dot(x_v, wgv_ref[...]) + bgv_ref[...])
    xg_a = x_a * jax.nn.sigmoid(_dot(x_a, wga_ref[...]) + bga_ref[...])

    # x@W term of all three LSTHM cells for every timestep, packed into the
    # fused/padded gate layout [f(128) | i(128) | o(128) | ch(128)],
    # each gate block = [l(dh_l) | a(dh_a) | v(dh_v) | zero pad].
    xw = (_dot(x_l, w_in_l_ref[...]) + _dot(xg_a, w_in_a_ref[...])
          + _dot(xg_v, w_in_v_ref[...]) + b_gate_ref[...])        # (T*B, 4*lane)

    coef_a = coef_a_ref[...]                              # (1, lane)  0.7 / 1.0 mix
    coef_b = coef_b_ref[...]                              # (1, lane)  0.3 / 0.0 mix

    # Packed recurrent state: c = [c_l|c_a|c_v|pad] (B,lane),
    # hz = [h_l|h_a|h_v|pad | z|pad]  (B, 2*lane).  Pad lanes stay exactly zero.
    c = jnp.zeros((batch, lane), jnp.float32)
    hz = jnp.zeros((batch, 2 * lane), jnp.float32)

    # ---- recurrence: statically unrolled, 4 fused MXU pushes per step ----------
    for t in range(seq_len):
        # All three LSTHM cells at once (they all read the previous h/z).
        s = xw[t * batch:(t + 1) * batch, :] + _dot(hz, w_rec_ref[...])   # (B, 4*lane)
        f = jax.nn.sigmoid(s[:, 0 * lane:1 * lane])
        i = jax.nn.sigmoid(s[:, 1 * lane:2 * lane])
        o = jax.nn.sigmoid(s[:, 2 * lane:3 * lane])
        ch = jnp.tanh(s[:, 3 * lane:4 * lane])
        c = f * c + i * ch                                                # (B, lane)
        h = jnp.tanh(c) * o                                               # (B, lane)

        # Both CrossShareUnits: one fused matmul producing
        #   block A = [l_att1 | a_att | v_att | pad], block B = [l_att2 | pad].
        att = jax.nn.sigmoid(_dot(h, w_att_ref[...]) + b_att_ref[...])    # (B, 2*lane)
        mix = coef_a * att[:, :lane] + coef_b * att[:, lane:]             # 0.7/0.3 l mix
        hidden = h * mix                                                  # (B, lane)

        # Z_Hat fc1 + gamma fc1 fused, then Z_Hat fc2 + gamma fc2 fused.
        u = _dot(hidden, w_zg1_ref[...]) + b_zg1_ref[...]                 # (B, 2*lane)
        v = _dot(u, w_zg2_ref[...]) + b_zg2_ref[...]                      # (B, 2*lane)
        z = jnp.tanh(v[:, :lane]) * jax.nn.sigmoid(v[:, lane:])           # gamma * Z_Hat

        hz = jnp.concatenate([h, z], axis=-1)                             # (B, 2*lane)

    # ---- Map_pred head: relu(Linear) -> Linear(3) (lane-padded output) ---------
    z_final = hz[:, lane:]                                                # (B, lane)
    y1 = jnp.maximum(_dot(z_final, w_p1_ref[...]) + b_p1_ref[...], 0.0)
    o_ref[...] = _dot(y1, w_p2_ref[...]) + b_p2_ref[...]                  # (B, lane)


def net_forward(packed_params, x_l, x_v, x_a):
    B, T, _ = x_l.shape

    # (B,T,d) -> time-major (T*B, d) so each timestep's batch rows are contiguous.
    def tm(x):
        return jnp.transpose(x, (1, 0, 2)).reshape(T * B, x.shape[-1])

    args = (tm(x_l), tm(x_a), tm(x_v)) + tuple(packed_params)
    kern = functools.partial(net_kernel, batch=B, seq_len=T, lane=LANE)
    out = pl.pallas_call(
        kern,
        out_shape=jax.ShapeDtypeStruct((B, LANE), jnp.float32),
        in_specs=[pl.BlockSpec(memory_space=pltpu.MemorySpace.VMEM)] * len(args),
        out_specs=pl.BlockSpec(memory_space=pltpu.MemorySpace.VMEM),
        compiler_params=pltpu.CompilerParams(vmem_limit_bytes=32 << 20),
    )(*args)
    return out[:, :3]


def init_params(key, cfg):
    """Logical (un-fused) parameters, same conceptual model as the PyTorch module."""
    d_l, d_a, d_v = cfg["input_dims"]
    dh_l, dh_a, dh_v = cfg["h_dims"]
    z_dim, K = cfg["z_dim"], cfg["K"]
    z_fc1, z_fc2 = cfg["z_fc1"], cfg["z_fc2"]
    final = cfg["final_dims"]

    keys = iter(jax.random.split(key, 64))

    def w(shape, scale=0.1):
        return scale * jax.random.normal(next(keys), shape, jnp.float32)

    def b(n, scale=0.05):
        return scale * jax.random.normal(next(keys), (1, n), jnp.float32)

    p = {}
    p["wgv"], p["bgv"] = w((d_v, d_v)), b(d_v)              # VisionGate
    p["wga"], p["bga"] = w((d_a, d_a)), b(d_a)              # AcousticGate
    for m, (di, dh) in {"l": (d_l, dh_l), "a": (d_a, dh_a), "v": (d_v, dh_v)}.items():
        p[f"W{m}"] = w((di, 4 * dh))                        # LSTHM input weights
        p[f"U{m}"] = w((dh, 4 * dh))                        # LSTHM recurrent weights
        p[f"V{m}"] = w((z_dim, 4 * dh))                     # LSTHM hybrid-z weights
        p[f"b{m}"] = b(4 * dh)
    # CrossShareUnit 1 (language <-> vision): K-factor bilinear, folded.
    p["Plv"], p["blv"] = w((dh_l, K)) @ w((K, dh_v)), b(dh_v)
    p["Pvl"], p["bvl"] = w((dh_v, K)) @ w((K, dh_l)), b(dh_l)
    # CrossShareUnit 2 (language <-> acoustic).
    p["Pla"], p["bla"] = w((dh_l, K)) @ w((K, dh_a)), b(dh_a)
    p["Pal"], p["bal"] = w((dh_a, K)) @ w((K, dh_l)), b(dh_l)
    # Z_Hat head (fc1 split per concat part to avoid in-kernel weight slicing).
    p["Wz1_l"], p["Wz1_a"], p["Wz1_v"] = w((dh_l, z_fc1)), w((dh_a, z_fc1)), w((dh_v, z_fc1))
    p["bz1"], p["Wz2"], p["bz2"] = b(z_fc1), w((z_fc1, z_dim)), b(z_dim)
    # gamma head.
    p["Wg1_l"], p["Wg1_a"], p["Wg1_v"] = w((dh_l, z_fc2)), w((dh_a, z_fc2)), w((dh_v, z_fc2))
    p["bg1"], p["Wg2"], p["bg2"] = b(z_fc2), w((z_fc2, z_dim)), b(z_dim)
    # Map_pred head.
    p["Wp1"], p["bp1"] = w((z_dim, final)), b(final)
    p["Wp2"], p["bp2"] = w((final, 3)), b(3)
    return p


def pack_params(p, cfg, lane=LANE):
    """Build fused, 128-lane-padded weight slabs once in the wrapper."""
    p = {k: np.asarray(v, np.float32) for k, v in p.items()}
    d_l, d_a, d_v = cfg["input_dims"]
    dh_l, dh_a, dh_v = cfg["h_dims"]
    z_dim = cfg["z_dim"]
    z_fc1, z_fc2 = cfg["z_fc1"], cfg["z_fc2"]
    final = cfg["final_dims"]
    H = dh_l + dh_a + dh_v
    assert H <= lane and z_dim <= lane and z_fc1 <= lane and z_fc2 <= lane and final <= lane
    ol, oa, ov = 0, dh_l, dh_l + dh_a       # lane offsets of l / a / v inside the h block

    # Input-path weights: gate g of modality m lands in cols [g*lane+off_m, +dh_m).
    def pack_in(W, dh, off):
        out = np.zeros((W.shape[0], 4 * lane), np.float32)
        for g in range(4):
            out[:, g * lane + off:g * lane + off + dh] = W[:, g * dh:(g + 1) * dh]
        return out

    w_in_l = pack_in(p["Wl"], dh_l, ol)
    w_in_a = pack_in(p["Wa"], dh_a, oa)
    w_in_v = pack_in(p["Wv"], dh_v, ov)

    b_gate = np.zeros((1, 4 * lane), np.float32)
    for g in range(4):
        b_gate[:, g * lane + ol:g * lane + ol + dh_l] = p["bl"][:, g * dh_l:(g + 1) * dh_l]
        b_gate[:, g * lane + oa:g * lane + oa + dh_a] = p["ba"][:, g * dh_a:(g + 1) * dh_a]
        b_gate[:, g * lane + ov:g * lane + ov + dh_v] = p["bv"][:, g * dh_v:(g + 1) * dh_v]

    # Fused recurrent weight: rows = [h(lane) | z(lane)], cols = gate slab.
    w_rec = np.zeros((2 * lane, 4 * lane), np.float32)

    def put_rec(row_off, W, dh, col_off):
        n = W.shape[0]
        for g in range(4):
            w_rec[row_off:row_off + n,
                  g * lane + col_off:g * lane + col_off + dh] = W[:, g * dh:(g + 1) * dh]

    put_rec(ol, p["Ul"], dh_l, ol)
    put_rec(oa, p["Ua"], dh_a, oa)
    put_rec(ov, p["Uv"], dh_v, ov)
    put_rec(lane, p["Vl"], dh_l, ol)
    put_rec(lane, p["Va"], dh_a, oa)
    put_rec(lane, p["Vv"], dh_v, ov)

    # Fused cross-share attention weights: rows = h layout, cols = [block A | block B].
    w_att = np.zeros((lane, 2 * lane), np.float32)
    b_att = np.zeros((1, 2 * lane), np.float32)
    w_att[ov:ov + dh_v, ol:ol + dh_l] = p["Pvl"]      # l_att1  = sig(h_v @ Pvl + bvl)
    b_att[:, ol:ol + dh_l] = p["bvl"]
    w_att[ol:ol + dh_l, oa:oa + dh_a] = p["Pla"]      # a_att   = sig(h_l @ Pla + bla)
    b_att[:, oa:oa + dh_a] = p["bla"]
    w_att[ol:ol + dh_l, ov:ov + dh_v] = p["Plv"]      # v_att   = sig(h_l @ Plv + blv)
    b_att[:, ov:ov + dh_v] = p["blv"]
    w_att[oa:oa + dh_a, lane + ol:lane + ol + dh_l] = p["Pal"]   # l_att2 = sig(h_a @ Pal + bal)
    b_att[:, lane + ol:lane + ol + dh_l] = p["bal"]

    coef_a = np.zeros((1, lane), np.float32)
    coef_b = np.zeros((1, lane), np.float32)
    coef_a[:, ol:ol + dh_l] = 0.7
    coef_a[:, oa:oa + dh_a] = 1.0
    coef_a[:, ov:ov + dh_v] = 1.0
    coef_b[:, ol:ol + dh_l] = 0.3

    # Z_Hat fc1 + gamma fc1 fused: rows = hidden (h layout), cols = [z1 block | g1 block].
    w_zg1 = np.zeros((lane, 2 * lane), np.float32)
    b_zg1 = np.zeros((1, 2 * lane), np.float32)
    w_zg1[ol:ol + dh_l, 0:z_fc1] = p["Wz1_l"]
    w_zg1[oa:oa + dh_a, 0:z_fc1] = p["Wz1_a"]
    w_zg1[ov:ov + dh_v, 0:z_fc1] = p["Wz1_v"]
    b_zg1[:, 0:z_fc1] = p["bz1"]
    w_zg1[ol:ol + dh_l, lane:lane + z_fc2] = p["Wg1_l"]
    w_zg1[oa:oa + dh_a, lane:lane + z_fc2] = p["Wg1_a"]
    w_zg1[ov:ov + dh_v, lane:lane + z_fc2] = p["Wg1_v"]
    b_zg1[:, lane:lane + z_fc2] = p["bg1"]

    # Z_Hat fc2 + gamma fc2 fused (block-diagonal).
    w_zg2 = np.zeros((2 * lane, 2 * lane), np.float32)
    b_zg2 = np.zeros((1, 2 * lane), np.float32)
    w_zg2[0:z_fc1, 0:z_dim] = p["Wz2"]
    b_zg2[:, 0:z_dim] = p["bz2"]
    w_zg2[lane:lane + z_fc2, lane:lane + z_dim] = p["Wg2"]
    b_zg2[:, lane:lane + z_dim] = p["bg2"]

    # Map_pred head, lane-padded.
    w_p1 = np.zeros((lane, lane), np.float32)
    b_p1 = np.zeros((1, lane), np.float32)
    w_p1[0:z_dim, 0:final] = p["Wp1"]
    b_p1[:, 0:final] = p["bp1"]
    w_p2 = np.zeros((lane, lane), np.float32)
    b_p2 = np.zeros((1, lane), np.float32)
    w_p2[0:final, 0:3] = p["Wp2"]
    b_p2[:, 0:3] = p["bp2"]

    packed = (p["wgv"], p["bgv"], p["wga"], p["bga"],
              w_in_l, w_in_a, w_in_v, b_gate,
              w_rec, w_att, b_att, coef_a, coef_b,
              w_zg1, b_zg1, w_zg2, b_zg2,
              w_p1, b_p1, w_p2, b_p2)
    return tuple(jnp.asarray(x) for x in packed)


if __name__ == "__main__":
    config = {
        "input_dims": [16, 12, 20],   # [d_l, d_a, d_v]
        "h_dims": [32, 16, 24],       # [dh_l, dh_a, dh_v]
        "z_dim": 32,
        "K": 4,
        "max_len": 8,
        "final_dims": 16,
        "dropout": 0.0,
        "cat_shape": 32 + 24 + 16,    # dh_l + dh_v + dh_a
        "z_fc1": 48,
        "z_fc2": 40,
        "z_drop1": 0.0,
        "z_drop2": 0.0,
    }

    B, T = 2, config["max_len"]
    d_l, d_a, d_v = config["input_dims"]

    key = jax.random.PRNGKey(0)
    k_p, k_l, k_v, k_a = jax.random.split(key, 4)

    params = init_params(k_p, config)
    packed = pack_params(params, config)

    x_l = jax.random.normal(k_l, (B, T, d_l), jnp.float32)
    x_v = jax.random.normal(k_v, (B, T, d_v), jnp.float32)
    x_a = jax.random.normal(k_a, (B, T, d_a), jnp.float32)

    y = net_forward(packed, x_l, x_v, x_a)
    jax.block_until_ready(y)
    assert y.shape == (B, 3) and y.dtype == jnp.float32
    print("KERNEL_OK")
</pallas_src>

<mosaic_0001>
module attributes {stable_mosaic.version = 11 : i64} {
  func.func @net_kernel(%arg0: memref<16x16xf32, #tpu.memory_space<vmem>>, %arg1: memref<16x12xf32, #tpu.memory_space<vmem>>, %arg2: memref<16x20xf32, #tpu.memory_space<vmem>>, %arg3: memref<20x20xf32, #tpu.memory_space<vmem>>, %arg4: memref<1x20xf32, #tpu.memory_space<vmem>>, %arg5: memref<12x12xf32, #tpu.memory_space<vmem>>, %arg6: memref<1x12xf32, #tpu.memory_space<vmem>>, %arg7: memref<16x512xf32, #tpu.memory_space<vmem>>, %arg8: memref<12x512xf32, #tpu.memory_space<vmem>>, %arg9: memref<20x512xf32, #tpu.memory_space<vmem>>, %arg10: memref<1x512xf32, #tpu.memory_space<vmem>>, %arg11: memref<256x512xf32, #tpu.memory_space<vmem>>, %arg12: memref<128x256xf32, #tpu.memory_space<vmem>>, %arg13: memref<1x256xf32, #tpu.memory_space<vmem>>, %arg14: memref<1x128xf32, #tpu.memory_space<vmem>>, %arg15: memref<1x128xf32, #tpu.memory_space<vmem>>, %arg16: memref<128x256xf32, #tpu.memory_space<vmem>>, %arg17: memref<1x256xf32, #tpu.memory_space<vmem>>, %arg18: memref<256x256xf32, #tpu.memory_space<vmem>>, %arg19: memref<1x256xf32, #tpu.memory_space<vmem>>, %arg20: memref<128x128xf32, #tpu.memory_space<vmem>>, %arg21: memref<1x128xf32, #tpu.memory_space<vmem>>, %arg22: memref<128x128xf32, #tpu.memory_space<vmem>>, %arg23: memref<1x128xf32, #tpu.memory_space<vmem>>, %arg24: memref<2x128xf32, #tpu.memory_space<vmem>>) attributes {dimension_semantics = [], scalar_prefetch = 0 : i64, scratch_operands = 0 : i64, tpu.core_type = #tpu.core_type<tc>} {
    %c0 = arith.constant 0 : index
    %c0_0 = arith.constant 0 : index
    %0 = vector.load %arg0[%c0, %c0_0] : memref<16x16xf32, #tpu.memory_space<vmem>>, vector<16x16xf32>
    %c0_1 = arith.constant 0 : index
    %c0_2 = arith.constant 0 : index
    %1 = vector.load %arg1[%c0_1, %c0_2] : memref<16x12xf32, #tpu.memory_space<vmem>>, vector<16x12xf32>
    %c0_3 = arith.constant 0 : index
    %c0_4 = arith.constant 0 : index
    %2 = vector.load %arg2[%c0_3, %c0_4] : memref<16x20xf32, #tpu.memory_space<vmem>>, vector<16x20xf32>
    %c0_5 = arith.constant 0 : index
    %c0_6 = arith.constant 0 : index
    %3 = vector.load %arg3[%c0_5, %c0_6] : memref<20x20xf32, #tpu.memory_space<vmem>>, vector<20x20xf32>
    %cst = arith.constant dense<0.000000e+00> : vector<16x20xf32>
    %4 = tpu.matmul %2, %3, %cst {dimension_numbers = #tpu.dot_dimension_numbers<[1], [0], [0], [1], [0, 0, 1, 1], [], []>} : vector<16x20xf32>, vector<20x20xf32>, vector<16x20xf32> -> vector<16x20xf32>
    %c0_7 = arith.constant 0 : index
    %c0_8 = arith.constant 0 : index
    %5 = vector.load %arg4[%c0_7, %c0_8] : memref<1x20xf32, #tpu.memory_space<vmem>>, vector<1x20xf32>
    %6 = vector.broadcast %5 : vector<1x20xf32> to vector<16x20xf32>
    %7 = arith.addf %4, %6 : vector<16x20xf32>
    %8 = arith.negf %7 : vector<16x20xf32>
    %9 = math.exp %8 : vector<16x20xf32>
    %cst_9 = arith.constant 1.000000e+00 : f32
    %10 = vector.broadcast %cst_9 : f32 to vector<16x20xf32>
    %11 = arith.addf %10, %9 : vector<16x20xf32>
    %12 = arith.divf %10, %11 : vector<16x20xf32>
    %13 = arith.mulf %2, %12 : vector<16x20xf32>
    %c0_10 = arith.constant 0 : index
    %c0_11 = arith.constant 0 : index
    %14 = vector.load %arg5[%c0_10, %c0_11] : memref<12x12xf32, #tpu.memory_space<vmem>>, vector<12x12xf32>
    %cst_12 = arith.constant dense<0.000000e+00> : vector<16x12xf32>
    %15 = tpu.matmul %1, %14, %cst_12 {dimension_numbers = #tpu.dot_dimension_numbers<[1], [0], [0], [1], [0, 0, 1, 1], [], []>} : vector<16x12xf32>, vector<12x12xf32>, vector<16x12xf32> -> vector<16x12xf32>
    %c0_13 = arith.constant 0 : index
    %c0_14 = arith.constant 0 : index
    %16 = vector.load %arg6[%c0_13, %c0_14] : memref<1x12xf32, #tpu.memory_space<vmem>>, vector<1x12xf32>
    %17 = vector.broadcast %16 : vector<1x12xf32> to vector<16x12xf32>
    %18 = arith.addf %15, %17 : vector<16x12xf32>
    %19 = arith.negf %18 : vector<16x12xf32>
    %20 = math.exp %19 : vector<16x12xf32>
    %cst_15 = arith.constant 1.000000e+00 : f32
    %21 = vector.broadcast %cst_15 : f32 to vector<16x12xf32>
    %22 = arith.addf %21, %20 : vector<16x12xf32>
    %23 = arith.divf %21, %22 : vector<16x12xf32>
    %24 = arith.mulf %1, %23 : vector<16x12xf32>
    %c0_16 = arith.constant 0 : index
    %c0_17 = arith.constant 0 : index
    %25 = vector.load %arg7[%c0_16, %c0_17] : memref<16x512xf32, #tpu.memory_space<vmem>>, vector<16x512xf32>
    %cst_18 = arith.constant dense<0.000000e+00> : vector<16x512xf32>
    %26 = tpu.matmul %0, %25, %cst_18 {dimension_numbers = #tpu.dot_dimension_numbers<[1], [0], [0], [1], [0, 0, 1, 1], [], []>} : vector<16x16xf32>, vector<16x512xf32>, vector<16x512xf32> -> vector<16x512xf32>
    %c0_19 = arith.constant 0 : index
    %c0_20 = arith.constant 0 : index
    %27 = vector.load %arg8[%c0_19, %c0_20] : memref<12x512xf32, #tpu.memory_space<vmem>>, vector<12x512xf32>
    %cst_21 = arith.constant dense<0.000000e+00> : vector<16x512xf32>
    %28 = tpu.matmul %24, %27, %cst_21 {dimension_numbers = #tpu.dot_dimension_numbers<[1], [0], [0], [1], [0, 0, 1, 1], [], []>} : vector<16x12xf32>, vector<12x512xf32>, vector<16x512xf32> -> vector<16x512xf32>
    %29 = arith.addf %26, %28 : vector<16x512xf32>
    %c0_22 = arith.constant 0 : index
    %c0_23 = arith.constant 0 : index
    %30 = vector.load %arg9[%c0_22, %c0_23] : memref<20x512xf32, #tpu.memory_space<vmem>>, vector<20x512xf32>
    %cst_24 = arith.constant dense<0.000000e+00> : vector<16x512xf32>
    %31 = tpu.matmul %13, %30, %cst_24 {dimension_numbers = #tpu.dot_dimension_numbers<[1], [0], [0], [1], [0, 0, 1, 1], [], []>} : vector<16x20xf32>, vector<20x512xf32>, vector<16x512xf32> -> vector<16x512xf32>
    %32 = arith.addf %29, %31 : vector<16x512xf32>
    %c0_25 = arith.constant 0 : index
    %c0_26 = arith.constant 0 : index
    %33 = vector.load %arg10[%c0_25, %c0_26] : memref<1x512xf32, #tpu.memory_space<vmem>>, vector<1x512xf32>
    %34 = vector.broadcast %33 : vector<1x512xf32> to vector<16x512xf32>
    %35 = arith.addf %32, %34 : vector<16x512xf32>
    %c0_27 = arith.constant 0 : index
    %c0_28 = arith.constant 0 : index
    %36 = vector.load %arg14[%c0_27, %c0_28] : memref<1x128xf32, #tpu.memory_space<vmem>>, vector<1x128xf32>
    %c0_29 = arith.constant 0 : index
    %c0_30 = arith.constant 0 : index
    %37 = vector.load %arg15[%c0_29, %c0_30] : memref<1x128xf32, #tpu.memory_space<vmem>>, vector<1x128xf32>
    %cst_31 = arith.constant 0.000000e+00 : f32
    %38 = vector.broadcast %cst_31 : f32 to vector<2x128xf32>
    %cst_32 = arith.constant 0.000000e+00 : f32
    %39 = vector.broadcast %cst_32 : f32 to vector<2x256xf32>
    %40 = vector.extract_strided_slice %35 {offsets = [0, 0], sizes = [2, 512], strides = [1, 1]} : vector<16x512xf32> to vector<2x512xf32>
    %c0_33 = arith.constant 0 : index
    %c0_34 = arith.constant 0 : index
    %41 = vector.load %arg11[%c0_33, %c0_34] : memref<256x512xf32, #tpu.memory_space<vmem>>, vector<256x512xf32>
    %cst_35 = arith.constant dense<0.000000e+00> : vector<2x512xf32>
    %42 = tpu.matmul %39, %41, %cst_35 {dimension_numbers = #tpu.dot_dimension_numbers<[1], [0], [0], [1], [0, 0, 1, 1], [], []>} : vector<2x256xf32>, vector<256x512xf32>, vector<2x512xf32> -> vector<2x512xf32>
    %43 = arith.addf %40, %42 : vector<2x512xf32>
    %44 = vector.extract_strided_slice %43 {offsets = [0, 0], sizes = [2, 128], strides = [1, 1]} : vector<2x512xf32> to vector<2x128xf32>
    %45 = arith.negf %44 : vector<2x128xf32>
    %46 = math.exp %45 : vector<2x128xf32>
    %cst_36 = arith.constant 1.000000e+00 : f32
    %47 = vector.broadcast %cst_36 : f32 to vector<2x128xf32>
    %48 = arith.addf %47, %46 : vector<2x128xf32>
    %49 = arith.divf %47, %48 : vector<2x128xf32>
    %50 = vector.extract_strided_slice %43 {offsets = [0, 128], sizes = [2, 128], strides = [1, 1]} : vector<2x512xf32> to vector<2x128xf32>
    %51 = arith.negf %50 : vector<2x128xf32>
    %52 = math.exp %51 : vector<2x128xf32>
    %cst_37 = arith.constant 1.000000e+00 : f32
    %53 = vector.broadcast %cst_37 : f32 to vector<2x128xf32>
    %54 = arith.addf %53, %52 : vector<2x128xf32>
    %55 = arith.divf %53, %54 : vector<2x128xf32>
    %56 = vector.extract_strided_slice %43 {offsets = [0, 256], sizes = [2, 128], strides = [1, 1]} : vector<2x512xf32> to vector<2x128xf32>
    %57 = arith.negf %56 : vector<2x128xf32>
    %58 = math.exp %57 : vector<2x128xf32>
    %cst_38 = arith.constant 1.000000e+00 : f32
    %59 = vector.broadcast %cst_38 : f32 to vector<2x128xf32>
    %60 = arith.addf %59, %58 : vector<2x128xf32>
    %61 = arith.divf %59, %60 : vector<2x128xf32>
    %62 = vector.extract_strided_slice %43 {offsets = [0, 384], sizes = [2, 128], strides = [1, 1]} : vector<2x512xf32> to vector<2x128xf32>
    %63 = math.tanh %62 : vector<2x128xf32>
    %64 = arith.mulf %49, %38 : vector<2x128xf32>
    %65 = arith.mulf %55, %63 : vector<2x128xf32>
    %66 = arith.addf %64, %65 : vector<2x128xf32>
    %67 = math.tanh %66 : vector<2x128xf32>
    %68 = arith.mulf %67, %61 : vector<2x128xf32>
    %c0_39 = arith.constant 0 : index
    %c0_40 = arith.constant 0 : index
    %69 = vector.load %arg12[%c0_39, %c0_40] : memref<128x256xf32, #tpu.memory_space<vmem>>, vector<128x256xf32>
    %cst_41 = arith.constant dense<0.000000e+00> : vector<2x256xf32>
    %70 = tpu.matmul %68, %69, %cst_41 {dimension_numbers = #tpu.dot_dimension_numbers<[1], [0], [0], [1], [0, 0, 1, 1], [], []>} : vector<2x128xf32>, vector<128x256xf32>, vector<2x256xf32> -> vector<2x256xf32>
    %c0_42 = arith.constant 0 : index
    %c0_43 = arith.constant 0 : index
    %71 = vector.load %arg13[%c0_42, %c0_43] : memref<1x256xf32, #tpu.memory_space<vmem>>, vector<1x256xf32>
    %72 = vector.broadcast %71 : vector<1x256xf32> to vector<2x256xf32>
    %73 = arith.addf %70, %72 : vector<2x256xf32>
    %74 = arith.negf %73 : vector<2x256xf32>
    %75 = math.exp %74 : vector<2x256xf32>
    %cst_44 = arith.constant 1.000000e+00 : f32
    %76 = vector.broadcast %cst_44 : f32 to vector<2x256xf32>
    %77 = arith.addf %76, %75 : vector<2x256xf32>
    %78 = arith.divf %76, %77 : vector<2x256xf32>
    %79 = vector.extract_strided_slice %78 {offsets = [0, 0], sizes = [2, 128], strides = [1, 1]} : vector<2x256xf32> to vector<2x128xf32>
    %80 = vector.broadcast %36 : vector<1x128xf32> to vector<2x128xf32>
    %81 = arith.mulf %80, %79 : vector<2x128xf32>
    %82 = vector.extract_strided_slice %78 {offsets = [0, 128], sizes = [2, 128], strides = [1, 1]} : vector<2x256xf32> to vector<2x128xf32>
    %83 = vector.broadcast %37 : vector<1x128xf32> to vector<2x128xf32>
    %84 = arith.mulf %83, %82 : vector<2x128xf32>
    %85 = arith.addf %81, %84 : vector<2x128xf32>
    %86 = arith.mulf %68, %85 : vector<2x128xf32>
    %c0_45 = arith.constant 0 : index
    %c0_46 = arith.constant 0 : index
    %87 = vector.load %arg16[%c0_45, %c0_46] : memref<128x256xf32, #tpu.memory_space<vmem>>, vector<128x256xf32>
    %cst_47 = arith.constant dense<0.000000e+00> : vector<2x256xf32>
    %88 = tpu.matmul %86, %87, %cst_47 {dimension_numbers = #tpu.dot_dimension_numbers<[1], [0], [0], [1], [0, 0, 1, 1], [], []>} : vector<2x128xf32>, vector<128x256xf32>, vector<2x256xf32> -> vector<2x256xf32>
    %c0_48 = arith.constant 0 : index
    %c0_49 = arith.constant 0 : index
    %89 = vector.load %arg17[%c0_48, %c0_49] : memref<1x256xf32, #tpu.memory_space<vmem>>, vector<1x256xf32>
    %90 = vector.broadcast %89 : vector<1x256xf32> to vector<2x256xf32>
    %91 = arith.addf %88, %90 : vector<2x256xf32>
    %c0_50 = arith.constant 0 : index
    %c0_51 = arith.constant 0 : index
    %92 = vector.load %arg18[%c0_50, %c0_51] : memref<256x256xf32, #tpu.memory_space<vmem>>, vector<256x256xf32>
    %cst_52 = arith.constant dense<0.000000e+00> : vector<2x256xf32>
    %93 = tpu.matmul %91, %92, %cst_52 {dimension_numbers = #tpu.dot_dimension_numbers<[1], [0], [0], [1], [0, 0, 1, 1], [], []>} : vector<2x256xf32>, vector<256x256xf32>, vector<2x256xf32> -> vector<2x256xf32>
    %c0_53 = arith.constant 0 : index
    %c0_54 = arith.constant 0 : index
    %94 = vector.load %arg19[%c0_53, %c0_54] : memref<1x256xf32, #tpu.memory_space<vmem>>, vector<1x256xf32>
    %95 = vector.broadcast %94 : vector<1x256xf32> to vector<2x256xf32>
    %96 = arith.addf %93, %95 : vector<2x256xf32>
    %97 = vector.extract_strided_slice %96 {offsets = [0, 0], sizes = [2, 128], strides = [1, 1]} : vector<2x256xf32> to vector<2x128xf32>
    %98 = math.tanh %97 : vector<2x128xf32>
    %99 = vector.extract_strided_slice %96 {offsets = [0, 128], sizes = [2, 128], strides = [1, 1]} : vector<2x256xf32> to vector<2x128xf32>
    %100 = arith.negf %99 : vector<2x128xf32>
    %101 = math.exp %100 : vector<2x128xf32>
    %cst_55 = arith.constant 1.000000e+00 : f32
    %102 = vector.broadcast %cst_55 : f32 to vector<2x128xf32>
    %103 = arith.addf %102, %101 : vector<2x128xf32>
    %104 = arith.divf %102, %103 : vector<2x128xf32>
    %105 = arith.mulf %98, %104 : vector<2x128xf32>
    %106 = tpu.concatenate %68, %105 in 1 : vector<2x128xf32>, vector<2x128xf32> -> vector<2x256xf32>
    %107 = vector.extract_strided_slice %35 {offsets = [2, 0], sizes = [2, 512], strides = [1, 1]} : vector<16x512xf32> to vector<2x512xf32>
    %c0_56 = arith.constant 0 : index
    %c0_57 = arith.constant 0 : index
    %108 = vector.load %arg11[%c0_56, %c0_57] : memref<256x512xf32, #tpu.memory_space<vmem>>, vector<256x512xf32>
    %cst_58 = arith.constant dense<0.000000e+00> : vector<2x512xf32>
    %109 = tpu.matmul %106, %108, %cst_58 {dimension_numbers = #tpu.dot_dimension_numbers<[1], [0], [0], [1], [0, 0, 1, 1], [], []>} : vector<2x256xf32>, vector<256x512xf32>, vector<2x512xf32> -> vector<2x512xf32>
    %110 = arith.addf %107, %109 : vector<2x512xf32>
    %111 = vector.extract_strided_slice %110 {offsets = [0, 0], sizes = [2, 128], strides = [1, 1]} : vector<2x512xf32> to vector<2x128xf32>
    %112 = arith.negf %111 : vector<2x128xf32>
    %113 = math.exp %112 : vector<2x128xf32>
    %cst_59 = arith.constant 1.000000e+00 : f32
    %114 = vector.broadcast %cst_59 : f32 to vector<2x128xf32>
    %115 = arith.addf %114, %113 : vector<2x128xf32>
    %116 = arith.divf %114, %115 : vector<2x128xf32>
    %117 = vector.extract_strided_slice %110 {offsets = [0, 128], sizes = [2, 128], strides = [1, 1]} : vector<2x512xf32> to vector<2x128xf32>
    %118 = arith.negf %117 : vector<2x128xf32>
    %119 = math.exp %118 : vector<2x128xf32>
    %cst_60 = arith.constant 1.000000e+00 : f32
    %120 = vector.broadcast %cst_60 : f32 to vector<2x128xf32>
    %121 = arith.addf %120, %119 : vector<2x128xf32>
    %122 = arith.divf %120, %121 : vector<2x128xf32>
    %123 = vector.extract_strided_slice %110 {offsets = [0, 256], sizes = [2, 128], strides = [1, 1]} : vector<2x512xf32> to vector<2x128xf32>
    %124 = arith.negf %123 : vector<2x128xf32>
    %125 = math.exp %124 : vector<2x128xf32>
    %cst_61 = arith.constant 1.000000e+00 : f32
    %126 = vector.broadcast %cst_61 : f32 to vector<2x128xf32>
    %127 = arith.addf %126, %125 : vector<2x128xf32>
    %128 = arith.divf %126, %127 : vector<2x128xf32>
    %129 = vector.extract_strided_slice %110 {offsets = [0, 384], sizes = [2, 128], strides = [1, 1]} : vector<2x512xf32> to vector<2x128xf32>
    %130 = math.tanh %129 : vector<2x128xf32>
    %131 = arith.mulf %116, %66 : vector<2x128xf32>
    %132 = arith.mulf %122, %130 : vector<2x128xf32>
    %133 = arith.addf %131, %132 : vector<2x128xf32>
    %134 = math.tanh %133 : vector<2x128xf32>
    %135 = arith.mulf %134, %128 : vector<2x128xf32>
    %c0_62 = arith.constant 0 : index
    %c0_63 = arith.constant 0 : index
    %136 = vector.load %arg12[%c0_62, %c0_63] : memref<128x256xf32, #tpu.memory_space<vmem>>, vector<128x256xf32>
    %cst_64 = arith.constant dense<0.000000e+00> : vector<2x256xf32>
    %137 = tpu.matmul %135, %136, %cst_64 {dimension_numbers = #tpu.dot_dimension_numbers<[1], [0], [0], [1], [0, 0, 1, 1], [], []>} : vector<2x128xf32>, vector<128x256xf32>, vector<2x256xf32> -> vector<2x256xf32>
    %c0_65 = arith.constant 0 : index
    %c0_66 = arith.constant 0 : index
    %138 = vector.load %arg13[%c0_65, %c0_66] : memref<1x256xf32, #tpu.memory_space<vmem>>, vector<1x256xf32>
    %139 = vector.broadcast %138 : vector<1x256xf32> to vector<2x256xf32>
    %140 = arith.addf %137, %139 : vector<2x256xf32>
    %141 = arith.negf %140 : vector<2x256xf32>
    %142 = math.exp %141 : vector<2x256xf32>
    %cst_67 = arith.constant 1.000000e+00 : f32
    %143 = vector.broadcast %cst_67 : f32 to vector<2x256xf32>
    %144 = arith.addf %143, %142 : vector<2x256xf32>
    %145 = arith.divf %143, %144 : vector<2x256xf32>
    %146 = vector.extract_strided_slice %145 {offsets = [0, 0], sizes = [2, 128], strides = [1, 1]} : vector<2x256xf32> to vector<2x128xf32>
    %147 = vector.broadcast %36 : vector<1x128xf32> to vector<2x128xf32>
    %148 = arith.mulf %147, %146 : vector<2x128xf32>
    %149 = vector.extract_strided_slice %145 {offsets = [0, 128], sizes = [2, 128], strides = [1, 1]} : vector<2x256xf32> to vector<2x128xf32>
    %150 = vector.broadcast %37 : vector<1x128xf32> to vector<2x128xf32>
    %151 = arith.mulf %150, %149 : vector<2x128xf32>
    %152 = arith.addf %148, %151 : vector<2x128xf32>
    %153 = arith.mulf %135, %152 : vector<2x128xf32>
    %c0_68 = arith.constant 0 : index
    %c0_69 = arith.constant 0 : index
    %154 = vector.load %arg16[%c0_68, %c0_69] : memref<128x256xf32, #tpu.memory_space<vmem>>, vector<128x256xf32>
    %cst_70 = arith.constant dense<0.000000e+00> : vector<2x256xf32>
    %155 = tpu.matmul %153, %154, %cst_70 {dimension_numbers = #tpu.dot_dimension_numbers<[1], [0], [0], [1], [0, 0, 1, 1], [], []>} : vector<2x128xf32>, vector<128x256xf32>, vector<2x256xf32> -> vector<2x256xf32>
    %c0_71 = arith.constant 0 : index
    %c0_72 = arith.constant 0 : index
    %156 = vector.load %arg17[%c0_71, %c0_72] : memref<1x256xf32, #tpu.memory_space<vmem>>, vector<1x256xf32>
    %157 = vector.broadcast %156 : vector<1x256xf32> to vector<2x256xf32>
    %158 = arith.addf %155, %157 : vector<2x256xf32>
    %c0_73 = arith.constant 0 : index
    %c0_74 = arith.constant 0 : index
    %159 = vector.load %arg18[%c0_73, %c0_74] : memref<256x256xf32, #tpu.memory_space<vmem>>, vector<256x256xf32>
    %cst_75 = arith.constant dense<0.000000e+00> : vector<2x256xf32>
    %160 = tpu.matmul %158, %159, %cst_75 {dimension_numbers = #tpu.dot_dimension_numbers<[1], [0], [0], [1], [0, 0, 1, 1], [], []>} : vector<2x256xf32>, vector<256x256xf32>, vector<2x256xf32> -> vector<2x256xf32>
    %c0_76 = arith.constant 0 : index
    %c0_77 = arith.constant 0 : index
    %161 = vector.load %arg19[%c0_76, %c0_77] : memref<1x256xf32, #tpu.memory_space<vmem>>, vector<1x256xf32>
    %162 = vector.broadcast %161 : vector<1x256xf32> to vector<2x256xf32>
    %163 = arith.addf %160, %162 : vector<2x256xf32>
    %164 = vector.extract_strided_slice %163 {offsets = [0, 0], sizes = [2, 128], strides = [1, 1]} : vector<2x256xf32> to vector<2x128xf32>
    %165 = math.tanh %164 : vector<2x128xf32>
    %166 = vector.extract_strided_slice %163 {offsets = [0, 128], sizes = [2, 128], strides = [1, 1]} : vector<2x256xf32> to vector<2x128xf32>
    %167 = arith.negf %166 : vector<2x128xf32>
    %168 = math.exp %167 : vector<2x128xf32>
    %cst_78 = arith.constant 1.000000e+00 : f32
    %169 = vector.broadcast %cst_78 : f32 to vector<2x128xf32>
    %170 = arith.addf %169, %168 : vector<2x128xf32>
    %171 = arith.divf %169, %170 : vector<2x128xf32>
    %172 = arith.mulf %165, %171 : vector<2x128xf32>
    %173 = tpu.concatenate %135, %172 in 1 : vector<2x128xf32>, vector<2x128xf32> -> vector<2x256xf32>
    %174 = vector.extract_strided_slice %35 {offsets = [4, 0], sizes = [2, 512], strides = [1, 1]} : vector<16x512xf32> to vector<2x512xf32>
    %c0_79 = arith.constant 0 : index
    %c0_80 = arith.constant 0 : index
    %175 = vector.load %arg11[%c0_79, %c0_80] : memref<256x512xf32, #tpu.memory_space<vmem>>, vector<256x512xf32>
    %cst_81 = arith.constant dense<0.000000e+00> : vector<2x512xf32>
    %176 = tpu.matmul %173, %175, %cst_81 {dimension_numbers = #tpu.dot_dimension_numbers<[1], [0], [0], [1], [0, 0, 1, 1], [], []>} : vector<2x256xf32>, vector<256x512xf32>, vector<2x512xf32> -> vector<2x512xf32>
    %177 = arith.addf %174, %176 : vector<2x512xf32>
    %178 = vector.extract_strided_slice %177 {offsets = [0, 0], sizes = [2, 128], strides = [1, 1]} : vector<2x512xf32> to vector<2x128xf32>
    %179 = arith.negf %178 : vector<2x128xf32>
    %180 = math.exp %179 : vector<2x128xf32>
    %cst_82 = arith.constant 1.000000e+00 : f32
    %181 = vector.broadcast %cst_82 : f32 to vector<2x128xf32>
    %182 = arith.addf %181, %180 : vector<2x128xf32>
    %183 = arith.divf %181, %182 : vector<2x128xf32>
    %184 = vector.extract_strided_slice %177 {offsets = [0, 128], sizes = [2, 128], strides = [1, 1]} : vector<2x512xf32> to vector<2x128xf32>
    %185 = arith.negf %184 : vector<2x128xf32>
    %186 = math.exp %185 : vector<2x128xf32>
    %cst_83 = arith.constant 1.000000e+00 : f32
    %187 = vector.broadcast %cst_83 : f32 to vector<2x128xf32>
    %188 = arith.addf %187, %186 : vector<2x128xf32>
    %189 = arith.divf %187, %188 : vector<2x128xf32>
    %190 = vector.extract_strided_slice %177 {offsets = [0, 256], sizes = [2, 128], strides = [1, 1]} : vector<2x512xf32> to vector<2x128xf32>
    %191 = arith.negf %190 : vector<2x128xf32>
    %192 = math.exp %191 : vector<2x128xf32>
    %cst_84 = arith.constant 1.000000e+00 : f32
    %193 = vector.broadcast %cst_84 : f32 to vector<2x128xf32>
    %194 = arith.addf %193, %192 : vector<2x128xf32>
    %195 = arith.divf %193, %194 : vector<2x128xf32>
    %196 = vector.extract_strided_slice %177 {offsets = [0, 384], sizes = [2, 128], strides = [1, 1]} : vector<2x512xf32> to vector<2x128xf32>
    %197 = math.tanh %196 : vector<2x128xf32>
    %198 = arith.mulf %183, %133 : vector<2x128xf32>
    %199 = arith.mulf %189, %197 : vector<2x128xf32>
    %200 = arith.addf %198, %199 : vector<2x128xf32>
    %201 = math.tanh %200 : vector<2x128xf32>
    %202 = arith.mulf %201, %195 : vector<2x128xf32>
    %c0_85 = arith.constant 0 : index
    %c0_86 = arith.constant 0 : index
    %203 = vector.load %arg12[%c0_85, %c0_86] : memref<128x256xf32, #tpu.memory_space<vmem>>, vector<128x256xf32>
    %cst_87 = arith.constant dense<0.000000e+00> : vector<2x256xf32>
    %204 = tpu.matmul %202, %203, %cst_87 {dimension_numbers = #tpu.dot_dimension_numbers<[1], [0], [0], [1], [0, 0, 1, 1], [], []>} : vector<2x128xf32>, vector<128x256xf32>, vector<2x256xf32> -> vector<2x256xf32>
    %c0_88 = arith.constant 0 : index
    %c0_89 = arith.constant 0 : index
    %205 = vector.load %arg13[%c0_88, %c0_89] : memref<1x256xf32, #tpu.memory_space<vmem>>, vector<1x256xf32>
    %206 = vector.broadcast %205 : vector<1x256xf32> to vector<2x256xf32>
    %207 = arith.addf %204, %206 : vector<2x256xf32>
    %208 = arith.negf %207 : vector<2x256xf32>
    %209 = math.exp %208 : vector<2x256xf32>
    %cst_90 = arith.constant 1.000000e+00 : f32
    %210 = vector.broadcast %cst_90 : f32 to vector<2x256xf32>
    %211 = arith.addf %210, %209 : vector<2x256xf32>
    %212 = arith.divf %210, %211 : vector<2x256xf32>
    %213 = vector.extract_strided_slice %212 {offsets = [0, 0], sizes = [2, 128], strides = [1, 1]} : vector<2x256xf32> to vector<2x128xf32>
    %214 = vector.broadcast %36 : vector<1x128xf32> to vector<2x128xf32>
    %215 = arith.mulf %214, %213 : vector<2x128xf32>
    %216 = vector.extract_strided_slice %212 {offsets = [0, 128], sizes = [2, 128], strides = [1, 1]} : vector<2x256xf32> to vector<2x128xf32>
    %217 = vector.broadcast %37 : vector<1x128xf32> to vector<2x128xf32>
    %218 = arith.mulf %217, %216 : vector<2x128xf32>
    %219 = arith.addf %215, %218 : vector<2x128xf32>
    %220 = arith.mulf %202, %219 : vector<2x128xf32>
    %c0_91 = arith.constant 0 : index
    %c0_92 = arith.constant 0 : index
    %221 = vector.load %arg16[%c0_91, %c0_92] : memref<128x256xf32, #tpu.memory_space<vmem>>, vector<128x256xf32>
    %cst_93 = arith.constant dense<0.000000e+00> : vector<2x256xf32>
    %222 = tpu.matmul %220, %221, %cst_93 {dimension_numbers = #tpu.dot_dimension_numbers<[1], [0], [0], [1], [0, 0, 1, 1], [], []>} : vector<2x128xf32>, vector<128x256xf32>, vector<2x256xf32> -> vector<2x256xf32>
    %c0_94 = arith.constant 0 : index
    %c0_95 = arith.constant 0 : index
    %223 = vector.load %arg17[%c0_94, %c0_95] : memref<1x256xf32, #tpu.memory_space<vmem>>, vector<1x256xf32>
    %224 = vector.broadcast %223 : vector<1x256xf32> to vector<2x256xf32>
    %225 = arith.addf %222, %224 : vector<2x256xf32>
    %c0_96 = arith.constant 0 : index
    %c0_97 = arith.constant 0 : index
    %226 = vector.load %arg18[%c0_96, %c0_97] : memref<256x256xf32, #tpu.memory_space<vmem>>, vector<256x256xf32>
    %cst_98 = arith.constant dense<0.000000e+00> : vector<2x256xf32>
    %227 = tpu.matmul %225, %226, %cst_98 {dimension_numbers = #tpu.dot_dimension_numbers<[1], [0], [0], [1], [0, 0, 1, 1], [], []>} : vector<2x256xf32>, vector<256x256xf32>, vector<2x256xf32> -> vector<2x256xf32>
    %c0_99 = arith.constant 0 : index
    %c0_100 = arith.constant 0 : index
    %228 = vector.load %arg19[%c0_99, %c0_100] : memref<1x256xf32, #tpu.memory_space<vmem>>, vector<1x256xf32>
    %229 = vector.broadcast %228 : vector<1x256xf32> to vector<2x256xf32>
    %230 = arith.addf %227, %229 : vector<2x256xf32>
    %231 = vector.extract_strided_slice %230 {offsets = [0, 0], sizes = [2, 128], strides = [1, 1]} : vector<2x256xf32> to vector<2x128xf32>
    %232 = math.tanh %231 : vector<2x128xf32>
    %233 = vector.extract_strided_slice %230 {offsets = [0, 128], sizes = [2, 128], strides = [1, 1]} : vector<2x256xf32> to vector<2x128xf32>
    %234 = arith.negf %233 : vector<2x128xf32>
    %235 = math.exp %234 : vector<2x128xf32>
    %cst_101 = arith.constant 1.000000e+00 : f32
    %236 = vector.broadcast %cst_101 : f32 to vector<2x128xf32>
    %237 = arith.addf %236, %235 : vector<2x128xf32>
    %238 = arith.divf %236, %237 : vector<2x128xf32>
    %239 = arith.mulf %232, %238 : vector<2x128xf32>
    %240 = tpu.concatenate %202, %239 in 1 : vector<2x128xf32>, vector<2x128xf32> -> vector<2x256xf32>
    %241 = vector.extract_strided_slice %35 {offsets = [6, 0], sizes = [2, 512], strides = [1, 1]} : vector<16x512xf32> to vector<2x512xf32>
    %c0_102 = arith.constant 0 : index
    %c0_103 = arith.constant 0 : index
    %242 = vector.load %arg11[%c0_102, %c0_103] : memref<256x512xf32, #tpu.memory_space<vmem>>, vector<256x512xf32>
    %cst_104 = arith.constant dense<0.000000e+00> : vector<2x512xf32>
    %243 = tpu.matmul %240, %242, %cst_104 {dimension_numbers = #tpu.dot_dimension_numbers<[1], [0], [0], [1], [0, 0, 1, 1], [], []>} : vector<2x256xf32>, vector<256x512xf32>, vector<2x512xf32> -> vector<2x512xf32>
    %244 = arith.addf %241, %243 : vector<2x512xf32>
    %245 = vector.extract_strided_slice %244 {offsets = [0, 0], sizes = [2, 128], strides = [1, 1]} : vector<2x512xf32> to vector<2x128xf32>
    %246 = arith.negf %245 : vector<2x128xf32>
    %247 = math.exp %246 : vector<2x128xf32>
    %cst_105 = arith.constant 1.000000e+00 : f32
    %248 = vector.broadcast %cst_105 : f32 to vector<2x128xf32>
    %249 = arith.addf %248, %247 : vector<2x128xf32>
    %250 = arith.divf %248, %249 : vector<2x128xf32>
    %251 = vector.extract_strided_slice %244 {offsets = [0, 128], sizes = [2, 128], strides = [1, 1]} : vector<2x512xf32> to vector<2x128xf32>
    %252 = arith.negf %251 : vector<2x128xf32>
    %253 = math.exp %252 : vector<2x128xf32>
    %cst_106 = arith.constant 1.000000e+00 : f32
    %254 = vector.broadcast %cst_106 : f32 to vector<2x128xf32>
    %255 = arith.addf %254, %253 : vector<2x128xf32>
    %256 = arith.divf %254, %255 : vector<2x128xf32>
    %257 = vector.extract_strided_slice %244 {offsets = [0, 256], sizes = [2, 128], strides = [1, 1]} : vector<2x512xf32> to vector<2x128xf32>
    %258 = arith.negf %257 : vector<2x128xf32>
    %259 = math.exp %258 : vector<2x128xf32>
    %cst_107 = arith.constant 1.000000e+00 : f32
    %260 = vector.broadcast %cst_107 : f32 to vector<2x128xf32>
    %261 = arith.addf %260, %259 : vector<2x128xf32>
    %262 = arith.divf %260, %261 : vector<2x128xf32>
    %263 = vector.extract_strided_slice %244 {offsets = [0, 384], sizes = [2, 128], strides = [1, 1]} : vector<2x512xf32> to vector<2x128xf32>
    %264 = math.tanh %263 : vector<2x128xf32>
    %265 = arith.mulf %250, %200 : vector<2x128xf32>
    %266 = arith.mulf %256, %264 : vector<2x128xf32>
    %267 = arith.addf %265, %266 : vector<2x128xf32>
    %268 = math.tanh %267 : vector<2x128xf32>
    %269 = arith.mulf %268, %262 : vector<2x128xf32>
    %c0_108 = arith.constant 0 : index
    %c0_109 = arith.constant 0 : index
    %270 = vector.load %arg12[%c0_108, %c0_109] : memref<128x256xf32, #tpu.memory_space<vmem>>, vector<128x256xf32>
    %cst_110 = arith.constant dense<0.000000e+00> : vector<2x256xf32>
    %271 = tpu.matmul %269, %270, %cst_110 {dimension_numbers = #tpu.dot_dimension_numbers<[1], [0], [0], [1], [0, 0, 1, 1], [], []>} : vector<2x128xf32>, vector<128x256xf32>, vector<2x256xf32> -> vector<2x256xf32>
    %c0_111 = arith.constant 0 : index
    %c0_112 = arith.constant 0 : index
    %272 = vector.load %arg13[%c0_111, %c0_112] : memref<1x256xf32, #tpu.memory_space<vmem>>, vector<1x256xf32>
    %273 = vector.broadcast %272 : vector<1x256xf32> to vector<2x256xf32>
    %274 = arith.addf %271, %273 : vector<2x256xf32>
    %275 = arith.negf %274 : vector<2x256xf32>
    %276 = math.exp %275 : vector<2x256xf32>
    %cst_113 = arith.constant 1.000000e+00 : f32
    %277 = vector.broadcast %cst_113 : f32 to vector<2x256xf32>
    %278 = arith.addf %277, %276 : vector<2x256xf32>
    %279 = arith.divf %277, %278 : vector<2x256xf32>
    %280 = vector.extract_strided_slice %279 {offsets = [0, 0], sizes = [2, 128], strides = [1, 1]} : vector<2x256xf32> to vector<2x128xf32>
    %281 = vector.broadcast %36 : vector<1x128xf32> to vector<2x128xf32>
    %282 = arith.mulf %281, %280 : vector<2x128xf32>
    %283 = vector.extract_strided_slice %279 {offsets = [0, 128], sizes = [2, 128], strides = [1, 1]} : vector<2x256xf32> to vector<2x128xf32>
    %284 = vector.broadcast %37 : vector<1x128xf32> to vector<2x128xf32>
    %285 = arith.mulf %284, %283 : vector<2x128xf32>
    %286 = arith.addf %282, %285 : vector<2x128xf32>
    %287 = arith.mulf %269, %286 : vector<2x128xf32>
    %c0_114 = arith.constant 0 : index
    %c0_115 = arith.constant 0 : index
    %288 = vector.load %arg16[%c0_114, %c0_115] : memref<128x256xf32, #tpu.memory_space<vmem>>, vector<128x256xf32>
    %cst_116 = arith.constant dense<0.000000e+00> : vector<2x256xf32>
    %289 = tpu.matmul %287, %288, %cst_116 {dimension_numbers = #tpu.dot_dimension_numbers<[1], [0], [0], [1], [0, 0, 1, 1], [], []>} : vector<2x128xf32>, vector<128x256xf32>, vector<2x256xf32> -> vector<2x256xf32>
    %c0_117 = arith.constant 0 : index
    %c0_118 = arith.constant 0 : index
    %290 = vector.load %arg17[%c0_117, %c0_118] : memref<1x256xf32, #tpu.memory_space<vmem>>, vector<1x256xf32>
    %291 = vector.broadcast %290 : vector<1x256xf32> to vector<2x256xf32>
    %292 = arith.addf %289, %291 : vector<2x256xf32>
    %c0_119 = arith.constant 0 : index
    %c0_120 = arith.constant 0 : index
    %293 = vector.load %arg18[%c0_119, %c0_120] : memref<256x256xf32, #tpu.memory_space<vmem>>, vector<256x256xf32>
    %cst_121 = arith.constant dense<0.000000e+00> : vector<2x256xf32>
    %294 = tpu.matmul %292, %293, %cst_121 {dimension_numbers = #tpu.dot_dimension_numbers<[1], [0], [0], [1], [0, 0, 1, 1], [], []>} : vector<2x256xf32>, vector<256x256xf32>, vector<2x256xf32> -> vector<2x256xf32>
    %c0_122 = arith.constant 0 : index
    %c0_123 = arith.constant 0 : index
    %295 = vector.load %arg19[%c0_122, %c0_123] : memref<1x256xf32, #tpu.memory_space<vmem>>, vector<1x256xf32>
    %296 = vector.broadcast %295 : vector<1x256xf32> to vector<2x256xf32>
    %297 = arith.addf %294, %296 : vector<2x256xf32>
    %298 = vector.extract_strided_slice %297 {offsets = [0, 0], sizes = [2, 128], strides = [1, 1]} : vector<2x256xf32> to vector<2x128xf32>
    %299 = math.tanh %298 : vector<2x128xf32>
    %300 = vector.extract_strided_slice %297 {offsets = [0, 128], sizes = [2, 128], strides = [1, 1]} : vector<2x256xf32> to vector<2x128xf32>
    %301 = arith.negf %300 : vector<2x128xf32>
    %302 = math.exp %301 : vector<2x128xf32>
    %cst_124 = arith.constant 1.000000e+00 : f32
    %303 = vector.broadcast %cst_124 : f32 to vector<2x128xf32>
    %304 = arith.addf %303, %302 : vector<2x128xf32>
    %305 = arith.divf %303, %304 : vector<2x128xf32>
    %306 = arith.mulf %299, %305 : vector<2x128xf32>
    %307 = tpu.concatenate %269, %306 in 1 : vector<2x128xf32>, vector<2x128xf32> -> vector<2x256xf32>
    %308 = vector.extract_strided_slice %35 {offsets = [8, 0], sizes = [2, 512], strides = [1, 1]} : vector<16x512xf32> to vector<2x512xf32>
    %c0_125 = arith.constant 0 : index
    %c0_126 = arith.constant 0 : index
    %309 = vector.load %arg11[%c0_125, %c0_126] : memref<256x512xf32, #tpu.memory_space<vmem>>, vector<256x512xf32>
    %cst_127 = arith.constant dense<0.000000e+00> : vector<2x512xf32>
    %310 = tpu.matmul %307, %309, %cst_127 {dimension_numbers = #tpu.dot_dimension_numbers<[1], [0], [0], [1], [0, 0, 1, 1], [], []>} : vector<2x256xf32>, vector<256x512xf32>, vector<2x512xf32> -> vector<2x512xf32>
    %311 = arith.addf %308, %310 : vector<2x512xf32>
    %312 = vector.extract_strided_slice %311 {offsets = [0, 0], sizes = [2, 128], strides = [1, 1]} : vector<2x512xf32> to vector<2x128xf32>
    %313 = arith.negf %312 : vector<2x128xf32>
    %314 = math.exp %313 : vector<2x128xf32>
    %cst_128 = arith.constant 1.000000e+00 : f32
    %315 = vector.broadcast %cst_128 : f32 to vector<2x128xf32>
    %316 = arith.addf %315, %314 : vector<2x128xf32>
    %317 = arith.divf %315, %316 : vector<2x128xf32>
    %318 = vector.extract_strided_slice %311 {offsets = [0, 128], sizes = [2, 128], strides = [1, 1]} : vector<2x512xf32> to vector<2x128xf32>
    %319 = arith.negf %318 : vector<2x128xf32>
    %320 = math.exp %319 : vector<2x128xf32>
    %cst_129 = arith.constant 1.000000e+00 : f32
    %321 = vector.broadcast %cst_129 : f32 to vector<2x128xf32>
    %322 = arith.addf %321, %320 : vector<2x128xf32>
    %323 = arith.divf %321, %322 : vector<2x128xf32>
    %324 = vector.extract_strided_slice %311 {offsets = [0, 256], sizes = [2, 128], strides = [1, 1]} : vector<2x512xf32> to vector<2x128xf32>
    %325 = arith.negf %324 : vector<2x128xf32>
    %326 = math.exp %325 : vector<2x128xf32>
    %cst_130 = arith.constant 1.000000e+00 : f32
    %327 = vector.broadcast %cst_130 : f32 to vector<2x128xf32>
    %328 = arith.addf %327, %326 : vector<2x128xf32>
    %329 = arith.divf %327, %328 : vector<2x128xf32>
    %330 = vector.extract_strided_slice %311 {offsets = [0, 384], sizes = [2, 128], strides = [1, 1]} : vector<2x512xf32> to vector<2x128xf32>
    %331 = math.tanh %330 : vector<2x128xf32>
    %332 = arith.mulf %317, %267 : vector<2x128xf32>
    %333 = arith.mulf %323, %331 : vector<2x128xf32>
    %334 = arith.addf %332, %333 : vector<2x128xf32>
    %335 = math.tanh %334 : vector<2x128xf32>
    %336 = arith.mulf %335, %329 : vector<2x128xf32>
    %c0_131 = arith.constant 0 : index
    %c0_132 = arith.constant 0 : index
    %337 = vector.load %arg12[%c0_131, %c0_132] : memref<128x256xf32, #tpu.memory_space<vmem>>, vector<128x256xf32>
    %cst_133 = arith.constant dense<0.000000e+00> : vector<2x256xf32>
    %338 = tpu.matmul %336, %337, %cst_133 {dimension_numbers = #tpu.dot_dimension_numbers<[1], [0], [0], [1], [0, 0, 1, 1], [], []>} : vector<2x128xf32>, vector<128x256xf32>, vector<2x256xf32> -> vector<2x256xf32>
    %c0_134 = arith.constant 0 : index
    %c0_135 = arith.constant 0 : index
    %339 = vector.load %arg13[%c0_134, %c0_135] : memref<1x256xf32, #tpu.memory_space<vmem>>, vector<1x256xf32>
    %340 = vector.broadcast %339 : vector<1x256xf32> to vector<2x256xf32>
    %341 = arith.addf %338, %340 : vector<2x256xf32>
    %342 = arith.negf %341 : vector<2x256xf32>
    %343 = math.exp %342 : vector<2x256xf32>
    %cst_136 = arith.constant 1.000000e+00 : f32
    %344 = vector.broadcast %cst_136 : f32 to vector<2x256xf32>
    %345 = arith.addf %344, %343 : vector<2x256xf32>
    %346 = arith.divf %344, %345 : vector<2x256xf32>
    %347 = vector.extract_strided_slice %346 {offsets = [0, 0], sizes = [2, 128], strides = [1, 1]} : vector<2x256xf32> to vector<2x128xf32>
    %348 = vector.broadcast %36 : vector<1x128xf32> to vector<2x128xf32>
    %349 = arith.mulf %348, %347 : vector<2x128xf32>
    %350 = vector.extract_strided_slice %346 {offsets = [0, 128], sizes = [2, 128], strides = [1, 1]} : vector<2x256xf32> to vector<2x128xf32>
    %351 = vector.broadcast %37 : vector<1x128xf32> to vector<2x128xf32>
    %352 = arith.mulf %351, %350 : vector<2x128xf32>
    %353 = arith.addf %349, %352 : vector<2x128xf32>
    %354 = arith.mulf %336, %353 : vector<2x128xf32>
    %c0_137 = arith.constant 0 : index
    %c0_138 = arith.constant 0 : index
    %355 = vector.load %arg16[%c0_137, %c0_138] : memref<128x256xf32, #tpu.memory_space<vmem>>, vector<128x256xf32>
    %cst_139 = arith.constant dense<0.000000e+00> : vector<2x256xf32>
    %356 = tpu.matmul %354, %355, %cst_139 {dimension_numbers = #tpu.dot_dimension_numbers<[1], [0], [0], [1], [0, 0, 1, 1], [], []>} : vector<2x128xf32>, vector<128x256xf32>, vector<2x256xf32> -> vector<2x256xf32>
    %c0_140 = arith.constant 0 : index
    %c0_141 = arith.constant 0 : index
    %357 = vector.load %arg17[%c0_140, %c0_141] : memref<1x256xf32, #tpu.memory_space<vmem>>, vector<1x256xf32>
    %358 = vector.broadcast %357 : vector<1x256xf32> to vector<2x256xf32>
    %359 = arith.addf %356, %358 : vector<2x256xf32>
    %c0_142 = arith.constant 0 : index
    %c0_143 = arith.constant 0 : index
    %360 = vector.load %arg18[%c0_142, %c0_143] : memref<256x256xf32, #tpu.memory_space<vmem>>, vector<256x256xf32>
    %cst_144 = arith.constant dense<0.000000e+00> : vector<2x256xf32>
    %361 = tpu.matmul %359, %360, %cst_144 {dimension_numbers = #tpu.dot_dimension_numbers<[1], [0], [0], [1], [0, 0, 1, 1], [], []>} : vector<2x256xf32>, vector<256x256xf32>, vector<2x256xf32> -> vector<2x256xf32>
    %c0_145 = arith.constant 0 : index
    %c0_146 = arith.constant 0 : index
    %362 = vector.load %arg19[%c0_145, %c0_146] : memref<1x256xf32, #tpu.memory_space<vmem>>, vector<1x256xf32>
    %363 = vector.broadcast %362 : vector<1x256xf32> to vector<2x256xf32>
    %364 = arith.addf %361, %363 : vector<2x256xf32>
    %365 = vector.extract_strided_slice %364 {offsets = [0, 0], sizes = [2, 128], strides = [1, 1]} : vector<2x256xf32> to vector<2x128xf32>
    %366 = math.tanh %365 : vector<2x128xf32>
    %367 = vector.extract_strided_slice %364 {offsets = [0, 128], sizes = [2, 128], strides = [1, 1]} : vector<2x256xf32> to vector<2x128xf32>
    %368 = arith.negf %367 : vector<2x128xf32>
    %369 = math.exp %368 : vector<2x128xf32>
    %cst_147 = arith.constant 1.000000e+00 : f32
    %370 = vector.broadcast %cst_147 : f32 to vector<2x128xf32>
    %371 = arith.addf %370, %369 : vector<2x128xf32>
    %372 = arith.divf %370, %371 : vector<2x128xf32>
    %373 = arith.mulf %366, %372 : vector<2x128xf32>
    %374 = tpu.concatenate %336, %373 in 1 : vector<2x128xf32>, vector<2x128xf32> -> vector<2x256xf32>
    %375 = vector.extract_strided_slice %35 {offsets = [10, 0], sizes = [2, 512], strides = [1, 1]} : vector<16x512xf32> to vector<2x512xf32>
    %c0_148 = arith.constant 0 : index
    %c0_149 = arith.constant 0 : index
    %376 = vector.load %arg11[%c0_148, %c0_149] : memref<256x512xf32, #tpu.memory_space<vmem>>, vector<256x512xf32>
    %cst_150 = arith.constant dense<0.000000e+00> : vector<2x512xf32>
    %377 = tpu.matmul %374, %376, %cst_150 {dimension_numbers = #tpu.dot_dimension_numbers<[1], [0], [0], [1], [0, 0, 1, 1], [], []>} : vector<2x256xf32>, vector<256x512xf32>, vector<2x512xf32> -> vector<2x512xf32>
    %378 = arith.addf %375, %377 : vector<2x512xf32>
    %379 = vector.extract_strided_slice %378 {offsets = [0, 0], sizes = [2, 128], strides = [1, 1]} : vector<2x512xf32> to vector<2x128xf32>
    %380 = arith.negf %379 : vector<2x128xf32>
    %381 = math.exp %380 : vector<2x128xf32>
    %cst_151 = arith.constant 1.000000e+00 : f32
    %382 = vector.broadcast %cst_151 : f32 to vector<2x128xf32>
    %383 = arith.addf %382, %381 : vector<2x128xf32>
    %384 = arith.divf %382, %383 : vector<2x128xf32>
    %385 = vector.extract_strided_slice %378 {offsets = [0, 128], sizes = [2, 128], strides = [1, 1]} : vector<2x512xf32> to vector<2x128xf32>
    %386 = arith.negf %385 : vector<2x128xf32>
    %387 = math.exp %386 : vector<2x128xf32>
    %cst_152 = arith.constant 1.000000e+00 : f32
    %388 = vector.broadcast %cst_152 : f32 to vector<2x128xf32>
    %389 = arith.addf %388, %387 : vector<2x128xf32>
    %390 = arith.divf %388, %389 : vector<2x128xf32>
    %391 = vector.extract_strided_slice %378 {offsets = [0, 256], sizes = [2, 128], strides = [1, 1]} : vector<2x512xf32> to vector<2x128xf32>
    %392 = arith.negf %391 : vector<2x128xf32>
    %393 = math.exp %392 : vector<2x128xf32>
    %cst_153 = arith.constant 1.000000e+00 : f32
    %394 = vector.broadcast %cst_153 : f32 to vector<2x128xf32>
    %395 = arith.addf %394, %393 : vector<2x128xf32>
    %396 = arith.divf %394, %395 : vector<2x128xf32>
    %397 = vector.extract_strided_slice %378 {offsets = [0, 384], sizes = [2, 128], strides = [1, 1]} : vector<2x512xf32> to vector<2x128xf32>
    %398 = math.tanh %397 : vector<2x128xf32>
    %399 = arith.mulf %384, %334 : vector<2x128xf32>
    %400 = arith.mulf %390, %398 : vector<2x128xf32>
    %401 = arith.addf %399, %400 : vector<2x128xf32>
    %402 = math.tanh %401 : vector<2x128xf32>
    %403 = arith.mulf %402, %396 : vector<2x128xf32>
    %c0_154 = arith.constant 0 : index
    %c0_155 = arith.constant 0 : index
    %404 = vector.load %arg12[%c0_154, %c0_155] : memref<128x256xf32, #tpu.memory_space<vmem>>, vector<128x256xf32>
    %cst_156 = arith.constant dense<0.000000e+00> : vector<2x256xf32>
    %405 = tpu.matmul %403, %404, %cst_156 {dimension_numbers = #tpu.dot_dimension_numbers<[1], [0], [0], [1], [0, 0, 1, 1], [], []>} : vector<2x128xf32>, vector<128x256xf32>, vector<2x256xf32> -> vector<2x256xf32>
    %c0_157 = arith.constant 0 : index
    %c0_158 = arith.constant 0 : index
    %406 = vector.load %arg13[%c0_157, %c0_158] : memref<1x256xf32, #tpu.memory_space<vmem>>, vector<1x256xf32>
    %407 = vector.broadcast %406 : vector<1x256xf32> to vector<2x256xf32>
    %408 = arith.addf %405, %407 : vector<2x256xf32>
    %409 = arith.negf %408 : vector<2x256xf32>
    %410 = math.exp %409 : vector<2x256xf32>
    %cst_159 = arith.constant 1.000000e+00 : f32
    %411 = vector.broadcast %cst_159 : f32 to vector<2x256xf32>
    %412 = arith.addf %411, %410 : vector<2x256xf32>
    %413 = arith.divf %411, %412 : vector<2x256xf32>
    %414 = vector.extract_strided_slice %413 {offsets = [0, 0], sizes = [2, 128], strides = [1, 1]} : vector<2x256xf32> to vector<2x128xf32>
    %415 = vector.broadcast %36 : vector<1x128xf32> to vector<2x128xf32>
    %416 = arith.mulf %415, %414 : vector<2x128xf32>
    %417 = vector.extract_strided_slice %413 {offsets = [0, 128], sizes = [2, 128], strides = [1, 1]} : vector<2x256xf32> to vector<2x128xf32>
    %418 = vector.broadcast %37 : vector<1x128xf32> to vector<2x128xf32>
    %419 = arith.mulf %418, %417 : vector<2x128xf32>
    %420 = arith.addf %416, %419 : vector<2x128xf32>
    %421 = arith.mulf %403, %420 : vector<2x128xf32>
    %c0_160 = arith.constant 0 : index
    %c0_161 = arith.constant 0 : index
    %422 = vector.load %arg16[%c0_160, %c0_161] : memref<128x256xf32, #tpu.memory_space<vmem>>, vector<128x256xf32>
    %cst_162 = arith.constant dense<0.000000e+00> : vector<2x256xf32>
    %423 = tpu.matmul %421, %422, %cst_162 {dimension_numbers = #tpu.dot_dimension_numbers<[1], [0], [0], [1], [0, 0, 1, 1], [], []>} : vector<2x128xf32>, vector<128x256xf32>, vector<2x256xf32> -> vector<2x256xf32>
    %c0_163 = arith.constant 0 : index
    %c0_164 = arith.constant 0 : index
    %424 = vector.load %arg17[%c0_163, %c0_164] : memref<1x256xf32, #tpu.memory_space<vmem>>, vector<1x256xf32>
    %425 = vector.broadcast %424 : vector<1x256xf32> to vector<2x256xf32>
    %426 = arith.addf %423, %425 : vector<2x256xf32>
    %c0_165 = arith.constant 0 : index
    %c0_166 = arith.constant 0 : index
    %427 = vector.load %arg18[%c0_165, %c0_166] : memref<256x256xf32, #tpu.memory_space<vmem>>, vector<256x256xf32>
    %cst_167 = arith.constant dense<0.000000e+00> : vector<2x256xf32>
    %428 = tpu.matmul %426, %427, %cst_167 {dimension_numbers = #tpu.dot_dimension_numbers<[1], [0], [0], [1], [0, 0, 1, 1], [], []>} : vector<2x256xf32>, vector<256x256xf32>, vector<2x256xf32> -> vector<2x256xf32>
    %c0_168 = arith.constant 0 : index
    %c0_169 = arith.constant 0 : index
    %429 = vector.load %arg19[%c0_168, %c0_169] : memref<1x256xf32, #tpu.memory_space<vmem>>, vector<1x256xf32>
    %430 = vector.broadcast %429 : vector<1x256xf32> to vector<2x256xf32>
    %431 = arith.addf %428, %430 : vector<2x256xf32>
    %432 = vector.extract_strided_slice %431 {offsets = [0, 0], sizes = [2, 128], strides = [1, 1]} : vector<2x256xf32> to vector<2x128xf32>
    %433 = math.tanh %432 : vector<2x128xf32>
    %434 = vector.extract_strided_slice %431 {offsets = [0, 128], sizes = [2, 128], strides = [1, 1]} : vector<2x256xf32> to vector<2x128xf32>
    %435 = arith.negf %434 : vector<2x128xf32>
    %436 = math.exp %435 : vector<2x128xf32>
    %cst_170 = arith.constant 1.000000e+00 : f32
    %437 = vector.broadcast %cst_170 : f32 to vector<2x128xf32>
    %438 = arith.addf %437, %436 : vector<2x128xf32>
    %439 = arith.divf %437, %438 : vector<2x128xf32>
    %440 = arith.mulf %433, %439 : vector<2x128xf32>
    %441 = tpu.concatenate %403, %440 in 1 : vector<2x128xf32>, vector<2x128xf32> -> vector<2x256xf32>
    %442 = vector.extract_strided_slice %35 {offsets = [12, 0], sizes = [2, 512], strides = [1, 1]} : vector<16x512xf32> to vector<2x512xf32>
    %c0_171 = arith.constant 0 : index
    %c0_172 = arith.constant 0 : index
    %443 = vector.load %arg11[%c0_171, %c0_172] : memref<256x512xf32, #tpu.memory_space<vmem>>, vector<256x512xf32>
    %cst_173 = arith.constant dense<0.000000e+00> : vector<2x512xf32>
    %444 = tpu.matmul %441, %443, %cst_173 {dimension_numbers = #tpu.dot_dimension_numbers<[1], [0], [0], [1], [0, 0, 1, 1], [], []>} : vector<2x256xf32>, vector<256x512xf32>, vector<2x512xf32> -> vector<2x512xf32>
    %445 = arith.addf %442, %444 : vector<2x512xf32>
    %446 = vector.extract_strided_slice %445 {offsets = [0, 0], sizes = [2, 128], strides = [1, 1]} : vector<2x512xf32> to vector<2x128xf32>
    %447 = arith.negf %446 : vector<2x128xf32>
    %448 = math.exp %447 : vector<2x128xf32>
    %cst_174 = arith.constant 1.000000e+00 : f32
    %449 = vector.broadcast %cst_174 : f32 to vector<2x128xf32>
    %450 = arith.addf %449, %448 : vector<2x128xf32>
    %451 = arith.divf %449, %450 : vector<2x128xf32>
    %452 = vector.extract_strided_slice %445 {offsets = [0, 128], sizes = [2, 128], strides = [1, 1]} : vector<2x512xf32> to vector<2x128xf32>
    %453 = arith.negf %452 : vector<2x128xf32>
    %454 = math.exp %453 : vector<2x128xf32>
    %cst_175 = arith.constant 1.000000e+00 : f32
    %455 = vector.broadcast %cst_175 : f32 to vector<2x128xf32>
    %456 = arith.addf %455, %454 : vector<2x128xf32>
    %457 = arith.divf %455, %456 : vector<2x128xf32>
    %458 = vector.extract_strided_slice %445 {offsets = [0, 256], sizes = [2, 128], strides = [1, 1]} : vector<2x512xf32> to vector<2x128xf32>
    %459 = arith.negf %458 : vector<2x128xf32>
    %460 = math.exp %459 : vector<2x128xf32>
    %cst_176 = arith.constant 1.000000e+00 : f32
    %461 = vector.broadcast %cst_176 : f32 to vector<2x128xf32>
    %462 = arith.addf %461, %460 : vector<2x128xf32>
    %463 = arith.divf %461, %462 : vector<2x128xf32>
    %464 = vector.extract_strided_slice %445 {offsets = [0, 384], sizes = [2, 128], strides = [1, 1]} : vector<2x512xf32> to vector<2x128xf32>
    %465 = math.tanh %464 : vector<2x128xf32>
    %466 = arith.mulf %451, %401 : vector<2x128xf32>
    %467 = arith.mulf %457, %465 : vector<2x128xf32>
    %468 = arith.addf %466, %467 : vector<2x128xf32>
    %469 = math.tanh %468 : vector<2x128xf32>
    %470 = arith.mulf %469, %463 : vector<2x128xf32>
    %c0_177 = arith.constant 0 : index
    %c0_178 = arith.constant 0 : index
    %471 = vector.load %arg12[%c0_177, %c0_178] : memref<128x256xf32, #tpu.memory_space<vmem>>, vector<128x256xf32>
    %cst_179 = arith.constant dense<0.000000e+00> : vector<2x256xf32>
    %472 = tpu.matmul %470, %471, %cst_179 {dimension_numbers = #tpu.dot_dimension_numbers<[1], [0], [0], [1], [0, 0, 1, 1], [], []>} : vector<2x128xf32>, vector<128x256xf32>, vector<2x256xf32> -> vector<2x256xf32>
    %c0_180 = arith.constant 0 : index
    %c0_181 = arith.constant 0 : index
    %473 = vector.load %arg13[%c0_180, %c0_181] : memref<1x256xf32, #tpu.memory_space<vmem>>, vector<1x256xf32>
    %474 = vector.broadcast %473 : vector<1x256xf32> to vector<2x256xf32>
    %475 = arith.addf %472, %474 : vector<2x256xf32>
    %476 = arith.negf %475 : vector<2x256xf32>
    %477 = math.exp %476 : vector<2x256xf32>
    %cst_182 = arith.constant 1.000000e+00 : f32
    %478 = vector.broadcast %cst_182 : f32 to vector<2x256xf32>
    %479 = arith.addf %478, %477 : vector<2x256xf32>
    %480 = arith.divf %478, %479 : vector<2x256xf32>
    %481 = vector.extract_strided_slice %480 {offsets = [0, 0], sizes = [2, 128], strides = [1, 1]} : vector<2x256xf32> to vector<2x128xf32>
    %482 = vector.broadcast %36 : vector<1x128xf32> to vector<2x128xf32>
    %483 = arith.mulf %482, %481 : vector<2x128xf32>
    %484 = vector.extract_strided_slice %480 {offsets = [0, 128], sizes = [2, 128], strides = [1, 1]} : vector<2x256xf32> to vector<2x128xf32>
    %485 = vector.broadcast %37 : vector<1x128xf32> to vector<2x128xf32>
    %486 = arith.mulf %485, %484 : vector<2x128xf32>
    %487 = arith.addf %483, %486 : vector<2x128xf32>
    %488 = arith.mulf %470, %487 : vector<2x128xf32>
    %c0_183 = arith.constant 0 : index
    %c0_184 = arith.constant 0 : index
    %489 = vector.load %arg16[%c0_183, %c0_184] : memref<128x256xf32, #tpu.memory_space<vmem>>, vector<128x256xf32>
    %cst_185 = arith.constant dense<0.000000e+00> : vector<2x256xf32>
    %490 = tpu.matmul %488, %489, %cst_185 {dimension_numbers = #tpu.dot_dimension_numbers<[1], [0], [0], [1], [0, 0, 1, 1], [], []>} : vector<2x128xf32>, vector<128x256xf32>, vector<2x256xf32> -> vector<2x256xf32>
    %c0_186 = arith.constant 0 : index
    %c0_187 = arith.constant 0 : index
    %491 = vector.load %arg17[%c0_186, %c0_187] : memref<1x256xf32, #tpu.memory_space<vmem>>, vector<1x256xf32>
    %492 = vector.broadcast %491 : vector<1x256xf32> to vector<2x256xf32>
    %493 = arith.addf %490, %492 : vector<2x256xf32>
    %c0_188 = arith.constant 0 : index
    %c0_189 = arith.constant 0 : index
    %494 = vector.load %arg18[%c0_188, %c0_189] : memref<256x256xf32, #tpu.memory_space<vmem>>, vector<256x256xf32>
    %cst_190 = arith.constant dense<0.000000e+00> : vector<2x256xf32>
    %495 = tpu.matmul %493, %494, %cst_190 {dimension_numbers = #tpu.dot_dimension_numbers<[1], [0], [0], [1], [0, 0, 1, 1], [], []>} : vector<2x256xf32>, vector<256x256xf32>, vector<2x256xf32> -> vector<2x256xf32>
    %c0_191 = arith.constant 0 : index
    %c0_192 = arith.constant 0 : index
    %496 = vector.load %arg19[%c0_191, %c0_192] : memref<1x256xf32, #tpu.memory_space<vmem>>, vector<1x256xf32>
    %497 = vector.broadcast %496 : vector<1x256xf32> to vector<2x256xf32>
    %498 = arith.addf %495, %497 : vector<2x256xf32>
    %499 = vector.extract_strided_slice %498 {offsets = [0, 0], sizes = [2, 128], strides = [1, 1]} : vector<2x256xf32> to vector<2x128xf32>
    %500 = math.tanh %499 : vector<2x128xf32>
    %501 = vector.extract_strided_slice %498 {offsets = [0, 128], sizes = [2, 128], strides = [1, 1]} : vector<2x256xf32> to vector<2x128xf32>
    %502 = arith.negf %501 : vector<2x128xf32>
    %503 = math.exp %502 : vector<2x128xf32>
    %cst_193 = arith.constant 1.000000e+00 : f32
    %504 = vector.broadcast %cst_193 : f32 to vector<2x128xf32>
    %505 = arith.addf %504, %503 : vector<2x128xf32>
    %506 = arith.divf %504, %505 : vector<2x128xf32>
    %507 = arith.mulf %500, %506 : vector<2x128xf32>
    %508 = tpu.concatenate %470, %507 in 1 : vector<2x128xf32>, vector<2x128xf32> -> vector<2x256xf32>
    %509 = vector.extract_strided_slice %35 {offsets = [14, 0], sizes = [2, 512], strides = [1, 1]} : vector<16x512xf32> to vector<2x512xf32>
    %c0_194 = arith.constant 0 : index
    %c0_195 = arith.constant 0 : index
    %510 = vector.load %arg11[%c0_194, %c0_195] : memref<256x512xf32, #tpu.memory_space<vmem>>, vector<256x512xf32>
    %cst_196 = arith.constant dense<0.000000e+00> : vector<2x512xf32>
    %511 = tpu.matmul %508, %510, %cst_196 {dimension_numbers = #tpu.dot_dimension_numbers<[1], [0], [0], [1], [0, 0, 1, 1], [], []>} : vector<2x256xf32>, vector<256x512xf32>, vector<2x512xf32> -> vector<2x512xf32>
    %512 = arith.addf %509, %511 : vector<2x512xf32>
    %513 = vector.extract_strided_slice %512 {offsets = [0, 0], sizes = [2, 128], strides = [1, 1]} : vector<2x512xf32> to vector<2x128xf32>
    %514 = arith.negf %513 : vector<2x128xf32>
    %515 = math.exp %514 : vector<2x128xf32>
    %cst_197 = arith.constant 1.000000e+00 : f32
    %516 = vector.broadcast %cst_197 : f32 to vector<2x128xf32>
    %517 = arith.addf %516, %515 : vector<2x128xf32>
    %518 = arith.divf %516, %517 : vector<2x128xf32>
    %519 = vector.extract_strided_slice %512 {offsets = [0, 128], sizes = [2, 128], strides = [1, 1]} : vector<2x512xf32> to vector<2x128xf32>
    %520 = arith.negf %519 : vector<2x128xf32>
    %521 = math.exp %520 : vector<2x128xf32>
    %cst_198 = arith.constant 1.000000e+00 : f32
    %522 = vector.broadcast %cst_198 : f32 to vector<2x128xf32>
    %523 = arith.addf %522, %521 : vector<2x128xf32>
    %524 = arith.divf %522, %523 : vector<2x128xf32>
    %525 = vector.extract_strided_slice %512 {offsets = [0, 256], sizes = [2, 128], strides = [1, 1]} : vector<2x512xf32> to vector<2x128xf32>
    %526 = arith.negf %525 : vector<2x128xf32>
    %527 = math.exp %526 : vector<2x128xf32>
    %cst_199 = arith.constant 1.000000e+00 : f32
    %528 = vector.broadcast %cst_199 : f32 to vector<2x128xf32>
    %529 = arith.addf %528, %527 : vector<2x128xf32>
    %530 = arith.divf %528, %529 : vector<2x128xf32>
    %531 = vector.extract_strided_slice %512 {offsets = [0, 384], sizes = [2, 128], strides = [1, 1]} : vector<2x512xf32> to vector<2x128xf32>
    %532 = math.tanh %531 : vector<2x128xf32>
    %533 = arith.mulf %518, %468 : vector<2x128xf32>
    %534 = arith.mulf %524, %532 : vector<2x128xf32>
    %535 = arith.addf %533, %534 : vector<2x128xf32>
    %536 = math.tanh %535 : vector<2x128xf32>
    %537 = arith.mulf %536, %530 : vector<2x128xf32>
    %c0_200 = arith.constant 0 : index
    %c0_201 = arith.constant 0 : index
    %538 = vector.load %arg12[%c0_200, %c0_201] : memref<128x256xf32, #tpu.memory_space<vmem>>, vector<128x256xf32>
    %cst_202 = arith.constant dense<0.000000e+00> : vector<2x256xf32>
    %539 = tpu.matmul %537, %538, %cst_202 {dimension_numbers = #tpu.dot_dimension_numbers<[1], [0], [0], [1], [0, 0, 1, 1], [], []>} : vector<2x128xf32>, vector<128x256xf32>, vector<2x256xf32> -> vector<2x256xf32>
    %c0_203 = arith.constant 0 : index
    %c0_204 = arith.constant 0 : index
    %540 = vector.load %arg13[%c0_203, %c0_204] : memref<1x256xf32, #tpu.memory_space<vmem>>, vector<1x256xf32>
    %541 = vector.broadcast %540 : vector<1x256xf32> to vector<2x256xf32>
    %542 = arith.addf %539, %541 : vector<2x256xf32>
    %543 = arith.negf %542 : vector<2x256xf32>
    %544 = math.exp %543 : vector<2x256xf32>
    %cst_205 = arith.constant 1.000000e+00 : f32
    %545 = vector.broadcast %cst_205 : f32 to vector<2x256xf32>
    %546 = arith.addf %545, %544 : vector<2x256xf32>
    %547 = arith.divf %545, %546 : vector<2x256xf32>
    %548 = vector.extract_strided_slice %547 {offsets = [0, 0], sizes = [2, 128], strides = [1, 1]} : vector<2x256xf32> to vector<2x128xf32>
    %549 = vector.broadcast %36 : vector<1x128xf32> to vector<2x128xf32>
    %550 = arith.mulf %549, %548 : vector<2x128xf32>
    %551 = vector.extract_strided_slice %547 {offsets = [0, 128], sizes = [2, 128], strides = [1, 1]} : vector<2x256xf32> to vector<2x128xf32>
    %552 = vector.broadcast %37 : vector<1x128xf32> to vector<2x128xf32>
    %553 = arith.mulf %552, %551 : vector<2x128xf32>
    %554 = arith.addf %550, %553 : vector<2x128xf32>
    %555 = arith.mulf %537, %554 : vector<2x128xf32>
    %c0_206 = arith.constant 0 : index
    %c0_207 = arith.constant 0 : index
    %556 = vector.load %arg16[%c0_206, %c0_207] : memref<128x256xf32, #tpu.memory_space<vmem>>, vector<128x256xf32>
    %cst_208 = arith.constant dense<0.000000e+00> : vector<2x256xf32>
    %557 = tpu.matmul %555, %556, %cst_208 {dimension_numbers = #tpu.dot_dimension_numbers<[1], [0], [0], [1], [0, 0, 1, 1], [], []>} : vector<2x128xf32>, vector<128x256xf32>, vector<2x256xf32> -> vector<2x256xf32>
    %c0_209 = arith.constant 0 : index
    %c0_210 = arith.constant 0 : index
    %558 = vector.load %arg17[%c0_209, %c0_210] : memref<1x256xf32, #tpu.memory_space<vmem>>, vector<1x256xf32>
    %559 = vector.broadcast %558 : vector<1x256xf32> to vector<2x256xf32>
    %560 = arith.addf %557, %559 : vector<2x256xf32>
    %c0_211 = arith.constant 0 : index
    %c0_212 = arith.constant 0 : index
    %561 = vector.load %arg18[%c0_211, %c0_212] : memref<256x256xf32, #tpu.memory_space<vmem>>, vector<256x256xf32>
    %cst_213 = arith.constant dense<0.000000e+00> : vector<2x256xf32>
    %562 = tpu.matmul %560, %561, %cst_213 {dimension_numbers = #tpu.dot_dimension_numbers<[1], [0], [0], [1], [0, 0, 1, 1], [], []>} : vector<2x256xf32>, vector<256x256xf32>, vector<2x256xf32> -> vector<2x256xf32>
    %c0_214 = arith.constant 0 : index
    %c0_215 = arith.constant 0 : index
    %563 = vector.load %arg19[%c0_214, %c0_215] : memref<1x256xf32, #tpu.memory_space<vmem>>, vector<1x256xf32>
    %564 = vector.broadcast %563 : vector<1x256xf32> to vector<2x256xf32>
    %565 = arith.addf %562, %564 : vector<2x256xf32>
    %566 = vector.extract_strided_slice %565 {offsets = [0, 0], sizes = [2, 128], strides = [1, 1]} : vector<2x256xf32> to vector<2x128xf32>
    %567 = math.tanh %566 : vector<2x128xf32>
    %568 = vector.extract_strided_slice %565 {offsets = [0, 128], sizes = [2, 128], strides = [1, 1]} : vector<2x256xf32> to vector<2x128xf32>
    %569 = arith.negf %568 : vector<2x128xf32>
    %570 = math.exp %569 : vector<2x128xf32>
    %cst_216 = arith.constant 1.000000e+00 : f32
    %571 = vector.broadcast %cst_216 : f32 to vector<2x128xf32>
    %572 = arith.addf %571, %570 : vector<2x128xf32>
    %573 = arith.divf %571, %572 : vector<2x128xf32>
    %574 = arith.mulf %567, %573 : vector<2x128xf32>
    %575 = tpu.concatenate %537, %574 in 1 : vector<2x128xf32>, vector<2x128xf32> -> vector<2x256xf32>
    %576 = vector.extract_strided_slice %575 {offsets = [0, 128], sizes = [2, 128], strides = [1, 1]} : vector<2x256xf32> to vector<2x128xf32>
    %c0_217 = arith.constant 0 : index
    %c0_218 = arith.constant 0 : index
    %577 = vector.load %arg20[%c0_217, %c0_218] : memref<128x128xf32, #tpu.memory_space<vmem>>, vector<128x128xf32>
    %cst_219 = arith.constant dense<0.000000e+00> : vector<2x128xf32>
    %578 = tpu.matmul %576, %577, %cst_219 {dimension_numbers = #tpu.dot_dimension_numbers<[1], [0], [0], [1], [0, 0, 1, 1], [], []>} : vector<2x128xf32>, vector<128x128xf32>, vector<2x128xf32> -> vector<2x128xf32>
    %c0_220 = arith.constant 0 : index
    %c0_221 = arith.constant 0 : index
    %579 = vector.load %arg21[%c0_220, %c0_221] : memref<1x128xf32, #tpu.memory_space<vmem>>, vector<1x128xf32>
    %580 = vector.broadcast %579 : vector<1x128xf32> to vector<2x128xf32>
    %581 = arith.addf %578, %580 : vector<2x128xf32>
    %cst_222 = arith.constant 0.000000e+00 : f32
    %582 = vector.broadcast %cst_222 : f32 to vector<2x128xf32>
    %583 = arith.maximumf %581, %582 : vector<2x128xf32>
    %c0_223 = arith.constant 0 : index
    %c0_224 = arith.constant 0 : index
    %584 = vector.load %arg22[%c0_223, %c0_224] : memref<128x128xf32, #tpu.memory_space<vmem>>, vector<128x128xf32>
    %cst_225 = arith.constant dense<0.000000e+00> : vector<2x128xf32>
    %585 = tpu.matmul %583, %584, %cst_225 {dimension_numbers = #tpu.dot_dimension_numbers<[1], [0], [0], [1], [0, 0, 1, 1], [], []>} : vector<2x128xf32>, vector<128x128xf32>, vector<2x128xf32> -> vector<2x128xf32>
    %c0_226 = arith.constant 0 : index
    %c0_227 = arith.constant 0 : index
    %586 = vector.load %arg23[%c0_226, %c0_227] : memref<1x128xf32, #tpu.memory_space<vmem>>, vector<1x128xf32>
    %587 = vector.broadcast %586 : vector<1x128xf32> to vector<2x128xf32>
    %588 = arith.addf %585, %587 : vector<2x128xf32>
    %c0_228 = arith.constant 0 : index
    %c0_229 = arith.constant 0 : index
    %589 = vector.load %arg24[%c0_228, %c0_229] : memref<2x128xf32, #tpu.memory_space<vmem>>, vector<2x128xf32>
    tpu.vector_store %arg24[%c0_228, %c0_229], %588 {strides = array<i32>} : memref<2x128xf32, #tpu.memory_space<vmem>>, vector<2x128xf32>,
    return
  }
}

</mosaic_0001>

<llo_original>
// kernel: tpu_custom_call.1
$region0: #{tpu_custom_call.1}
  #allocation0 [shape = 'u32[]', space=smem, size = 0x4, offset = 0x4, fixed_abs, tag = 'smem constant byte address 0x4 - core index']
  #allocation1 [shape = 'u32[144,128]{1,0:T(1,128)}', space=vmem, size = 0x12000, scoped, tag = 'internal scratch']
  %s0 = inlined_call_operand.hbm [shape: f32[16,16], index: 0, kind: input, shape index: {}]
  %s1 = inlined_call_operand.hbm [shape: f32[16,12], index: 1, kind: input, shape index: {}]
  %s2 = inlined_call_operand.hbm [shape: f32[16,20], index: 2, kind: input, shape index: {}]
  %s3 = inlined_call_operand.hbm [shape: f32[20,20], index: 3, kind: input, shape index: {}]
  %s4 = inlined_call_operand.hbm [shape: f32[1,20], index: 4, kind: input, shape index: {}]
  %s5 = inlined_call_operand.vmem [shape: f32[12,12], index: 5, kind: input, shape index: {}]
  %s6 = inlined_call_operand.hbm [shape: f32[1,12], index: 6, kind: input, shape index: {}]
  %s7 = inlined_call_operand.hbm [shape: f32[16,512], index: 7, kind: input, shape index: {}]
  %s8 = inlined_call_operand.hbm [shape: f32[12,512], index: 8, kind: input, shape index: {}]
  %s9 = inlined_call_operand.hbm [shape: f32[20,512], index: 9, kind: input, shape index: {}]
  %s10 = inlined_call_operand.vmem [shape: f32[1,512], index: 10, kind: input, shape index: {}]
  %s11 = inlined_call_operand.hbm [shape: f32[256,512], index: 11, kind: input, shape index: {}]
  %s12 = inlined_call_operand.hbm [shape: f32[128,256], index: 12, kind: input, shape index: {}]
  %s13 = inlined_call_operand.vmem [shape: f32[1,256], index: 13, kind: input, shape index: {}]
  %s14 = inlined_call_operand.vmem [shape: f32[1,128], index: 14, kind: input, shape index: {}]
  %s15 = inlined_call_operand.vmem [shape: f32[1,128], index: 15, kind: input, shape index: {}]
  %s16 = inlined_call_operand.hbm [shape: f32[128,256], index: 16, kind: input, shape index: {}]
  %s17 = inlined_call_operand.vmem [shape: f32[1,256], index: 17, kind: input, shape index: {}]
  %s18 = inlined_call_operand.hbm [shape: f32[256,256], index: 18, kind: input, shape index: {}]
  %s19 = inlined_call_operand.vmem [shape: f32[1,256], index: 19, kind: input, shape index: {}]
  %s20 = inlined_call_operand.hbm [shape: f32[128,128], index: 20, kind: input, shape index: {}]
  %s21 = inlined_call_operand.vmem [shape: f32[1,128], index: 21, kind: input, shape index: {}]
  %s22 = inlined_call_operand.hbm [shape: f32[128,128], index: 22, kind: input, shape index: {}]
  %s23 = inlined_call_operand.vmem [shape: f32[1,128], index: 23, kind: input, shape index: {}]
  %s24 = inlined_call_operand.hbm [shape: f32[2,128], index: 24, kind: output, shape index: {}]
  %s25 = sld [smem:[#allocation0]]
  $region166: #{tpu_custom_call.1} parent=0
    _
  %s27 = ssub.s32 1, %s25
  %s28 = scalar_select 0, %s27, %s25
  $region1: #{tpu_custom_call.1} parent=0
    #allocation2 [shape = 'u8[8192]{0}', space=vmem, size = 0x2000, scoped, tag = 'input window, operand 0, single buffered']
    #allocation3 [shape = 's32[1]{0}', space=sflag, size = 0x4, scoped, tag = 'scoped memory for tpu_custom_call.1']
    #allocation4 [shape = 's32[1]{0}', space=sflag, size = 0x4, scoped, tag = 'scoped memory for tpu_custom_call.1']
    #allocation5 [shape = 'u8[8192]{0}', space=vmem, size = 0x2000, scoped, tag = 'input window, operand 1, single buffered']
    #allocation6 [shape = 's32[1]{0}', space=sflag, size = 0x4, scoped, tag = 'scoped memory for tpu_custom_call.1']
    #allocation7 [shape = 'u8[8192]{0}', space=vmem, size = 0x2000, scoped, tag = 'input window, operand 2, single buffered']
    #allocation8 [shape = 'u8[12288]{0}', space=vmem, size = 0x3000, scoped, tag = 'input window, operand 3, single buffered']
    #allocation9 [shape = 's32[1]{0}', space=sflag, size = 0x4, scoped, tag = 'scoped memory for tpu_custom_call.1']
    #allocation10 [shape = 'u8[512]{0}', space=vmem, size = 0x400, scoped, tag = 'input window, operand 4, single buffered']
    #allocation11 [shape = 'u8[512]{0}', space=vmem, size = 0x400, scoped, tag = 'input window, operand 6, single buffered']
    #allocation12 [shape = 's32[1]{0}', space=sflag, size = 0x4, scoped, tag = 'scoped memory for tpu_custom_call.1']
    #allocation13 [shape = 'u8[32768]{0}', space=vmem, size = 0x8000, scoped, tag = 'input window, operand 7, single buffered']
    #allocation14 [shape = 'u8[32768]{0}', space=vmem, size = 0x8000, scoped, tag = 'input window, operand 8, single buffered']
    #allocation15 [shape = 's32[1]{0}', space=sflag, size = 0x4, scoped, tag = 'scoped memory for tpu_custom_call.1']
    #allocation16 [shape = 'u8[49152]{0}', space=vmem, size = 0xc000, scoped, tag = 'input window, operand 9, single buffered']
    #allocation17 [shape = 'u8[524288]{0}', space=vmem, size = 0x80000, scoped, tag = 'input window, operand 11, single buffered']
    #allocation18 [shape = 's32[1]{0}', space=sflag, size = 0x4, scoped, tag = 'scoped memory for tpu_custom_call.1']
    #allocation19 [shape = 'u8[131072]{0}', space=vmem, size = 0x20000, scoped, tag = 'input window, operand 12, single buffered']
    #allocation20 [shape = 'u8[131072]{0}', space=vmem, size = 0x20000, scoped, tag = 'input window, operand 16, single buffered']
    #allocation21 [shape = 's32[1]{0}', space=sflag, size = 0x4, scoped, tag = 'scoped memory for tpu_custom_call.1']
    #allocation22 [shape = 'u8[262144]{0}', space=vmem, size = 0x40000, scoped, tag = 'input window, operand 18, single buffered']
    #allocation23 [shape = 'u8[65536]{0}', space=vmem, size = 0x10000, scoped, tag = 'input window, operand 20, single buffered']
    #allocation24 [shape = 's32[1]{0}', space=sflag, size = 0x4, scoped, tag = 'scoped memory for tpu_custom_call.1']
    #allocation25 [shape = 'u8[65536]{0}', space=vmem, size = 0x10000, scoped, tag = 'input window, operand 22, single buffered']
    #allocation26 [shape = 'u8[1024]{0}', space=vmem, size = 0x400, scoped, tag = 'output window, operand 0, single buffered']
    %29 = vsyncpa [#allocation3], 0
    %30 = vsyncpa [#allocation6], 0
    %31 = vsyncpa [#allocation9], 0
    %32 = vsyncpa [#allocation12], 0
    %33 = vsyncpa [#allocation15], 0
    %34 = vsyncpa [#allocation18], 0
    %35 = vsyncpa [#allocation21], 0
    %36 = vsyncpa [#allocation24], 0
    %37 = vsyncpa [#allocation4], 0
    // Predicated region
    $region2: #{tpu_custom_call.1} parent=1 // pred_check
      _
    $region3: #{tpu_custom_call.1} parent=1 // pred_check_branch
      %39 = sbr.rel (0) target = $region5
    $region4: #{tpu_custom_call.1} parent=1 // pred_region
      %s41 = ssub.s32 256, 256
      %42 = vsyncadd [#allocation3], %s41
      %s43 = sshll.u32 [#allocation2], 4
      %s44 = int_to_ptr.vmem [resolvable:$true] %s43
      %49 = dma.hbm_to_vmem [thread:$0]  %s0, 256, %s44, [#allocation3], 128, 128, 8
    $region5: #{tpu_custom_call.1} parent=1 // pred_fallthru
      _
    // Predicated region
    $region6: #{tpu_custom_call.1} parent=1 // pred_check
      _
    $region7: #{tpu_custom_call.1} parent=1 // pred_check_branch
      %51 = sbr.rel (0) target = $region9
    $region8: #{tpu_custom_call.1} parent=1 // pred_region
      %s53 = ssub.s32 256, 256
      %54 = vsyncadd [#allocation6], %s53
      %s55 = sshll.u32 [#allocation5], 4
      %s56 = int_to_ptr.vmem [resolvable:$true] %s55
      %61 = dma.hbm_to_vmem [thread:$0]  %s1, 256, %s56, [#allocation6], 128, 128, 8
    $region9: #{tpu_custom_call.1} parent=1 // pred_fallthru
      _
    // Predicated region
    $region10: #{tpu_custom_call.1} parent=1 // pred_check
      _
    $region11: #{tpu_custom_call.1} parent=1 // pred_check_branch
      %63 = sbr.rel (0) target = $region13
    $region12: #{tpu_custom_call.1} parent=1 // pred_region
      %s65 = ssub.s32 256, 256
      %66 = vsyncadd [#allocation6], %s65
      %s67 = sshll.u32 [#allocation7], 4
      %s68 = int_to_ptr.vmem [resolvable:$true] %s67
      %73 = dma.hbm_to_vmem [thread:$0]  %s2, 256, %s68, [#allocation6], 128, 128, 8
    $region13: #{tpu_custom_call.1} parent=1 // pred_fallthru
      _
    // Predicated region
    $region14: #{tpu_custom_call.1} parent=1 // pred_check
      _
    $region15: #{tpu_custom_call.1} parent=1 // pred_check_branch
      %75 = sbr.rel (0) target = $region17
    $region16: #{tpu_custom_call.1} parent=1 // pred_region
      %s77 = ssub.s32 384, 384
      %78 = vsyncadd [#allocation9], %s77
      %s79 = sshll.u32 [#allocation8], 4
      %s80 = int_to_ptr.vmem [resolvable:$true] %s79
      %85 = dma.hbm_to_vmem [thread:$0]  %s3, 384, %s80, [#allocation9], 128, 128, 8
    $region17: #{tpu_custom_call.1} parent=1 // pred_fallthru
      _
    // Predicated region
    $region18: #{tpu_custom_call.1} parent=1 // pred_check
      _
    $region19: #{tpu_custom_call.1} parent=1 // pred_check_branch
      %87 = sbr.rel (0) target = $region21
    $region20: #{tpu_custom_call.1} parent=1 // pred_region
      %s89 = ssub.s32 16, 16
      %90 = vsyncadd [#allocation9], %s89
      %s92 = sshll.u32 [#allocation10], 4
      %s93 = int_to_ptr.vmem [resolvable:$true] %s92
      %95 = dma.hbm_to_vmem [thread:$0]  %s4, 16, %s93, [#allocation9]
    $region21: #{tpu_custom_call.1} parent=1 // pred_fallthru
      _
    // Predicated region
    $region22: #{tpu_custom_call.1} parent=1 // pred_check
      _
    $region23: #{tpu_custom_call.1} parent=1 // pred_check_branch
      %97 = sbr.rel (0) target = $region25
    $region24: #{tpu_custom_call.1} parent=1 // pred_region
      _
    $region25: #{tpu_custom_call.1} parent=1 // pred_fallthru
      _
    // Predicated region
    $region26: #{tpu_custom_call.1} parent=1 // pred_check
      _
    $region27: #{tpu_custom_call.1} parent=1 // pred_check_branch
      %99 = sbr.rel (0) target = $region29
    $region28: #{tpu_custom_call.1} parent=1 // pred_region
      %s101 = ssub.s32 16, 16
      %102 = vsyncadd [#allocation12], %s101
      %s104 = sshll.u32 [#allocation11], 4
      %s105 = int_to_ptr.vmem [resolvable:$true] %s104
      %107 = dma.hbm_to_vmem [thread:$0]  %s6, 16, %s105, [#allocation12]
    $region29: #{tpu_custom_call.1} parent=1 // pred_fallthru
      _
    // Predicated region
    $region30: #{tpu_custom_call.1} parent=1 // pred_check
      _
    $region31: #{tpu_custom_call.1} parent=1 // pred_check_branch
      %109 = sbr.rel (0) target = $region33
    $region32: #{tpu_custom_call.1} parent=1 // pred_region
      %s111 = ssub.s32 1024, 1024
      %112 = vsyncadd [#allocation12], %s111
      %s113 = sshll.u32 [#allocation13], 4
      %s114 = int_to_ptr.vmem [resolvable:$true] %s113
      %119 = dma.hbm_to_vmem [thread:$0]  %s7, 1024, %s114, [#allocation12], 512, 512, 32
    $region33: #{tpu_custom_call.1} parent=1 // pred_fallthru
      _
    // Predicated region
    $region34: #{tpu_custom_call.1} parent=1 // pred_check
      _
    $region35: #{tpu_custom_call.1} parent=1 // pred_check_branch
      %121 = sbr.rel (0) target = $region37
    $region36: #{tpu_custom_call.1} parent=1 // pred_region
      %s123 = ssub.s32 1024, 1024
      %124 = vsyncadd [#allocation15], %s123
      %s125 = sshll.u32 [#allocation14], 4
      %s126 = int_to_ptr.vmem [resolvable:$true] %s125
      %131 = dma.hbm_to_vmem [thread:$0]  %s8, 1024, %s126, [#allocation15], 512, 512, 32
    $region37: #{tpu_custom_call.1} parent=1 // pred_fallthru
      _
    // Predicated region
    $region38: #{tpu_custom_call.1} parent=1 // pred_check
      _
    $region39: #{tpu_custom_call.1} parent=1 // pred_check_branch
      %133 = sbr.rel (0) target = $region41
    $region40: #{tpu_custom_call.1} parent=1 // pred_region
      %s135 = ssub.s32 1536, 1536
      %136 = vsyncadd [#allocation15], %s135
      %s137 = sshll.u32 [#allocation16], 4
      %s138 = int_to_ptr.vmem [resolvable:$true] %s137
      %143 = dma.hbm_to_vmem [thread:$0]  %s9, 1536, %s138, [#allocation15], 512, 512, 32
    $region41: #{tpu_custom_call.1} parent=1 // pred_fallthru
      _
    // Predicated region
    $region42: #{tpu_custom_call.1} parent=1 // pred_check
      _
    $region43: #{tpu_custom_call.1} parent=1 // pred_check_branch
      %145 = sbr.rel (0) target = $region45
    $region44: #{tpu_custom_call.1} parent=1 // pred_region
      _
    $region45: #{tpu_custom_call.1} parent=1 // pred_fallthru
      _
    // Predicated region
    $region46: #{tpu_custom_call.1} parent=1 // pred_check
      _
    $region47: #{tpu_custom_call.1} parent=1 // pred_check_branch
      %147 = sbr.rel (0) target = $region49
    $region48: #{tpu_custom_call.1} parent=1 // pred_region
      %s149 = ssub.s32 16384, 16384
      %150 = vsyncadd [#allocation18], %s149
      %s151 = sshll.u32 [#allocation17], 4
      %s152 = int_to_ptr.vmem [resolvable:$true] %s151
      %157 = dma.hbm_to_vmem [thread:$0]  %s11, 16384, %s152, [#allocation18], 512, 512, 32
    $region49: #{tpu_custom_call.1} parent=1 // pred_fallthru
      _
    // Predicated region
    $region50: #{tpu_custom_call.1} parent=1 // pred_check
      _
    $region51: #{tpu_custom_call.1} parent=1 // pred_check_branch
      %159 = sbr.rel (0) target = $region53
    $region52: #{tpu_custom_call.1} parent=1 // pred_region
      %s161 = ssub.s32 4096, 4096
      %162 = vsyncadd [#allocation18], %s161
      %s163 = sshll.u32 [#allocation19], 4
      %s164 = int_to_ptr.vmem [resolvable:$true] %s163
      %169 = dma.hbm_to_vmem [thread:$0]  %s12, 4096, %s164, [#allocation18], 256, 256, 16
    $region53: #{tpu_custom_call.1} parent=1 // pred_fallthru
      _
    // Predicated region
    $region54: #{tpu_custom_call.1} parent=1 // pred_check
      _
    $region55: #{tpu_custom_call.1} parent=1 // pred_check_branch
      %171 = sbr.rel (0) target = $region57
    $region56: #{tpu_custom_call.1} parent=1 // pred_region
      _
    $region57: #{tpu_custom_call.1} parent=1 // pred_fallthru
      _
    // Predicated region
    $region58: #{tpu_custom_call.1} parent=1 // pred_check
      _
    $region59: #{tpu_custom_call.1} parent=1 // pred_check_branch
      %173 = sbr.rel (0) target = $region61
    $region60: #{tpu_custom_call.1} parent=1 // pred_region
      _
    $region61: #{tpu_custom_call.1} parent=1 // pred_fallthru
      _
    // Predicated region
    $region62: #{tpu_custom_call.1} parent=1 // pred_check
      _
    $region63: #{tpu_custom_call.1} parent=1 // pred_check_branch
      %175 = sbr.rel (0) target = $region65
    $region64: #{tpu_custom_call.1} parent=1 // pred_region
      _
    $region65: #{tpu_custom_call.1} parent=1 // pred_fallthru
      _
    // Predicated region
    $region66: #{tpu_custom_call.1} parent=1 // pred_check
      _
    $region67: #{tpu_custom_call.1} parent=1 // pred_check_branch
      %177 = sbr.rel (0) target = $region69
    $region68: #{tpu_custom_call.1} parent=1 // pred_region
      %s179 = ssub.s32 4096, 4096
      %180 = vsyncadd [#allocation21], %s179
      %s181 = sshll.u32 [#allocation20], 4
      %s182 = int_to_ptr.vmem [resolvable:$true] %s181
      %187 = dma.hbm_to_vmem [thread:$0]  %s16, 4096, %s182, [#allocation21], 256, 256, 16
    $region69: #{tpu_custom_call.1} parent=1 // pred_fallthru
      _
    // Predicated region
    $region70: #{tpu_custom_call.1} parent=1 // pred_check
      _
    $region71: #{tpu_custom_call.1} parent=1 // pred_check_branch
      %189 = sbr.rel (0) target = $region73
    $region72: #{tpu_custom_call.1} parent=1 // pred_region
      _
    $region73: #{tpu_custom_call.1} parent=1 // pred_fallthru
      _
    // Predicated region
    $region74: #{tpu_custom_call.1} parent=1 // pred_check
      _
    $region75: #{tpu_custom_call.1} parent=1 // pred_check_branch
      %191 = sbr.rel (0) target = $region77
    $region76: #{tpu_custom_call.1} parent=1 // pred_region
      %s193 = ssub.s32 8192, 8192
      %194 = vsyncadd [#allocation21], %s193
      %s195 = sshll.u32 [#allocation22], 4
      %s196 = int_to_ptr.vmem [resolvable:$true] %s195
      %201 = dma.hbm_to_vmem [thread:$0]  %s18, 8192, %s196, [#allocation21], 256, 256, 16
    $region77: #{tpu_custom_call.1} parent=1 // pred_fallthru
      _
    // Predicated region
    $region78: #{tpu_custom_call.1} parent=1 // pred_check
      _
    $region79: #{tpu_custom_call.1} parent=1 // pred_check_branch
      %203 = sbr.rel (0) target = $region81
    $region80: #{tpu_custom_call.1} parent=1 // pred_region
      _
    $region81: #{tpu_custom_call.1} parent=1 // pred_fallthru
      _
    // Predicated region
    $region82: #{tpu_custom_call.1} parent=1 // pred_check
      _
    $region83: #{tpu_custom_call.1} parent=1 // pred_check_branch
      %205 = sbr.rel (0) target = $region85
    $region84: #{tpu_custom_call.1} parent=1 // pred_region
      %s207 = ssub.s32 2048, 2048
      %208 = vsyncadd [#allocation24], %s207
      %s209 = sshll.u32 [#allocation23], 4
      %s210 = int_to_ptr.vmem [resolvable:$true] %s209
      %215 = dma.hbm_to_vmem [thread:$0]  %s20, 2048, %s210, [#allocation24], 128, 128, 8
    $region85: #{tpu_custom_call.1} parent=1 // pred_fallthru
      _
    // Predicated region
    $region86: #{tpu_custom_call.1} parent=1 // pred_check
      _
    $region87: #{tpu_custom_call.1} parent=1 // pred_check_branch
      %217 = sbr.rel (0) target = $region89
    $region88: #{tpu_custom_call.1} parent=1 // pred_region
      _
    $region89: #{tpu_custom_call.1} parent=1 // pred_fallthru
      _
    // Predicated region
    $region90: #{tpu_custom_call.1} parent=1 // pred_check
      _
    $region91: #{tpu_custom_call.1} parent=1 // pred_check_branch
      %219 = sbr.rel (0) target = $region93
    $region92: #{tpu_custom_call.1} parent=1 // pred_region
      %s221 = ssub.s32 2048, 2048
      %222 = vsyncadd [#allocation24], %s221
      %s223 = sshll.u32 [#allocation25], 4
      %s224 = int_to_ptr.vmem [resolvable:$true] %s223
      %229 = dma.hbm_to_vmem [thread:$0]  %s22, 2048, %s224, [#allocation24], 128, 128, 8
    $region93: #{tpu_custom_call.1} parent=1 // pred_fallthru
      _
    // Predicated region
    $region94: #{tpu_custom_call.1} parent=1 // pred_check
      _
    $region95: #{tpu_custom_call.1} parent=1 // pred_check_branch
      %231 = sbr.rel (0) target = $region97
    $region96: #{tpu_custom_call.1} parent=1 // pred_region
      _
    $region97: #{tpu_custom_call.1} parent=1 // pred_fallthru
      _
    // Predicated region
    $region98: #{tpu_custom_call.1} parent=1 // pred_check
      _
    $region99: #{tpu_custom_call.1} parent=1 // pred_check_branch
      %233 = sbr.rel (0) target = $region101
    $region100: #{tpu_custom_call.1} parent=1 // pred_region
      %234 = dma.done [#allocation3], 256
    $region101: #{tpu_custom_call.1} parent=1 // pred_fallthru
      _
    // Predicated region
    $region102: #{tpu_custom_call.1} parent=1 // pred_check
      _
    $region103: #{tpu_custom_call.1} parent=1 // pred_check_branch
      %236 = sbr.rel (0) target = $region105
    $region104: #{tpu_custom_call.1} parent=1 // pred_region
      %237 = dma.done [#allocation6], 256
    $region105: #{tpu_custom_call.1} parent=1 // pred_fallthru
      _
    // Predicated region
    $region106: #{tpu_custom_call.1} parent=1 // pred_check
      _
    $region107: #{tpu_custom_call.1} parent=1 // pred_check_branch
      %239 = sbr.rel (0) target = $region109
    $region108: #{tpu_custom_call.1} parent=1 // pred_region
      %240 = dma.done [#allocation6], 256
    $region109: #{tpu_custom_call.1} parent=1 // pred_fallthru
      _
    // Predicated region
    $region110: #{tpu_custom_call.1} parent=1 // pred_check
      _
    $region111: #{tpu_custom_call.1} parent=1 // pred_check_branch
      %242 = sbr.rel (0) target = $region113
    $region112: #{tpu_custom_call.1} parent=1 // pred_region
      %243 = dma.done [#allocation9], 384
    $region113: #{tpu_custom_call.1} parent=1 // pred_fallthru
      _
    // Predicated region
    $region114: #{tpu_custom_call.1} parent=1 // pred_check
      _
    $region115: #{tpu_custom_call.1} parent=1 // pred_check_branch
      %245 = sbr.rel (0) target = $region117
    $region116: #{tpu_custom_call.1} parent=1 // pred_region
      %246 = dma.done [#allocation9], 16
    $region117: #{tpu_custom_call.1} parent=1 // pred_fallthru
      _
    // Predicated region
    $region118: #{tpu_custom_call.1} parent=1 // pred_check
      _
    $region119: #{tpu_custom_call.1} parent=1 // pred_check_branch
      %248 = sbr.rel (0) target = $region121
    $region120: #{tpu_custom_call.1} parent=1 // pred_region
      %249 = dma.done [#allocation12], 16
    $region121: #{tpu_custom_call.1} parent=1 // pred_fallthru
      _
    // Predicated region
    $region122: #{tpu_custom_call.1} parent=1 // pred_check
      _
    $region123: #{tpu_custom_call.1} parent=1 // pred_check_branch
      %251 = sbr.rel (0) target = $region125
    $region124: #{tpu_custom_call.1} parent=1 // pred_region
      %252 = dma.done [#allocation12], 1024
    $region125: #{tpu_custom_call.1} parent=1 // pred_fallthru
      _
    // Predicated region
    $region126: #{tpu_custom_call.1} parent=1 // pred_check
      _
    $region127: #{tpu_custom_call.1} parent=1 // pred_check_branch
      %254 = sbr.rel (0) target = $region129
    $region128: #{tpu_custom_call.1} parent=1 // pred_region
      %255 = dma.done [#allocation15], 1024
    $region129: #{tpu_custom_call.1} parent=1 // pred_fallthru
      _
    // Predicated region
    $region130: #{tpu_custom_call.1} parent=1 // pred_check
      _
    $region131: #{tpu_custom_call.1} parent=1 // pred_check_branch
      %257 = sbr.rel (0) target = $region133
    $region132: #{tpu_custom_call.1} parent=1 // pred_region
      %258 = dma.done [#allocation15], 1536
    $region133: #{tpu_custom_call.1} parent=1 // pred_fallthru
      _
    // Predicated region
    $region134: #{tpu_custom_call.1} parent=1 // pred_check
      _
    $region135: #{tpu_custom_call.1} parent=1 // pred_check_branch
      %260 = sbr.rel (0) target = $region137
    $region136: #{tpu_custom_call.1} parent=1 // pred_region
      %261 = dma.done [#allocation18], 16384
    $region137: #{tpu_custom_call.1} parent=1 // pred_fallthru
      _
    // Predicated region
    $region138: #{tpu_custom_call.1} parent=1 // pred_check
      _
    $region139: #{tpu_custom_call.1} parent=1 // pred_check_branch
      %263 = sbr.rel (0) target = $region141
    $region140: #{tpu_custom_call.1} parent=1 // pred_region
      %264 = dma.done [#allocation18], 4096
    $region141: #{tpu_custom_call.1} parent=1 // pred_fallthru
      _
    // Predicated region
    $region142: #{tpu_custom_call.1} parent=1 // pred_check
      _
    $region143: #{tpu_custom_call.1} parent=1 // pred_check_branch
      %266 = sbr.rel (0) target = $region145
    $region144: #{tpu_custom_call.1} parent=1 // pred_region
      %267 = dma.done [#allocation21], 4096
    $region145: #{tpu_custom_call.1} parent=1 // pred_fallthru
      _
    // Predicated region
    $region146: #{tpu_custom_call.1} parent=1 // pred_check
      _
    $region147: #{tpu_custom_call.1} parent=1 // pred_check_branch
      %269 = sbr.rel (0) target = $region149
    $region148: #{tpu_custom_call.1} parent=1 // pred_region
      %270 = dma.done [#allocation21], 8192
    $region149: #{tpu_custom_call.1} parent=1 // pred_fallthru
      _
    // Predicated region
    $region150: #{tpu_custom_call.1} parent=1 // pred_check
      _
    $region151: #{tpu_custom_call.1} parent=1 // pred_check_branch
      %272 = sbr.rel (0) target = $region153
    $region152: #{tpu_custom_call.1} parent=1 // pred_region
      %273 = dma.done [#allocation24], 2048
    $region153: #{tpu_custom_call.1} parent=1 // pred_fallthru
      _
    // Predicated region
    $region154: #{tpu_custom_call.1} parent=1 // pred_check
      _
    $region155: #{tpu_custom_call.1} parent=1 // pred_check_branch
      %275 = sbr.rel (0) target = $region157
    $region156: #{tpu_custom_call.1} parent=1 // pred_region
      %276 = dma.done [#allocation24], 2048
    $region157: #{tpu_custom_call.1} parent=1 // pred_fallthru
      _
    %v277 = vld [vmem:[#allocation2] sm:$0xff]
    %v278 = vld [vmem:[#allocation2 + $0x8] sm:$0xff]
    %v279 = vld [vmem:[#allocation5] sm:$0xff]
    %v280 = vld [vmem:[#allocation5 + $0x8] sm:$0xff]
    %v281 = vld [vmem:[#allocation7] sm:$0xff]
    %v282 = vld [vmem:[#allocation7 + $0x8] sm:$0xff]
    %v283 = vld [vmem:[#allocation8] sm:$0xff]
    %v284 = vld [vmem:[#allocation8 + $0x8] sm:$0xff]
    %v285 = vld [vmem:[#allocation8 + $0x10] sm:$0xf]
    %v286 = vld [vmem:[#allocation10] sm:$0x1]
    %v288 = vlaneseq
    %v289 = vshrl.u32 %v288, 7
    %v290 = vsub.s32 0, %v289
    %v291 = vrot.slane %v286, %v290
    %vm293 = vcmask 162816
    %v295 = vsel %vm293, %v281, 0
    %v298 = vsel %vm293, %v282, 0
    %vm300 = vcmask 1043456
    %v302 = vsel %vm300, %v285, 0
    %304 = vmatprep.subr.mxu0 0.0
    %305 = vmatpush1.msra.mxu0 %v283
    %306 = vmatprep.subr.mxu0 0.0
    %307 = vmatpush1.msra.mxu0 %v284
    %308 = vmatprep.subr.mxu0 0.0
    %309 = vmatpush1.msra.mxu0 %v302
    %310 = vmatprep.subr.mxu0 0.0
    %311 = vmatpush1.msra.mxu0 0.0
    %312 = vmatprep.subr.mxu0 0.0
    %313 = vmatpush1.msra.mxu0 0.0
    %314 = vmatprep.subr.mxu0 0.0
    %315 = vmatpush1.msra.mxu0 0.0
    %316 = vmatprep.subr.mxu0 0.0
    %317 = vmatpush1.msra.mxu0 0.0
    %318 = vmatprep.subr.mxu0 0.0
    %319 = vmatpush1.msra.mxu0 0.0
    %320 = vmatprep.subr.mxu0 0.0
    %321 = vmatpush1.msra.mxu0 0.0
    %322 = vmatprep.subr.mxu0 0.0
    %323 = vmatpush1.msra.mxu0 0.0
    %324 = vmatprep.subr.mxu0 0.0
    %325 = vmatpush1.msra.mxu0 0.0
    %326 = vmatprep.subr.mxu0 0.0
    %327 = vmatpush1.msra.mxu0 0.0
    %328 = vmatprep.subr.mxu0 0.0
    %329 = vmatpush1.msra.mxu0 0.0
    %330 = vmatprep.subr.mxu0 0.0
    %331 = vmatpush1.msra.mxu0 0.0
    %332 = vmatprep.subr.mxu0 0.0
    %333 = vmatpush1.msra.mxu0 0.0
    %334 = vmatprep.subr.mxu0 0.0
    %335 = vmatpush1.msra.mxu0 0.0
    %336 = vmatprep.subr.mxu0 0.0
    %337 = vmatpush1.msra.mxu0 0.0
    %338 = vmatprep.subr.mxu0 0.0
    %339 = vmatpush1.msra.mxu0 0.0
    %340 = vmatprep.subr.mxu0 0.0
    %341 = vmatpush1.msra.mxu0 0.0
    %342 = vmatprep.subr.mxu0 0.0
    %343 = vmatpush1.msra.mxu0 0.0
    %344 = vmatprep.subr.mxu0 0.0
    %345 = vmatpush1.msra.mxu0 0.0
    %346 = vmatprep.subr.mxu0 0.0
    %347 = vmatpush1.msra.mxu0 0.0
    %348 = vmatprep.subr.mxu0 0.0
    %349 = vmatpush1.msra.mxu0 0.0
    %350 = vmatprep.subr.mxu0 0.0
    %351 = vmatpush1.msra.mxu0 0.0
    %352 = vmatprep.subr.mxu0 0.0
    %353 = vmatpush1.msra.mxu0 0.0
    %354 = vmatprep.subr.mxu0 0.0
    %355 = vmatpush1.msra.mxu0 0.0
    %356 = vmatprep.subr.mxu0 0.0
    %357 = vmatpush1.msra.mxu0 0.0
    %358 = vmatprep.subr.mxu0 0.0
    %359 = vmatpush1.msra.mxu0 0.0
    %360 = vmatprep.subr.mxu0 0.0
    %361 = vmatpush1.msra.mxu0 0.0
    %362 = vmatprep.subr.mxu0 0.0
    %363 = vmatpush1.msra.mxu0 0.0
    %364 = vmatprep.subr.mxu0 0.0
    %365 = vmatpush1.msra.mxu0 0.0
    %366 = vmatprep.subr.mxu0 0.0
    %367 = vmatpush1.msra.mxu0 0.0
    %368 = vmatprep.mubr.f32.mxu0 0.0
    %369 = vmatmul.mubr.f32.gmra.mrb[0].mxu0 %v295
    %v370 = vpop.f32.mrb[0].mxu0
    %v371 = vadd.f32 %v291, %v370
    %v372 = vpop.f32.mrb[0].mxu0
    %373 = vmatprep.mubr.f32.mxu0 0.0
    %374 = vmatmul.mubr.f32.gmra.mrb[0].mxu0 %v298
    %v375 = vpop.f32.mrb[0].mxu0
    %v376 = vadd.f32 %v291, %v375
    %v377 = vpop.f32.mrb[0].mxu0
    %378 = vdwg.mxu0
    %v379 = vxor.u32 %v371, 2147483648
    %v380 = vxor.u32 %v376, 2147483648
    %v381 = vmul.f32 %v379, 1.442695
    %v382 = vpow.pop %v381
    %v383 = vmul.f32 %v380, 1.442695
    %v384 = vpow.pop %v383
    %v385 = vadd.f32 %v382, 1.0
    %v386 = vadd.f32 %v384, 1.0
    %v387 = vrcp.pop %v385
    %v388 = vmul.f32 1.0, %v387
    %v389 = vrcp.pop %v386
    %v390 = vmul.f32 1.0, %v389
    %v391 = vmul.f32 %v281, %v388
    %v392 = vmul.f32 %v282, %v390
    %v393 = vld [vmem:[%s5] sm:$0xff]
    %v394 = vld [vmem:[%s5 + $0x8] sm:$0xf]
    %v395 = vld [vmem:[#allocation11] sm:$0x1]
    %v397 = vlaneseq
    %v398 = vshrl.u32 %v397, 7
    %v399 = vsub.s32 0, %v398
    %v400 = vrot.slane %v395, %v399
    %vm402 = vcmask 97280
    %v404 = vsel %vm402, %v279, 0
    %v407 = vsel %vm402, %v280, 0
    %v410 = vsel %vm300, %v394, 0
    %412 = vmatprep.subr.mxu0 0.0
    %413 = vmatpush1.msra.mxu0 %v393
    %414 = vmatprep.subr.mxu0 0.0
    %415 = vmatpush1.msra.mxu0 %v410
    %416 = vmatprep.subr.mxu0 0.0
    %417 = vmatpush1.msra.mxu0 0.0
    %418 = vmatprep.subr.mxu0 0.0
    %419 = vmatpush1.msra.mxu0 0.0
    %420 = vmatprep.subr.mxu0 0.0
    %421 = vmatpush1.msra.mxu0 0.0
    %422 = vmatprep.subr.mxu0 0.0
    %423 = vmatpush1.msra.mxu0 0.0
    %424 = vmatprep.subr.mxu0 0.0
    %425 = vmatpush1.msra.mxu0 0.0
    %426 = vmatprep.subr.mxu0 0.0
    %427 = vmatpush1.msra.mxu0 0.0
    %428 = vmatprep.subr.mxu0 0.0
    %429 = vmatpush1.msra.mxu0 0.0
    %430 = vmatprep.subr.mxu0 0.0
    %431 = vmatpush1.msra.mxu0 0.0
    %432 = vmatprep.subr.mxu0 0.0
    %433 = vmatpush1.msra.mxu0 0.0
    %434 = vmatprep.subr.mxu0 0.0
    %435 = vmatpush1.msra.mxu0 0.0
    %436 = vmatprep.subr.mxu0 0.0
    %437 = vmatpush1.msra.mxu0 0.0
    %438 = vmatprep.subr.mxu0 0.0
    %439 = vmatpush1.msra.mxu0 0.0
    %440 = vmatprep.subr.mxu0 0.0
    %441 = vmatpush1.msra.mxu0 0.0
    %442 = vmatprep.subr.mxu0 0.0
    %443 = vmatpush1.msra.mxu0 0.0
    %444 = vmatprep.subr.mxu0 0.0
    %445 = vmatpush1.msra.mxu0 0.0
    %446 = vmatprep.subr.mxu0 0.0
    %447 = vmatpush1.msra.mxu0 0.0
    %448 = vmatprep.subr.mxu0 0.0
    %449 = vmatpush1.msra.mxu0 0.0
    %450 = vmatprep.subr.mxu0 0.0
    %451 = vmatpush1.msra.mxu0 0.0
    %452 = vmatprep.subr.mxu0 0.0
    %453 = vmatpush1.msra.mxu0 0.0
    %454 = vmatprep.subr.mxu0 0.0
    %455 = vmatpush1.msra.mxu0 0.0
    %456 = vmatprep.subr.mxu0 0.0
    %457 = vmatpush1.msra.mxu0 0.0
    %458 = vmatprep.subr.mxu0 0.0
    %459 = vmatpush1.msra.mxu0 0.0
    %460 = vmatprep.subr.mxu0 0.0
    %461 = vmatpush1.msra.mxu0 0.0
    %462 = vmatprep.subr.mxu0 0.0
    %463 = vmatpush1.msra.mxu0 0.0
    %464 = vmatprep.subr.mxu0 0.0
    %465 = vmatpush1.msra.mxu0 0.0
    %466 = vmatprep.subr.mxu0 0.0
    %467 = vmatpush1.msra.mxu0 0.0
    %468 = vmatprep.subr.mxu0 0.0
    %469 = vmatpush1.msra.mxu0 0.0
    %470 = vmatprep.subr.mxu0 0.0
    %471 = vmatpush1.msra.mxu0 0.0
    %472 = vmatprep.subr.mxu0 0.0
    %473 = vmatpush1.msra.mxu0 0.0
    %474 = vmatprep.subr.mxu0 0.0
    %475 = vmatpush1.msra.mxu0 0.0
    %476 = vmatprep.mubr.f32.mxu0 0.0
    %477 = vmatmul.mubr.f32.gmra.mrb[0].mxu0 %v404
    %v478 = vpop.f32.mrb[0].mxu0
    %v479 = vadd.f32 %v400, %v478
    %v480 = vpop.f32.mrb[0].mxu0
    %481 = vmatprep.mubr.f32.mxu0 0.0
    %482 = vmatmul.mubr.f32.gmra.mrb[0].mxu0 %v407
    %v483 = vpop.f32.mrb[0].mxu0
    %v484 = vadd.f32 %v400, %v483
    %v485 = vpop.f32.mrb[0].mxu0
    %486 = vdwg.mxu0
    %v487 = vxor.u32 %v479, 2147483648
    %v488 = vxor.u32 %v484, 2147483648
    %v489 = vmul.f32 %v487, 1.442695
    %v490 = vpow.pop %v489
    %v491 = vmul.f32 %v488, 1.442695
    %v492 = vpow.pop %v491
    %v493 = vadd.f32 %v490, 1.0
    %v494 = vadd.f32 %v492, 1.0
    %v495 = vrcp.pop %v493
    %v496 = vmul.f32 1.0, %v495
    %v497 = vrcp.pop %v494
    %v498 = vmul.f32 1.0, %v497
    %v499 = vmul.f32 %v279, %v496
    %v500 = vmul.f32 %v280, %v498
    %v501 = vld [vmem:[#allocation13] sm:$0xff]
    %v502 = vld [vmem:[#allocation13 + $0x8] sm:$0xff]
    %v503 = vld [vmem:[#allocation13 + $0x10] sm:$0xff]
    %v504 = vld [vmem:[#allocation13 + $0x18] sm:$0xff]
    %v505 = vld [vmem:[#allocation13 + $0x20] sm:$0xff]
    %v506 = vld [vmem:[#allocation13 + $0x28] sm:$0xff]
    %v507 = vld [vmem:[#allocation13 + $0x30] sm:$0xff]
    %v508 = vld [vmem:[#allocation13 + $0x38] sm:$0xff]
    %v509 = vld [vmem:[#allocation14] sm:$0xff]
    %v510 = vld [vmem:[#allocation14 + $0x8] sm:$0xff]
    %v511 = vld [vmem:[#allocation14 + $0x10] sm:$0xff]
    %v512 = vld [vmem:[#allocation14 + $0x18] sm:$0xff]
    %v513 = vld [vmem:[#allocation14 + $0x20] sm:$0xf]
    %v514 = vld [vmem:[#allocation14 + $0x28] sm:$0xf]
    %v515 = vld [vmem:[#allocation14 + $0x30] sm:$0xf]
    %v516 = vld [vmem:[#allocation14 + $0x38] sm:$0xf]
    %v518 = vsel %vm402, %v499, 0
    %v521 = vsel %vm402, %v500, 0
    %v524 = vsel %vm300, %v513, 0
    %v527 = vsel %vm300, %v514, 0
    %v530 = vsel %vm300, %v515, 0
    %v533 = vsel %vm300, %v516, 0
    %535 = vmatprep.subr.mxu0 %v510
    %536 = vmatpush1.msra.mxu0 %v509
    %537 = vmatprep.subr.mxu0 %v527
    %538 = vmatpush1.msra.mxu0 %v524
    %539 = vmatprep.subr.mxu0 0.0
    %540 = vmatpush1.msra.mxu0 0.0
    %541 = vmatprep.subr.mxu0 0.0
    %542 = vmatpush1.msra.mxu0 0.0
    %543 = vmatprep.subr.mxu0 0.0
    %544 = vmatpush1.msra.mxu0 0.0
    %545 = vmatprep.subr.mxu0 0.0
    %546 = vmatpush1.msra.mxu0 0.0
    %547 = vmatprep.subr.mxu0 0.0
    %548 = vmatpush1.msra.mxu0 0.0
    %549 = vmatprep.subr.mxu0 0.0
    %550 = vmatpush1.msra.mxu0 0.0
    %551 = vmatprep.subr.mxu0 0.0
    %552 = vmatpush1.msra.mxu0 0.0
    %553 = vmatprep.subr.mxu0 0.0
    %554 = vmatpush1.msra.mxu0 0.0
    %555 = vmatprep.subr.mxu0 0.0
    %556 = vmatpush1.msra.mxu0 0.0
    %557 = vmatprep.subr.mxu0 0.0
    %558 = vmatpush1.msra.mxu0 0.0
    %559 = vmatprep.subr.mxu0 0.0
    %560 = vmatpush1.msra.mxu0 0.0
    %561 = vmatprep.subr.mxu0 0.0
    %562 = vmatpush1.msra.mxu0 0.0
    %563 = vmatprep.subr.mxu0 0.0
    %564 = vmatpush1.msra.mxu0 0.0
    %565 = vmatprep.subr.mxu0 0.0
    %566 = vmatpush1.msra.mxu0 0.0
    %567 = vmatprep.subr.mxu0 0.0
    %568 = vmatpush1.msra.mxu0 0.0
    %569 = vmatprep.subr.mxu0 0.0
    %570 = vmatpush1.msra.mxu0 0.0
    %571 = vmatprep.subr.mxu0 0.0
    %572 = vmatpush1.msra.mxu0 0.0
    %573 = vmatprep.subr.mxu0 0.0
    %574 = vmatpush1.msra.mxu0 0.0
    %575 = vmatprep.subr.mxu0 0.0
    %576 = vmatpush1.msra.mxu0 0.0
    %577 = vmatprep.subr.mxu0 0.0
    %578 = vmatpush1.msra.mxu0 0.0
    %579 = vmatprep.subr.mxu0 0.0
    %580 = vmatpush1.msra.mxu0 0.0
    %581 = vmatprep.subr.mxu0 0.0
    %582 = vmatpush1.msra.mxu0 0.0
    %583 = vmatprep.subr.mxu0 0.0
    %584 = vmatpush1.msra.mxu0 0.0
    %585 = vmatprep.subr.mxu0 0.0
    %586 = vmatpush1.msra.mxu0 0.0
    %587 = vmatprep.subr.mxu0 0.0
    %588 = vmatpush1.msra.mxu0 0.0
    %589 = vmatprep.subr.mxu0 0.0
    %590 = vmatpush1.msra.mxu0 0.0
    %591 = vmatprep.subr.mxu0 0.0
    %592 = vmatpush1.msra.mxu0 0.0
    %593 = vmatprep.subr.mxu0 0.0
    %594 = vmatpush1.msra.mxu0 0.0
    %595 = vmatprep.subr.mxu0 0.0
    %596 = vmatpush1.msra.mxu0 0.0
    %597 = vmatprep.subr.mxu0 0.0
    %598 = vmatpush1.msra.mxu0 0.0
    %599 = vmatprep.mubr.f32.mxu0 0.0
    %600 = vmatmul.mubr.f32.gmra.mrb[0].mxu0 %v518
    %v601 = vpop.f32.mrb[0].mxu0
    %v602 = vadd.f32 0.0, %v601
    %v603 = vpop.f32.mrb[0].mxu0
    %v604 = vadd.f32 0.0, %v603
    %605 = vmatprep.mubr.f32.mxu0 0.0
    %606 = vmatmul.mubr.f32.gmra.mrb[0].mxu0 %v521
    %v607 = vpop.f32.mrb[0].mxu0
    %v608 = vadd.f32 0.0, %v607
    %v609 = vpop.f32.mrb[0].mxu0
    %v610 = vadd.f32 0.0, %v609
    %611 = vdwg.mxu0
    %612 = vmatprep.subr.mxu0 %v512
    %613 = vmatpush1.msra.mxu0 %v511
    %614 = vmatprep.subr.mxu0 %v533
    %615 = vmatpush1.msra.mxu0 %v530
    %616 = vmatprep.subr.mxu0 0.0
    %617 = vmatpush1.msra.mxu0 0.0
    %618 = vmatprep.subr.mxu0 0.0
    %619 = vmatpush1.msra.mxu0 0.0
    %620 = vmatprep.subr.mxu0 0.0
    %621 = vmatpush1.msra.mxu0 0.0
    %622 = vmatprep.subr.mxu0 0.0
    %623 = vmatpush1.msra.mxu0 0.0
    %624 = vmatprep.subr.mxu0 0.0
    %625 = vmatpush1.msra.mxu0 0.0
    %626 = vmatprep.subr.mxu0 0.0
    %627 = vmatpush1.msra.mxu0 0.0
    %628 = vmatprep.subr.mxu0 0.0
    %629 = vmatpush1.msra.mxu0 0.0
    %630 = vmatprep.subr.mxu0 0.0
    %631 = vmatpush1.msra.mxu0 0.0
    %632 = vmatprep.subr.mxu0 0.0
    %633 = vmatpush1.msra.mxu0 0.0
    %634 = vmatprep.subr.mxu0 0.0
    %635 = vmatpush1.msra.mxu0 0.0
    %636 = vmatprep.subr.mxu0 0.0
    %637 = vmatpush1.msra.mxu0 0.0
    %638 = vmatprep.subr.mxu0 0.0
    %639 = vmatpush1.msra.mxu0 0.0
    %640 = vmatprep.subr.mxu0 0.0
    %641 = vmatpush1.msra.mxu0 0.0
    %642 = vmatprep.subr.mxu0 0.0
    %643 = vmatpush1.msra.mxu0 0.0
    %644 = vmatprep.subr.mxu0 0.0
    %645 = vmatpush1.msra.mxu0 0.0
    %646 = vmatprep.subr.mxu0 0.0
    %647 = vmatpush1.msra.mxu0 0.0
    %648 = vmatprep.subr.mxu0 0.0
    %649 = vmatpush1.msra.mxu0 0.0
    %650 = vmatprep.subr.mxu0 0.0
    %651 = vmatpush1.msra.mxu0 0.0
    %652 = vmatprep.subr.mxu0 0.0
    %653 = vmatpush1.msra.mxu0 0.0
    %654 = vmatprep.subr.mxu0 0.0
    %655 = vmatpush1.msra.mxu0 0.0
    %656 = vmatprep.subr.mxu0 0.0
    %657 = vmatpush1.msra.mxu0 0.0
    %658 = vmatprep.subr.mxu0 0.0
    %659 = vmatpush1.msra.mxu0 0.0
    %660 = vmatprep.subr.mxu0 0.0
    %661 = vmatpush1.msra.mxu0 0.0
    %662 = vmatprep.subr.mxu0 0.0
    %663 = vmatpush1.msra.mxu0 0.0
    %664 = vmatprep.subr.mxu0 0.0
    %665 = vmatpush1.msra.mxu0 0.0
    %666 = vmatprep.subr.mxu0 0.0
    %667 = vmatpush1.msra.mxu0 0.0
    %668 = vmatprep.subr.mxu0 0.0
    %669 = vmatpush1.msra.mxu0 0.0
    %670 = vmatprep.subr.mxu0 0.0
    %671 = vmatpush1.msra.mxu0 0.0
    %672 = vmatprep.subr.mxu0 0.0
    %673 = vmatpush1.msra.mxu0 0.0
    %674 = vmatprep.subr.mxu0 0.0
    %675 = vmatpush1.msra.mxu0 0.0
    %676 = vmatprep.mubr.f32.mxu0 0.0
    %677 = vmatmul.mubr.f32.gmra.mrb[0].mxu0 %v518
    %v678 = vpop.f32.mrb[0].mxu0
    %v679 = vadd.f32 0.0, %v678
    %v680 = vpop.f32.mrb[0].mxu0
    %v681 = vadd.f32 0.0, %v680
    %682 = vmatprep.mubr.f32.mxu0 0.0
    %683 = vmatmul.mubr.f32.gmra.mrb[0].mxu0 %v521
    %v684 = vpop.f32.mrb[0].mxu0
    %v685 = vadd.f32 0.0, %v684
    %v686 = vpop.f32.mrb[0].mxu0
    %v687 = vadd.f32 0.0, %v686
    %688 = vdwg.mxu0
    %vm689 = vcmask 130048
    %v691 = vsel %vm689, %v277, 0
    %v694 = vsel %vm689, %v278, 0
    %696 = vmatprep.subr.mxu0 %v502
    %697 = vmatpush1.msra.mxu0 %v501
    %698 = vmatprep.subr.mxu0 %v506
    %699 = vmatpush1.msra.mxu0 %v505
    %700 = vmatprep.subr.mxu0 0.0
    %701 = vmatpush1.msra.mxu0 0.0
    %702 = vmatprep.subr.mxu0 0.0
    %703 = vmatpush1.msra.mxu0 0.0
    %704 = vmatprep.subr.mxu0 0.0
    %705 = vmatpush1.msra.mxu0 0.0
    %706 = vmatprep.subr.mxu0 0.0
    %707 = vmatpush1.msra.mxu0 0.0
    %708 = vmatprep.subr.mxu0 0.0
    %709 = vmatpush1.msra.mxu0 0.0
    %710 = vmatprep.subr.mxu0 0.0
    %711 = vmatpush1.msra.mxu0 0.0
    %712 = vmatprep.subr.mxu0 0.0
    %713 = vmatpush1.msra.mxu0 0.0
    %714 = vmatprep.subr.mxu0 0.0
    %715 = vmatpush1.msra.mxu0 0.0
    %716 = vmatprep.subr.mxu0 0.0
    %717 = vmatpush1.msra.mxu0 0.0
    %718 = vmatprep.subr.mxu0 0.0
    %719 = vmatpush1.msra.mxu0 0.0
    %720 = vmatprep.subr.mxu0 0.0
    %721 = vmatpush1.msra.mxu0 0.0
    %722 = vmatprep.subr.mxu0 0.0
    %723 = vmatpush1.msra.mxu0 0.0
    %724 = vmatprep.subr.mxu0 0.0
    %725 = vmatpush1.msra.mxu0 0.0
    %726 = vmatprep.subr.mxu0 0.0
    %727 = vmatpush1.msra.mxu0 0.0
    %728 = vmatprep.subr.mxu0 0.0
    %729 = vmatpush1.msra.mxu0 0.0
    %730 = vmatprep.subr.mxu0 0.0
    %731 = vmatpush1.msra.mxu0 0.0
    %732 = vmatprep.subr.mxu0 0.0
    %733 = vmatpush1.msra.mxu0 0.0
    %734 = vmatprep.subr.mxu0 0.0
    %735 = vmatpush1.msra.mxu0 0.0
    %736 = vmatprep.subr.mxu0 0.0
    %737 = vmatpush1.msra.mxu0 0.0
    %738 = vmatprep.subr.mxu0 0.0
    %739 = vmatpush1.msra.mxu0 0.0
    %740 = vmatprep.subr.mxu0 0.0
    %741 = vmatpush1.msra.mxu0 0.0
    %742 = vmatprep.subr.mxu0 0.0
    %743 = vmatpush1.msra.mxu0 0.0
    %744 = vmatprep.subr.mxu0 0.0
    %745 = vmatpush1.msra.mxu0 0.0
    %746 = vmatprep.subr.mxu0 0.0
    %747 = vmatpush1.msra.mxu0 0.0
    %748 = vmatprep.subr.mxu0 0.0
    %749 = vmatpush1.msra.mxu0 0.0
    %750 = vmatprep.subr.mxu0 0.0
    %751 = vmatpush1.msra.mxu0 0.0
    %752 = vmatprep.subr.mxu0 0.0
    %753 = vmatpush1.msra.mxu0 0.0
    %754 = vmatprep.subr.mxu0 0.0
    %755 = vmatpush1.msra.mxu0 0.0
    %756 = vmatprep.subr.mxu0 0.0
    %757 = vmatpush1.msra.mxu0 0.0
    %758 = vmatprep.subr.mxu0 0.0
    %759 = vmatpush1.msra.mxu0 0.0
    %760 = vmatprep.mubr.f32.mxu0 0.0
    %761 = vmatmul.mubr.f32.gmra.mrb[0].mxu0 %v691
    %v762 = vpop.f32.mrb[0].mxu0
    %v763 = vadd.f32 %v602, %v762
    %v764 = vpop.f32.mrb[0].mxu0
    %v765 = vadd.f32 %v604, %v764
    %766 = vmatprep.mubr.f32.mxu0 0.0
    %767 = vmatmul.mubr.f32.gmra.mrb[0].mxu0 %v694
    %v768 = vpop.f32.mrb[0].mxu0
    %v769 = vadd.f32 %v608, %v768
    %v770 = vpop.f32.mrb[0].mxu0
    %v771 = vadd.f32 %v610, %v770
    %772 = vdwg.mxu0
    %773 = vmatprep.subr.mxu0 %v504
    %774 = vmatpush1.msra.mxu0 %v503
    %775 = vmatprep.subr.mxu0 %v508
    %776 = vmatpush1.msra.mxu0 %v507
    %777 = vmatprep.subr.mxu0 0.0
    %778 = vmatpush1.msra.mxu0 0.0
    %779 = vmatprep.subr.mxu0 0.0
    %780 = vmatpush1.msra.mxu0 0.0
    %781 = vmatprep.subr.mxu0 0.0
    %782 = vmatpush1.msra.mxu0 0.0
    %783 = vmatprep.subr.mxu0 0.0
    %784 = vmatpush1.msra.mxu0 0.0
    %785 = vmatprep.subr.mxu0 0.0
    %786 = vmatpush1.msra.mxu0 0.0
    %787 = vmatprep.subr.mxu0 0.0
    %788 = vmatpush1.msra.mxu0 0.0
    %789 = vmatprep.subr.mxu0 0.0
    %790 = vmatpush1.msra.mxu0 0.0
    %791 = vmatprep.subr.mxu0 0.0
    %792 = vmatpush1.msra.mxu0 0.0
    %793 = vmatprep.subr.mxu0 0.0
    %794 = vmatpush1.msra.mxu0 0.0
    %795 = vmatprep.subr.mxu0 0.0
    %796 = vmatpush1.msra.mxu0 0.0
    %797 = vmatprep.subr.mxu0 0.0
    %798 = vmatpush1.msra.mxu0 0.0
    %799 = vmatprep.subr.mxu0 0.0
    %800 = vmatpush1.msra.mxu0 0.0
    %801 = vmatprep.subr.mxu0 0.0
    %802 = vmatpush1.msra.mxu0 0.0
    %803 = vmatprep.subr.mxu0 0.0
    %804 = vmatpush1.msra.mxu0 0.0
    %805 = vmatprep.subr.mxu0 0.0
    %806 = vmatpush1.msra.mxu0 0.0
    %807 = vmatprep.subr.mxu0 0.0
    %808 = vmatpush1.msra.mxu0 0.0
    %809 = vmatprep.subr.mxu0 0.0
    %810 = vmatpush1.msra.mxu0 0.0
    %811 = vmatprep.subr.mxu0 0.0
    %812 = vmatpush1.msra.mxu0 0.0
    %813 = vmatprep.subr.mxu0 0.0
    %814 = vmatpush1.msra.mxu0 0.0
    %815 = vmatprep.subr.mxu0 0.0
    %816 = vmatpush1.msra.mxu0 0.0
    %817 = vmatprep.subr.mxu0 0.0
    %818 = vmatpush1.msra.mxu0 0.0
    %819 = vmatprep.subr.mxu0 0.0
    %820 = vmatpush1.msra.mxu0 0.0
    %821 = vmatprep.subr.mxu0 0.0
    %822 = vmatpush1.msra.mxu0 0.0
    %823 = vmatprep.subr.mxu0 0.0
    %824 = vmatpush1.msra.mxu0 0.0
    %825 = vmatprep.subr.mxu0 0.0
    %826 = vmatpush1.msra.mxu0 0.0
    %827 = vmatprep.subr.mxu0 0.0
    %828 = vmatpush1.msra.mxu0 0.0
    %829 = vmatprep.subr.mxu0 0.0
    %830 = vmatpush1.msra.mxu0 0.0
    %831 = vmatprep.subr.mxu0 0.0
    %832 = vmatpush1.msra.mxu0 0.0
    %833 = vmatprep.subr.mxu0 0.0
    %834 = vmatpush1.msra.mxu0 0.0
    %835 = vmatprep.subr.mxu0 0.0
    %836 = vmatpush1.msra.mxu0 0.0
    %837 = vmatprep.mubr.f32.mxu0 0.0
    %838 = vmatmul.mubr.f32.gmra.mrb[0].mxu0 %v691
    %v839 = vpop.f32.mrb[0].mxu0
    %v840 = vadd.f32 %v679, %v839
    %v841 = vpop.f32.mrb[0].mxu0
    %v842 = vadd.f32 %v681, %v841
    %843 = vmatprep.mubr.f32.mxu0 0.0
    %844 = vmatmul.mubr.f32.gmra.mrb[0].mxu0 %v694
    %v845 = vpop.f32.mrb[0].mxu0
    %v846 = vadd.f32 %v685, %v845
    %v847 = vpop.f32.mrb[0].mxu0
    %v848 = vadd.f32 %v687, %v847
    %849 = vdwg.mxu0
    %v850 = vld [vmem:[#allocation16] sm:$0xff]
    %v851 = vld [vmem:[#allocation16 + $0x8] sm:$0xff]
    %v852 = vld [vmem:[#allocation16 + $0x10] sm:$0xff]
    %v853 = vld [vmem:[#allocation16 + $0x18] sm:$0xff]
    %v854 = vld [vmem:[#allocation16 + $0x20] sm:$0xff]
    %v855 = vld [vmem:[#allocation16 + $0x28] sm:$0xff]
    %v856 = vld [vmem:[#allocation16 + $0x30] sm:$0xff]
    %v857 = vld [vmem:[#allocation16 + $0x38] sm:$0xff]
    %v858 = vld [vmem:[#allocation16 + $0x40] sm:$0xf]
    %v859 = vld [vmem:[#allocation16 + $0x48] sm:$0xf]
    %v860 = vld [vmem:[#allocation16 + $0x50] sm:$0xf]
    %v861 = vld [vmem:[#allocation16 + $0x58] sm:$0xf]
    %v863 = vsel %vm293, %v391, 0
    %v866 = vsel %vm293, %v392, 0
    %v869 = vsel %vm300, %v858, 0
    %v872 = vsel %vm300, %v859, 0
    %v875 = vsel %vm300, %v860, 0
    %v878 = vsel %vm300, %v861, 0
    %880 = vmatprep.subr.mxu0 %v851
    %881 = vmatpush1.msra.mxu0 %v850
    %882 = vmatprep.subr.mxu0 %v855
    %883 = vmatpush1.msra.mxu0 %v854
    %884 = vmatprep.subr.mxu0 %v872
    %885 = vmatpush1.msra.mxu0 %v869
    %886 = vmatprep.subr.mxu0 0.0
    %887 = vmatpush1.msra.mxu0 0.0
    %888 = vmatprep.subr.mxu0 0.0
    %889 = vmatpush1.msra.mxu0 0.0
    %890 = vmatprep.subr.mxu0 0.0
    %891 = vmatpush1.msra.mxu0 0.0
    %892 = vmatprep.subr.mxu0 0.0
    %893 = vmatpush1.msra.mxu0 0.0
    %894 = vmatprep.subr.mxu0 0.0
    %895 = vmatpush1.msra.mxu0 0.0
    %896 = vmatprep.subr.mxu0 0.0
    %897 = vmatpush1.msra.mxu0 0.0
    %898 = vmatprep.subr.mxu0 0.0
    %899 = vmatpush1.msra.mxu0 0.0
    %900 = vmatprep.subr.mxu0 0.0
    %901 = vmatpush1.msra.mxu0 0.0
    %902 = vmatprep.subr.mxu0 0.0
    %903 = vmatpush1.msra.mxu0 0.0
    %904 = vmatprep.subr.mxu0 0.0
    %905 = vmatpush1.msra.mxu0 0.0
    %906 = vmatprep.subr.mxu0 0.0
    %907 = vmatpush1.msra.mxu0 0.0
    %908 = vmatprep.subr.mxu0 0.0
    %909 = vmatpush1.msra.mxu0 0.0
    %910 = vmatprep.subr.mxu0 0.0
    %911 = vmatpush1.msra.mxu0 0.0
    %912 = vmatprep.subr.mxu0 0.0
    %913 = vmatpush1.msra.mxu0 0.0
    %914 = vmatprep.subr.mxu0 0.0
    %915 = vmatpush1.msra.mxu0 0.0
    %916 = vmatprep.subr.mxu0 0.0
    %917 = vmatpush1.msra.mxu0 0.0
    %918 = vmatprep.subr.mxu0 0.0
    %919 = vmatpush1.msra.mxu0 0.0
    %920 = vmatprep.subr.mxu0 0.0
    %921 = vmatpush1.msra.mxu0 0.0
    %922 = vmatprep.subr.mxu0 0.0
    %923 = vmatpush1.msra.mxu0 0.0
    %924 = vmatprep.subr.mxu0 0.0
    %925 = vmatpush1.msra.mxu0 0.0
    %926 = vmatprep.subr.mxu0 0.0
    %927 = vmatpush1.msra.mxu0 0.0
    %928 = vmatprep.subr.mxu0 0.0
    %929 = vmatpush1.msra.mxu0 0.0
    %930 = vmatprep.subr.mxu0 0.0
    %931 = vmatpush1.msra.mxu0 0.0
    %932 = vmatprep.subr.mxu0 0.0
    %933 = vmatpush1.msra.mxu0 0.0
    %934 = vmatprep.subr.mxu0 0.0
    %935 = vmatpush1.msra.mxu0 0.0
    %936 = vmatprep.subr.mxu0 0.0
    %937 = vmatpush1.msra.mxu0 0.0
    %938 = vmatprep.subr.mxu0 0.0
    %939 = vmatpush1.msra.mxu0 0.0
    %940 = vmatprep.subr.mxu0 0.0
    %941 = vmatpush1.msra.mxu0 0.0
    %942 = vmatprep.subr.mxu0 0.0
    %943 = vmatpush1.msra.mxu0 0.0
    %944 = vmatprep.mubr.f32.mxu0 0.0
    %945 = vmatmul.mubr.f32.gmra.mrb[0].mxu0 %v863
    %v946 = vpop.f32.mrb[0].mxu0
    %v947 = vadd.f32 0.0, %v946
    %v948 = vpop.f32.mrb[0].mxu0
    %v949 = vadd.f32 0.0, %v948
    %950 = vmatprep.mubr.f32.mxu0 0.0
    %951 = vmatmul.mubr.f32.gmra.mrb[0].mxu0 %v866
    %v952 = vpop.f32.mrb[0].mxu0
    %v953 = vadd.f32 0.0, %v952
    %v954 = vpop.f32.mrb[0].mxu0
    %v955 = vadd.f32 0.0, %v954
    %956 = vdwg.mxu0
    %957 = vmatprep.subr.mxu0 %v853
    %958 = vmatpush1.msra.mxu0 %v852
    %959 = vmatprep.subr.mxu0 %v857
    %960 = vmatpush1.msra.mxu0 %v856
    %961 = vmatprep.subr.mxu0 %v878
    %962 = vmatpush1.msra.mxu0 %v875
    %963 = vmatprep.subr.mxu0 0.0
    %964 = vmatpush1.msra.mxu0 0.0
    %965 = vmatprep.subr.mxu0 0.0
    %966 = vmatpush1.msra.mxu0 0.0
    %967 = vmatprep.subr.mxu0 0.0
    %968 = vmatpush1.msra.mxu0 0.0
    %969 = vmatprep.subr.mxu0 0.0
    %970 = vmatpush1.msra.mxu0 0.0
    %971 = vmatprep.subr.mxu0 0.0
    %972 = vmatpush1.msra.mxu0 0.0
    %973 = vmatprep.subr.mxu0 0.0
    %974 = vmatpush1.msra.mxu0 0.0
    %975 = vmatprep.subr.mxu0 0.0
    %976 = vmatpush1.msra.mxu0 0.0
    %977 = vmatprep.subr.mxu0 0.0
    %978 = vmatpush1.msra.mxu0 0.0
    %979 = vmatprep.subr.mxu0 0.0
    %980 = vmatpush1.msra.mxu0 0.0
    %981 = vmatprep.subr.mxu0 0.0
    %982 = vmatpush1.msra.mxu0 0.0
    %983 = vmatprep.subr.mxu0 0.0
    %984 = vmatpush1.msra.mxu0 0.0
    %985 = vmatprep.subr.mxu0 0.0
    %986 = vmatpush1.msra.mxu0 0.0
    %987 = vmatprep.subr.mxu0 0.0
    %988 = vmatpush1.msra.mxu0 0.0
    %989 = vmatprep.subr.mxu0 0.0
    %990 = vmatpush1.msra.mxu0 0.0
    %991 = vmatprep.subr.mxu0 0.0
    %992 = vmatpush1.msra.mxu0 0.0
    %993 = vmatprep.subr.mxu0 0.0
    %994 = vmatpush1.msra.mxu0 0.0
    %995 = vmatprep.subr.mxu0 0.0
    %996 = vmatpush1.msra.mxu0 0.0
    %997 = vmatprep.subr.mxu0 0.0
    %998 = vmatpush1.msra.mxu0 0.0
    %999 = vmatprep.subr.mxu0 0.0
    %1000 = vmatpush1.msra.mxu0 0.0
    %1001 = vmatprep.subr.mxu0 0.0
    %1002 = vmatpush1.msra.mxu0 0.0
    %1003 = vmatprep.subr.mxu0 0.0
    %1004 = vmatpush1.msra.mxu0 0.0
    %1005 = vmatprep.subr.mxu0 0.0
    %1006 = vmatpush1.msra.mxu0 0.0
    %1007 = vmatprep.subr.mxu0 0.0
    %1008 = vmatpush1.msra.mxu0 0.0
    %1009 = vmatprep.subr.mxu0 0.0
    %1010 = vmatpush1.msra.mxu0 0.0
    %1011 = vmatprep.subr.mxu0 0.0
    %1012 = vmatpush1.msra.mxu0 0.0
    %1013 = vmatprep.subr.mxu0 0.0
    %1014 = vmatpush1.msra.mxu0 0.0
    %1015 = vmatprep.subr.mxu0 0.0
    %1016 = vmatpush1.msra.mxu0 0.0
    %1017 = vmatprep.subr.mxu0 0.0
    %1018 = vmatpush1.msra.mxu0 0.0
    %1019 = vmatprep.subr.mxu0 0.0
    %1020 = vmatpush1.msra.mxu0 0.0
    %1021 = vmatprep.mubr.f32.mxu0 0.0
    %1022 = vmatmul.mubr.f32.gmra.mrb[0].mxu0 %v863
    %v1023 = vpop.f32.mrb[0].mxu0
    %v1024 = vadd.f32 0.0, %v1023
    %v1025 = vpop.f32.mrb[0].mxu0
    %v1026 = vadd.f32 0.0, %v1025
    %1027 = vmatprep.mubr.f32.mxu0 0.0
    %1028 = vmatmul.mubr.f32.gmra.mrb[0].mxu0 %v866
    %v1029 = vpop.f32.mrb[0].mxu0
    %v1030 = vadd.f32 0.0, %v1029
    %v1031 = vpop.f32.mrb[0].mxu0
    %v1032 = vadd.f32 0.0, %v1031
    %1033 = vdwg.mxu0
    %v1034 = vadd.f32 %v763, %v947
    %v1035 = vadd.f32 %v765, %v949
    %v1036 = vadd.f32 %v840, %v1024
    %v1037 = vadd.f32 %v842, %v1026
    %v1038 = vadd.f32 %v769, %v953
    %v1039 = vadd.f32 %v771, %v955
    %v1040 = vadd.f32 %v846, %v1030
    %v1041 = vadd.f32 %v848, %v1032
    %v1042 = vld [vmem:[%s10] sm:$0xf]
    %v1044 = vlaneseq
    %v1045 = vshrl.u32 %v1044, 7
    %v1046 = vsub.s32 0, %v1045
    %v1047 = vrot.slane %v1042, %v1046
    %v1048 = vlaneseq
    %v1049 = vshrl.u32 %v1048, 7
    %v1050 = vsub.s32 1, %v1049
    %v1051 = vrot.slane %v1042, %v1050
    %v1052 = vlaneseq
    %v1053 = vshrl.u32 %v1052, 7
    %v1054 = vsub.s32 2, %v1053
    %v1055 = vrot.slane %v1042, %v1054
    %v1056 = vlaneseq
    %v1057 = vshrl.u32 %v1056, 7
    %v1058 = vsub.s32 3, %v1057
    %v1059 = vrot.slane %v1042, %v1058
    %v1064 = vadd.f32 %v1034, %v1047
    %v1065 = vadd.f32 %v1035, %v1051
    %v1066 = vadd.f32 %v1036, %v1055
    %v1067 = vadd.f32 %v1037, %v1059
    %v1068 = vadd.f32 %v1038, %v1047
    %v1069 = vadd.f32 %v1039, %v1051
    %v1070 = vadd.f32 %v1040, %v1055
    %v1071 = vadd.f32 %v1041, %v1059
    %v1072 = vld [vmem:[%s14] sm:$0x1]
    %v1073 = vld [vmem:[%s15] sm:$0x1]
    %v1074 = vld [vmem:[#allocation17] sm:$0xff]
    %v1075 = vld [vmem:[#allocation17 + $0x8] sm:$0xff]
    %v1076 = vld [vmem:[#allocation17 + $0x10] sm:$0xff]
    %v1077 = vld [vmem:[#allocation17 + $0x18] sm:$0xff]
    %v1078 = vld [vmem:[#allocation17 + $0x20] sm:$0xff]
    %v1079 = vld [vmem:[#allocation17 + $0x28] sm:$0xff]
    %v1080 = vld [vmem:[#allocation17 + $0x30] sm:$0xff]
    %v1081 = vld [vmem:[#allocation17 + $0x38] sm:$0xff]
    %v1082 = vld [vmem:[#allocation17 + $0x40] sm:$0xff]
    %v1083 = vld [vmem:[#allocation17 + $0x48] sm:$0xff]
    %v1084 = vld [vmem:[#allocation17 + $0x50] sm:$0xff]
    %v1085 = vld [vmem:[#allocation17 + $0x58] sm:$0xff]
    %v1086 = vld [vmem:[#allocation17 + $0x60] sm:$0xff]
    %v1087 = vld [vmem:[#allocation17 + $0x68] sm:$0xff]
    %v1088 = vld [vmem:[#allocation17 + $0x70] sm:$0xff]
    %v1089 = vld [vmem:[#allocation17 + $0x78] sm:$0xff]
    %v1090 = vld [vmem:[#allocation17 + $0x80] sm:$0xff]
    %v1091 = vld [vmem:[#allocation17 + $0x88] sm:$0xff]
    %v1092 = vld [vmem:[#allocation17 + $0x90] sm:$0xff]
    %v1093 = vld [vmem:[#allocation17 + $0x98] sm:$0xff]
    %v1094 = vld [vmem:[#allocation17 + $0xa0] sm:$0xff]
    %v1095 = vld [vmem:[#allocation17 + $0xa8] sm:$0xff]
    %v1096 = vld [vmem:[#allocation17 + $0xb0] sm:$0xff]
    %v1097 = vld [vmem:[#allocation17 + $0xb8] sm:$0xff]
    %v1098 = vld [vmem:[#allocation17 + $0xc0] sm:$0xff]
    %v1099 = vld [vmem:[#allocation17 + $0xc8] sm:$0xff]
    %v1100 = vld [vmem:[#allocation17 + $0xd0] sm:$0xff]
    %v1101 = vld [vmem:[#allocation17 + $0xd8] sm:$0xff]
    %v1102 = vld [vmem:[#allocation17 + $0xe0] sm:$0xff]
    %v1103 = vld [vmem:[#allocation17 + $0xe8] sm:$0xff]
    %v1104 = vld [vmem:[#allocation17 + $0xf0] sm:$0xff]
    %v1105 = vld [vmem:[#allocation17 + $0xf8] sm:$0xff]
    %v1106 = vld [vmem:[#allocation17 + $0x100] sm:$0xff]
    %v1107 = vld [vmem:[#allocation17 + $0x108] sm:$0xff]
    %v1108 = vld [vmem:[#allocation17 + $0x110] sm:$0xff]
    %v1109 = vld [vmem:[#allocation17 + $0x118] sm:$0xff]
    %v1110 = vld [vmem:[#allocation17 + $0x120] sm:$0xff]
    %v1111 = vld [vmem:[#allocation17 + $0x128] sm:$0xff]
    %v1112 = vld [vmem:[#allocation17 + $0x130] sm:$0xff]
    %v1113 = vld [vmem:[#allocation17 + $0x138] sm:$0xff]
    %v1114 = vld [vmem:[#allocation17 + $0x140] sm:$0xff]
    %v1115 = vld [vmem:[#allocation17 + $0x148] sm:$0xff]
    %v1116 = vld [vmem:[#allocation17 + $0x150] sm:$0xff]
    %v1117 = vld [vmem:[#allocation17 + $0x158] sm:$0xff]
    %v1118 = vld [vmem:[#allocation17 + $0x160] sm:$0xff]
    %v1119 = vld [vmem:[#allocation17 + $0x168] sm:$0xff]
    %v1120 = vld [vmem:[#allocation17 + $0x170] sm:$0xff]
    %v1121 = vld [vmem:[#allocation17 + $0x178] sm:$0xff]
    %v1122 = vld [vmem:[#allocation17 + $0x180] sm:$0xff]
    %v1123 = vld [vmem:[#allocation17 + $0x188] sm:$0xff]
    %v1124 = vld [vmem:[#allocation17 + $0x190] sm:$0xff]
    %v1125 = vld [vmem:[#allocation17 + $0x198] sm:$0xff]
    %v1126 = vld [vmem:[#allocation17 + $0x1a0] sm:$0xff]
    %v1127 = vld [vmem:[#allocation17 + $0x1a8] sm:$0xff]
    %v1128 = vld [vmem:[#allocation17 + $0x1b0] sm:$0xff]
    %v1129 = vld [vmem:[#allocation17 + $0x1b8] sm:$0xff]
    %v1130 = vld [vmem:[#allocation17 + $0x1c0] sm:$0xff]
    %v1131 = vld [vmem:[#allocation17 + $0x1c8] sm:$0xff]
    %v1132 = vld [vmem:[#allocation17 + $0x1d0] sm:$0xff]
    %v1133 = vld [vmem:[#allocation17 + $0x1d8] sm:$0xff]
    %v1134 = vld [vmem:[#allocation17 + $0x1e0] sm:$0xff]
    %v1135 = vld [vmem:[#allocation17 + $0x1e8] sm:$0xff]
    %v1136 = vld [vmem:[#allocation17 + $0x1f0] sm:$0xff]
    %v1137 = vld [vmem:[#allocation17 + $0x1f8] sm:$0xff]
    %v1138 = vld [vmem:[#allocation17 + $0x200] sm:$0xff]
    %v1139 = vld [vmem:[#allocation17 + $0x208] sm:$0xff]
    %v1140 = vld [vmem:[#allocation17 + $0x210] sm:$0xff]
    %v1141 = vld [vmem:[#allocation17 + $0x218] sm:$0xff]
    %v1142 = vld [vmem:[#allocation17 + $0x220] sm:$0xff]
    %v1143 = vld [vmem:[#allocation17 + $0x228] sm:$0xff]
    %v1144 = vld [vmem:[#allocation17 + $0x230] sm:$0xff]
    %v1145 = vld [vmem:[#allocation17 + $0x238] sm:$0xff]
    %v1146 = vld [vmem:[#allocation17 + $0x240] sm:$0xff]
    %v1147 = vld [vmem:[#allocation17 + $0x248] sm:$0xff]
    %v1148 = vld [vmem:[#allocation17 + $0x250] sm:$0xff]
    %v1149 = vld [vmem:[#allocation17 + $0x258] sm:$0xff]
    %v1150 = vld [vmem:[#allocation17 + $0x260] sm:$0xff]
    %v1151 = vld [vmem:[#allocation17 + $0x268] sm:$0xff]
    %v1152 = vld [vmem:[#allocation17 + $0x270] sm:$0xff]
    %v1153 = vld [vmem:[#allocation17 + $0x278] sm:$0xff]
    %v1154 = vld [vmem:[#allocation17 + $0x280] sm:$0xff]
    %v1155 = vld [vmem:[#allocation17 + $0x288] sm:$0xff]
    %v1156 = vld [vmem:[#allocation17 + $0x290] sm:$0xff]
    %v1157 = vld [vmem:[#allocation17 + $0x298] sm:$0xff]
    %v1158 = vld [vmem:[#allocation17 + $0x2a0] sm:$0xff]
    %v1159 = vld [vmem:[#allocation17 + $0x2a8] sm:$0xff]
    %v1160 = vld [vmem:[#allocation17 + $0x2b0] sm:$0xff]
    %v1161 = vld [vmem:[#allocation17 + $0x2b8] sm:$0xff]
    %v1162 = vld [vmem:[#allocation17 + $0x2c0] sm:$0xff]
    %v1163 = vld [vmem:[#allocation17 + $0x2c8] sm:$0xff]
    %v1164 = vld [vmem:[#allocation17 + $0x2d0] sm:$0xff]
    %v1165 = vld [vmem:[#allocation17 + $0x2d8] sm:$0xff]
    %v1166 = vld [vmem:[#allocation17 + $0x2e0] sm:$0xff]
    %v1167 = vld [vmem:[#allocation17 + $0x2e8] sm:$0xff]
    %v1168 = vld [vmem:[#allocation17 + $0x2f0] sm:$0xff]
    %v1169 = vld [vmem:[#allocation17 + $0x2f8] sm:$0xff]
    %v1170 = vld [vmem:[#allocation17 + $0x300] sm:$0xff]
    %v1171 = vld [vmem:[#allocation17 + $0x308] sm:$0xff]
    %v1172 = vld [vmem:[#allocation17 + $0x310] sm:$0xff]
    %v1173 = vld [vmem:[#allocation17 + $0x318] sm:$0xff]
    %v1174 = vld [vmem:[#allocation17 + $0x320] sm:$0xff]
    %v1175 = vld [vmem:[#allocation17 + $0x328] sm:$0xff]
    %v1176 = vld [vmem:[#allocation17 + $0x330] sm:$0xff]
    %v1177 = vld [vmem:[#allocation17 + $0x338] sm:$0xff]
    %v1178 = vld [vmem:[#allocation17 + $0x340] sm:$0xff]
    %v1179 = vld [vmem:[#allocation17 + $0x348] sm:$0xff]
    %v1180 = vld [vmem:[#allocation17 + $0x350] sm:$0xff]
    %v1181 = vld [vmem:[#allocation17 + $0x358] sm:$0xff]
    %v1182 = vld [vmem:[#allocation17 + $0x360] sm:$0xff]
    %v1183 = vld [vmem:[#allocation17 + $0x368] sm:$0xff]
    %v1184 = vld [vmem:[#allocation17 + $0x370] sm:$0xff]
    %v1185 = vld [vmem:[#allocation17 + $0x378] sm:$0xff]
    %v1186 = vld [vmem:[#allocation17 + $0x380] sm:$0xff]
    %v1187 = vld [vmem:[#allocation17 + $0x388] sm:$0xff]
    %v1188 = vld [vmem:[#allocation17 + $0x390] sm:$0xff]
    %v1189 = vld [vmem:[#allocation17 + $0x398] sm:$0xff]
    %v1190 = vld [vmem:[#allocation17 + $0x3a0] sm:$0xff]
    %v1191 = vld [vmem:[#allocation17 + $0x3a8] sm:$0xff]
    %v1192 = vld [vmem:[#allocation17 + $0x3b0] sm:$0xff]
    %v1193 = vld [vmem:[#allocation17 + $0x3b8] sm:$0xff]
    %v1194 = vld [vmem:[#allocation17 + $0x3c0] sm:$0xff]
    %v1195 = vld [vmem:[#allocation17 + $0x3c8] sm:$0xff]
    %v1196 = vld [vmem:[#allocation17 + $0x3d0] sm:$0xff]
    %v1197 = vld [vmem:[#allocation17 + $0x3d8] sm:$0xff]
    %v1198 = vld [vmem:[#allocation17 + $0x3e0] sm:$0xff]
    %v1199 = vld [vmem:[#allocation17 + $0x3e8] sm:$0xff]
    %v1200 = vld [vmem:[#allocation17 + $0x3f0] sm:$0xff]
    %v1201 = vld [vmem:[#allocation17 + $0x3f8] sm:$0xff]
    %1202 = vmatprep.subr.mxu0 %v1075
    %1203 = vmatpush1.msra.mxu0 %v1074
    %1204 = vmatprep.subr.mxu0 %v1079
    %1205 = vmatpush1.msra.mxu0 %v1078
    %1206 = vmatprep.subr.mxu0 %v1083
    %1207 = vmatpush1.msra.mxu0 %v1082
    %1208 = vmatprep.subr.mxu0 %v1087
    %1209 = vmatpush1.msra.mxu0 %v1086
    %1210 = vmatprep.subr.mxu0 %v1091
    %1211 = vmatpush1.msra.mxu0 %v1090
    %1212 = vmatprep.subr.mxu0 %v1095
    %1213 = vmatpush1.msra.mxu0 %v1094
    %1214 = vmatprep.subr.mxu0 %v1099
    %1215 = vmatpush1.msra.mxu0 %v1098
    %1216 = vmatprep.subr.mxu0 %v1103
    %1217 = vmatpush1.msra.mxu0 %v1102
    %1218 = vmatprep.subr.mxu0 %v1107
    %1219 = vmatpush1.msra.mxu0 %v1106
    %1220 = vmatprep.subr.mxu0 %v1111
    %1221 = vmatpush1.msra.mxu0 %v1110
    %1222 = vmatprep.subr.mxu0 %v1115
    %1223 = vmatpush1.msra.mxu0 %v1114
    %1224 = vmatprep.subr.mxu0 %v1119
    %1225 = vmatpush1.msra.mxu0 %v1118
    %1226 = vmatprep.subr.mxu0 %v1123
    %1227 = vmatpush1.msra.mxu0 %v1122
    %1228 = vmatprep.subr.mxu0 %v1127
    %1229 = vmatpush1.msra.mxu0 %v1126
    %1230 = vmatprep.subr.mxu0 %v1131
    %1231 = vmatpush1.msra.mxu0 %v1130
    %1232 = vmatprep.subr.mxu0 %v1135
    %1233 = vmatpush1.msra.mxu0 %v1134
    %1234 = vmatprep.subr.mxu0 %v1139
    %1235 = vmatpush1.msra.mxu0 %v1138
    %1236 = vmatprep.subr.mxu0 %v1143
    %1237 = vmatpush1.msra.mxu0 %v1142
    %1238 = vmatprep.subr.mxu0 %v1147
    %1239 = vmatpush1.msra.mxu0 %v1146
    %1240 = vmatprep.subr.mxu0 %v1151
    %1241 = vmatpush1.msra.mxu0 %v1150
    %1242 = vmatprep.subr.mxu0 %v1155
    %1243 = vmatpush1.msra.mxu0 %v1154
    %1244 = vmatprep.subr.mxu0 %v1159
    %1245 = vmatpush1.msra.mxu0 %v1158
    %1246 = vmatprep.subr.mxu0 %v1163
    %1247 = vmatpush1.msra.mxu0 %v1162
    %1248 = vmatprep.subr.mxu0 %v1167
    %1249 = vmatpush1.msra.mxu0 %v1166
    %1250 = vmatprep.subr.mxu0 %v1171
    %1251 = vmatpush1.msra.mxu0 %v1170
    %1252 = vmatprep.subr.mxu0 %v1175
    %1253 = vmatpush1.msra.mxu0 %v1174
    %1254 = vmatprep.subr.mxu0 %v1179
    %1255 = vmatpush1.msra.mxu0 %v1178
    %1256 = vmatprep.subr.mxu0 %v1183
    %1257 = vmatpush1.msra.mxu0 %v1182
    %1258 = vmatprep.subr.mxu0 %v1187
    %1259 = vmatpush1.msra.mxu0 %v1186
    %1260 = vmatprep.subr.mxu0 %v1191
    %1261 = vmatpush1.msra.mxu0 %v1190
    %1262 = vmatprep.subr.mxu0 %v1195
    %1263 = vmatpush1.msra.mxu0 %v1194
    %1264 = vmatprep.subr.mxu0 %v1199
    %1265 = vmatpush1.msra.mxu0 %v1198
    %1266 = vmatprep.mubr.f32.mxu0 0.0
    %1267 = vmatmul.mubr.f32.gmra.mrb[0].mxu0 0.0
    %v1268 = vpop.f32.mrb[0].mxu0
    %v1269 = vadd.f32 0.0, %v1268
    %v1270 = vpop.f32.mrb[0].mxu0
    %v1271 = vadd.f32 0.0, %v1270
    %1272 = vdwg.mxu0
    %1273 = vmatprep.subr.mxu0 %v1077
    %1274 = vmatpush1.msra.mxu0 %v1076
    %1275 = vmatprep.subr.mxu0 %v1081
    %1276 = vmatpush1.msra.mxu0 %v1080
    %1277 = vmatprep.subr.mxu0 %v1085
    %1278 = vmatpush1.msra.mxu0 %v1084
    %1279 = vmatprep.subr.mxu0 %v1089
    %1280 = vmatpush1.msra.mxu0 %v1088
    %1281 = vmatprep.subr.mxu0 %v1093
    %1282 = vmatpush1.msra.mxu0 %v1092
    %1283 = vmatprep.subr.mxu0 %v1097
    %1284 = vmatpush1.msra.mxu0 %v1096
    %1285 = vmatprep.subr.mxu0 %v1101
    %1286 = vmatpush1.msra.mxu0 %v1100
    %1287 = vmatprep.subr.mxu0 %v1105
    %1288 = vmatpush1.msra.mxu0 %v1104
    %1289 = vmatprep.subr.mxu0 %v1109
    %1290 = vmatpush1.msra.mxu0 %v1108
    %1291 = vmatprep.subr.mxu0 %v1113
    %1292 = vmatpush1.msra.mxu0 %v1112
    %1293 = vmatprep.subr.mxu0 %v1117
    %1294 = vmatpush1.msra.mxu0 %v1116
    %1295 = vmatprep.subr.mxu0 %v1121
    %1296 = vmatpush1.msra.mxu0 %v1120
    %1297 = vmatprep.subr.mxu0 %v1125
    %1298 = vmatpush1.msra.mxu0 %v1124
    %1299 = vmatprep.subr.mxu0 %v1129
    %1300 = vmatpush1.msra.mxu0 %v1128
    %1301 = vmatprep.subr.mxu0 %v1133
    %1302 = vmatpush1.msra.mxu0 %v1132
    %1303 = vmatprep.subr.mxu0 %v1137
    %1304 = vmatpush1.msra.mxu0 %v1136
    %1305 = vmatprep.subr.mxu0 %v1141
    %1306 = vmatpush1.msra.mxu0 %v1140
    %1307 = vmatprep.subr.mxu0 %v1145
    %1308 = vmatpush1.msra.mxu0 %v1144
    %1309 = vmatprep.subr.mxu0 %v1149
    %1310 = vmatpush1.msra.mxu0 %v1148
    %1311 = vmatprep.subr.mxu0 %v1153
    %1312 = vmatpush1.msra.mxu0 %v1152
    %1313 = vmatprep.subr.mxu0 %v1157
    %1314 = vmatpush1.msra.mxu0 %v1156
    %1315 = vmatprep.subr.mxu0 %v1161
    %1316 = vmatpush1.msra.mxu0 %v1160
    %1317 = vmatprep.subr.mxu0 %v1165
    %1318 = vmatpush1.msra.mxu0 %v1164
    %1319 = vmatprep.subr.mxu0 %v1169
    %1320 = vmatpush1.msra.mxu0 %v1168
    %1321 = vmatprep.subr.mxu0 %v1173
    %1322 = vmatpush1.msra.mxu0 %v1172
    %1323 = vmatprep.subr.mxu0 %v1177
    %1324 = vmatpush1.msra.mxu0 %v1176
    %1325 = vmatprep.subr.mxu0 %v1181
    %1326 = vmatpush1.msra.mxu0 %v1180
    %1327 = vmatprep.subr.mxu0 %v1185
    %1328 = vmatpush1.msra.mxu0 %v1184
    %1329 = vmatprep.subr.mxu0 %v1189
    %1330 = vmatpush1.msra.mxu0 %v1188
    %1331 = vmatprep.subr.mxu0 %v1193
    %1332 = vmatpush1.msra.mxu0 %v1192
    %1333 = vmatprep.subr.mxu0 %v1197
    %1334 = vmatpush1.msra.mxu0 %v1196
    %1335 = vmatprep.subr.mxu0 %v1201
    %1336 = vmatpush1.msra.mxu0 %v1200
    %1337 = vmatprep.mubr.f32.mxu0 0.0
    %1338 = vmatmul.mubr.f32.gmra.mrb[0].mxu0 0.0
    %v1339 = vpop.f32.mrb[0].mxu0
    %v1340 = vadd.f32 0.0, %v1339
    %v1341 = vpop.f32.mrb[0].mxu0
    %v1342 = vadd.f32 0.0, %v1341
    %1343 = vdwg.mxu0
    %v1344 = vadd.f32 %v1064, %v1269
    %v1345 = vadd.f32 %v1065, %v1271
    %v1346 = vadd.f32 %v1066, %v1340
    %v1347 = vadd.f32 %v1067, %v1342
    %v1348 = vxor.u32 %v1344, 2147483648
    %v1349 = vmul.f32 %v1348, 1.442695
    %v1350 = vpow.pop %v1349
    %v1351 = vadd.f32 %v1350, 1.0
    %v1352 = vrcp.pop %v1351
    %v1353 = vmul.f32 1.0, %v1352
    %v1354 = vxor.u32 %v1345, 2147483648
    %v1355 = vmul.f32 %v1354, 1.442695
    %v1356 = vpow.pop %v1355
    %v1357 = vadd.f32 %v1356, 1.0
    %v1358 = vrcp.pop %v1357
    %v1359 = vmul.f32 1.0, %v1358
    %v1360 = vxor.u32 %v1346, 2147483648
    %v1361 = vmul.f32 %v1360, 1.442695
    %v1362 = vpow.pop %v1361
    %v1363 = vadd.f32 %v1362, 1.0
    %v1364 = vrcp.pop %v1363
    %v1365 = vmul.f32 1.0, %v1364
    %v1366 = vtanh.pop %v1347
    %v1367 = vmul.f32 %v1353, 0.0
    %v1368 = vmul.f32 %v1359, %v1366
    %v1369 = vadd.f32 %v1367, %v1368
    %v1370 = vtanh.pop %v1369
    %v1371 = vmul.f32 %v1370, %v1365
    %v1372 = vld [vmem:[#allocation19] sm:$0xff]
    %v1373 = vld [vmem:[#allocation19 + $0x8] sm:$0xff]
    %v1374 = vld [vmem:[#allocation19 + $0x10] sm:$0xff]
    %v1375 = vld [vmem:[#allocation19 + $0x18] sm:$0xff]
    %v1376 = vld [vmem:[#allocation19 + $0x20] sm:$0xff]
    %v1377 = vld [vmem:[#allocation19 + $0x28] sm:$0xff]
    %v1378 = vld [vmem:[#allocation19 + $0x30] sm:$0xff]
    %v1379 = vld [vmem:[#allocation19 + $0x38] sm:$0xff]
    %v1380 = vld [vmem:[#allocation19 + $0x40] sm:$0xff]
    %v1381 = vld [vmem:[#allocation19 + $0x48] sm:$0xff]
    %v1382 = vld [vmem:[#allocation19 + $0x50] sm:$0xff]
    %v1383 = vld [vmem:[#allocation19 + $0x58] sm:$0xff]
    %v1384 = vld [vmem:[#allocation19 + $0x60] sm:$0xff]
    %v1385 = vld [vmem:[#allocation19 + $0x68] sm:$0xff]
    %v1386 = vld [vmem:[#allocation19 + $0x70] sm:$0xff]
    %v1387 = vld [vmem:[#allocation19 + $0x78] sm:$0xff]
    %v1388 = vld [vmem:[#allocation19 + $0x80] sm:$0xff]
    %v1389 = vld [vmem:[#allocation19 + $0x88] sm:$0xff]
    %v1390 = vld [vmem:[#allocation19 + $0x90] sm:$0xff]
    %v1391 = vld [vmem:[#allocation19 + $0x98] sm:$0xff]
    %v1392 = vld [vmem:[#allocation19 + $0xa0] sm:$0xff]
    %v1393 = vld [vmem:[#allocation19 + $0xa8] sm:$0xff]
    %v1394 = vld [vmem:[#allocation19 + $0xb0] sm:$0xff]
    %v1395 = vld [vmem:[#allocation19 + $0xb8] sm:$0xff]
    %v1396 = vld [vmem:[#allocation19 + $0xc0] sm:$0xff]
    %v1397 = vld [vmem:[#allocation19 + $0xc8] sm:$0xff]
    %v1398 = vld [vmem:[#allocation19 + $0xd0] sm:$0xff]
    %v1399 = vld [vmem:[#allocation19 + $0xd8] sm:$0xff]
    %v1400 = vld [vmem:[#allocation19 + $0xe0] sm:$0xff]
    %v1401 = vld [vmem:[#allocation19 + $0xe8] sm:$0xff]
    %v1402 = vld [vmem:[#allocation19 + $0xf0] sm:$0xff]
    %v1403 = vld [vmem:[#allocation19 + $0xf8] sm:$0xff]
    %v1404 = vld [vmem:[%s13] sm:$0x3]
    %v1406 = vlaneseq
    %v1407 = vshrl.u32 %v1406, 7
    %v1408 = vsub.s32 0, %v1407
    %v1409 = vrot.slane %v1404, %v1408
    %v1410 = vlaneseq
    %v1411 = vshrl.u32 %v1410, 7
    %v1412 = vsub.s32 1, %v1411
    %v1413 = vrot.slane %v1404, %v1412
    %1416 = vmatprep.subr.mxu0 %v1373
    %1417 = vmatpush1.msra.mxu0 %v1372
    %1418 = vmatprep.subr.mxu0 %v1375
    %1419 = vmatpush1.msra.mxu0 %v1374
    %1420 = vmatprep.subr.mxu0 %v1377
    %1421 = vmatpush1.msra.mxu0 %v1376
    %1422 = vmatprep.subr.mxu0 %v1379
    %1423 = vmatpush1.msra.mxu0 %v1378
    %1424 = vmatprep.subr.mxu0 %v1381
    %1425 = vmatpush1.msra.mxu0 %v1380
    %1426 = vmatprep.subr.mxu0 %v1383
    %1427 = vmatpush1.msra.mxu0 %v1382
    %1428 = vmatprep.subr.mxu0 %v1385
    %1429 = vmatpush1.msra.mxu0 %v1384
    %1430 = vmatprep.subr.mxu0 %v1387
    %1431 = vmatpush1.msra.mxu0 %v1386
    %1432 = vmatprep.subr.mxu0 %v1389
    %1433 = vmatpush1.msra.mxu0 %v1388
    %1434 = vmatprep.subr.mxu0 %v1391
    %1435 = vmatpush1.msra.mxu0 %v1390
    %1436 = vmatprep.subr.mxu0 %v1393
    %1437 = vmatpush1.msra.mxu0 %v1392
    %1438 = vmatprep.subr.mxu0 %v1395
    %1439 = vmatpush1.msra.mxu0 %v1394
    %1440 = vmatprep.subr.mxu0 %v1397
    %1441 = vmatpush1.msra.mxu0 %v1396
    %1442 = vmatprep.subr.mxu0 %v1399
    %1443 = vmatpush1.msra.mxu0 %v1398
    %1444 = vmatprep.subr.mxu0 %v1401
    %1445 = vmatpush1.msra.mxu0 %v1400
    %1446 = vmatprep.subr.mxu0 %v1403
    %1447 = vmatpush1.msra.mxu0 %v1402
    %1448 = vmatprep.subr.mxu0 0.0
    %1449 = vmatpush1.msra.mxu0 0.0
    %1450 = vmatprep.subr.mxu0 0.0
    %1451 = vmatpush1.msra.mxu0 0.0
    %1452 = vmatprep.subr.mxu0 0.0
    %1453 = vmatpush1.msra.mxu0 0.0
    %1454 = vmatprep.subr.mxu0 0.0
    %1455 = vmatpush1.msra.mxu0 0.0
    %1456 = vmatprep.subr.mxu0 0.0
    %1457 = vmatpush1.msra.mxu0 0.0
    %1458 = vmatprep.subr.mxu0 0.0
    %1459 = vmatpush1.msra.mxu0 0.0
    %1460 = vmatprep.subr.mxu0 0.0
    %1461 = vmatpush1.msra.mxu0 0.0
    %1462 = vmatprep.subr.mxu0 0.0
    %1463 = vmatpush1.msra.mxu0 0.0
    %1464 = vmatprep.subr.mxu0 0.0
    %1465 = vmatpush1.msra.mxu0 0.0
    %1466 = vmatprep.subr.mxu0 0.0
    %1467 = vmatpush1.msra.mxu0 0.0
    %1468 = vmatprep.subr.mxu0 0.0
    %1469 = vmatpush1.msra.mxu0 0.0
    %1470 = vmatprep.subr.mxu0 0.0
    %1471 = vmatpush1.msra.mxu0 0.0
    %1472 = vmatprep.subr.mxu0 0.0
    %1473 = vmatpush1.msra.mxu0 0.0
    %1474 = vmatprep.subr.mxu0 0.0
    %1475 = vmatpush1.msra.mxu0 0.0
    %1476 = vmatprep.subr.mxu0 0.0
    %1477 = vmatpush1.msra.mxu0 0.0
    %1478 = vmatprep.subr.mxu0 0.0
    %1479 = vmatpush1.msra.mxu0 0.0
    %1480 = vmatprep.mubr.f32.mxu0 0.0
    %1481 = vmatmul.mubr.f32.gmra.mrb[0].mxu0 %v1371
    %v1482 = vpop.f32.mrb[0].mxu0
    %v1483 = vadd.f32 %v1409, %v1482
    %v1484 = vpop.f32.mrb[0].mxu0
    %v1485 = vadd.f32 %v1413, %v1484
    %1486 = vdwg.mxu0
    %v1487 = vxor.u32 %v1483, 2147483648
    %v1488 = vxor.u32 %v1485, 2147483648
    %v1489 = vmul.f32 %v1487, 1.442695
    %v1490 = vpow.pop %v1489
    %v1491 = vmul.f32 %v1488, 1.442695
    %v1492 = vpow.pop %v1491
    %v1493 = vadd.f32 %v1490, 1.0
    %v1494 = vadd.f32 %v1492, 1.0
    %v1495 = vrcp.pop %v1493
    %v1496 = vmul.f32 1.0, %v1495
    %v1497 = vrcp.pop %v1494
    %v1498 = vmul.f32 1.0, %v1497
    %v1500 = vlaneseq
    %v1501 = vshrl.u32 %v1500, 7
    %v1502 = vsub.s32 0, %v1501
    %v1503 = vrot.slane %v1072, %v1502
    %v1505 = vmul.f32 %v1503, %v1496
    %v1507 = vlaneseq
    %v1508 = vshrl.u32 %v1507, 7
    %v1509 = vsub.s32 0, %v1508
    %v1510 = vrot.slane %v1073, %v1509
    %v1512 = vmul.f32 %v1510, %v1498
    %v1513 = vadd.f32 %v1505, %v1512
    %v1514 = vmul.f32 %v1371, %v1513
    %v1515 = vld [vmem:[#allocation20] sm:$0xff]
    %v1516 = vld [vmem:[#allocation20 + $0x8] sm:$0xff]
    %v1517 = vld [vmem:[#allocation20 + $0x10] sm:$0xff]
    %v1518 = vld [vmem:[#allocation20 + $0x18] sm:$0xff]
    %v1519 = vld [vmem:[#allocation20 + $0x20] sm:$0xff]
    %v1520 = vld [vmem:[#allocation20 + $0x28] sm:$0xff]
    %v1521 = vld [vmem:[#allocation20 + $0x30] sm:$0xff]
    %v1522 = vld [vmem:[#allocation20 + $0x38] sm:$0xff]
    %v1523 = vld [vmem:[#allocation20 + $0x40] sm:$0xff]
    %v1524 = vld [vmem:[#allocation20 + $0x48] sm:$0xff]
    %v1525 = vld [vmem:[#allocation20 + $0x50] sm:$0xff]
    %v1526 = vld [vmem:[#allocation20 + $0x58] sm:$0xff]
    %v1527 = vld [vmem:[#allocation20 + $0x60] sm:$0xff]
    %v1528 = vld [vmem:[#allocation20 + $0x68] sm:$0xff]
    %v1529 = vld [vmem:[#allocation20 + $0x70] sm:$0xff]
    %v1530 = vld [vmem:[#allocation20 + $0x78] sm:$0xff]
    %v1531 = vld [vmem:[#allocation20 + $0x80] sm:$0xff]
    %v1532 = vld [vmem:[#allocation20 + $0x88] sm:$0xff]
    %v1533 = vld [vmem:[#allocation20 + $0x90] sm:$0xff]
    %v1534 = vld [vmem:[#allocation20 + $0x98] sm:$0xff]
    %v1535 = vld [vmem:[#allocation20 + $0xa0] sm:$0xff]
    %v1536 = vld [vmem:[#allocation20 + $0xa8] sm:$0xff]
    %v1537 = vld [vmem:[#allocation20 + $0xb0] sm:$0xff]
    %v1538 = vld [vmem:[#allocation20 + $0xb8] sm:$0xff]
    %v1539 = vld [vmem:[#allocation20 + $0xc0] sm:$0xff]
    %v1540 = vld [vmem:[#allocation20 + $0xc8] sm:$0xff]
    %v1541 = vld [vmem:[#allocation20 + $0xd0] sm:$0xff]
    %v1542 = vld [vmem:[#allocation20 + $0xd8] sm:$0xff]
    %v1543 = vld [vmem:[#allocation20 + $0xe0] sm:$0xff]
    %v1544 = vld [vmem:[#allocation20 + $0xe8] sm:$0xff]
    %v1545 = vld [vmem:[#allocation20 + $0xf0] sm:$0xff]
    %v1546 = vld [vmem:[#allocation20 + $0xf8] sm:$0xff]
    %v1547 = vld [vmem:[%s17] sm:$0x3]
    %v1549 = vlaneseq
    %v1550 = vshrl.u32 %v1549, 7
    %v1551 = vsub.s32 0, %v1550
    %v1552 = vrot.slane %v1547, %v1551
    %v1553 = vlaneseq
    %v1554 = vshrl.u32 %v1553, 7
    %v1555 = vsub.s32 1, %v1554
    %v1556 = vrot.slane %v1547, %v1555
    %1559 = vmatprep.subr.mxu0 %v1516
    %1560 = vmatpush1.msra.mxu0 %v1515
    %1561 = vmatprep.subr.mxu0 %v1518
    %1562 = vmatpush1.msra.mxu0 %v1517
    %1563 = vmatprep.subr.mxu0 %v1520
    %1564 = vmatpush1.msra.mxu0 %v1519
    %1565 = vmatprep.subr.mxu0 %v1522
    %1566 = vmatpush1.msra.mxu0 %v1521
    %1567 = vmatprep.subr.mxu0 %v1524
    %1568 = vmatpush1.msra.mxu0 %v1523
    %1569 = vmatprep.subr.mxu0 %v1526
    %1570 = vmatpush1.msra.mxu0 %v1525
    %1571 = vmatprep.subr.mxu0 %v1528
    %1572 = vmatpush1.msra.mxu0 %v1527
    %1573 = vmatprep.subr.mxu0 %v1530
    %1574 = vmatpush1.msra.mxu0 %v1529
    %1575 = vmatprep.subr.mxu0 %v1532
    %1576 = vmatpush1.msra.mxu0 %v1531
    %1577 = vmatprep.subr.mxu0 %v1534
    %1578 = vmatpush1.msra.mxu0 %v1533
    %1579 = vmatprep.subr.mxu0 %v1536
    %1580 = vmatpush1.msra.mxu0 %v1535
    %1581 = vmatprep.subr.mxu0 %v1538
    %1582 = vmatpush1.msra.mxu0 %v1537
    %1583 = vmatprep.subr.mxu0 %v1540
    %1584 = vmatpush1.msra.mxu0 %v1539
    %1585 = vmatprep.subr.mxu0 %v1542
    %1586 = vmatpush1.msra.mxu0 %v1541
    %1587 = vmatprep.subr.mxu0 %v1544
    %1588 = vmatpush1.msra.mxu0 %v1543
    %1589 = vmatprep.subr.mxu0 %v1546
    %1590 = vmatpush1.msra.mxu0 %v1545
    %1591 = vmatprep.subr.mxu0 0.0
    %1592 = vmatpush1.msra.mxu0 0.0
    %1593 = vmatprep.subr.mxu0 0.0
    %1594 = vmatpush1.msra.mxu0 0.0
    %1595 = vmatprep.subr.mxu0 0.0
    %1596 = vmatpush1.msra.mxu0 0.0
    %1597 = vmatprep.subr.mxu0 0.0
    %1598 = vmatpush1.msra.mxu0 0.0
    %1599 = vmatprep.subr.mxu0 0.0
    %1600 = vmatpush1.msra.mxu0 0.0
    %1601 = vmatprep.subr.mxu0 0.0
    %1602 = vmatpush1.msra.mxu0 0.0
    %1603 = vmatprep.subr.mxu0 0.0
    %1604 = vmatpush1.msra.mxu0 0.0
    %1605 = vmatprep.subr.mxu0 0.0
    %1606 = vmatpush1.msra.mxu0 0.0
    %1607 = vmatprep.subr.mxu0 0.0
    %1608 = vmatpush1.msra.mxu0 0.0
    %1609 = vmatprep.subr.mxu0 0.0
    %1610 = vmatpush1.msra.mxu0 0.0
    %1611 = vmatprep.subr.mxu0 0.0
    %1612 = vmatpush1.msra.mxu0 0.0
    %1613 = vmatprep.subr.mxu0 0.0
    %1614 = vmatpush1.msra.mxu0 0.0
    %1615 = vmatprep.subr.mxu0 0.0
    %1616 = vmatpush1.msra.mxu0 0.0
    %1617 = vmatprep.subr.mxu0 0.0
    %1618 = vmatpush1.msra.mxu0 0.0
    %1619 = vmatprep.subr.mxu0 0.0
    %1620 = vmatpush1.msra.mxu0 0.0
    %1621 = vmatprep.subr.mxu0 0.0
    %1622 = vmatpush1.msra.mxu0 0.0
    %1623 = vmatprep.mubr.f32.mxu0 0.0
    %1624 = vmatmul.mubr.f32.gmra.mrb[0].mxu0 %v1514
    %v1625 = vpop.f32.mrb[0].mxu0
    %v1626 = vadd.f32 %v1552, %v1625
    %v1627 = vpop.f32.mrb[0].mxu0
    %v1628 = vadd.f32 %v1556, %v1627
    %1629 = vdwg.mxu0
    %v1630 = vld [vmem:[#allocation22] sm:$0xff]
    %v1631 = vld [vmem:[#allocation22 + $0x8] sm:$0xff]
    %v1632 = vld [vmem:[#allocation22 + $0x10] sm:$0xff]
    %v1633 = vld [vmem:[#allocation22 + $0x18] sm:$0xff]
    %v1634 = vld [vmem:[#allocation22 + $0x20] sm:$0xff]
    %v1635 = vld [vmem:[#allocation22 + $0x28] sm:$0xff]
    %v1636 = vld [vmem:[#allocation22 + $0x30] sm:$0xff]
    %v1637 = vld [vmem:[#allocation22 + $0x38] sm:$0xff]
    %v1638 = vld [vmem:[#allocation22 + $0x40] sm:$0xff]
    %v1639 = vld [vmem:[#allocation22 + $0x48] sm:$0xff]
    %v1640 = vld [vmem:[#allocation22 + $0x50] sm:$0xff]
    %v1641 = vld [vmem:[#allocation22 + $0x58] sm:$0xff]
    %v1642 = vld [vmem:[#allocation22 + $0x60] sm:$0xff]
    %v1643 = vld [vmem:[#allocation22 + $0x68] sm:$0xff]
    %v1644 = vld [vmem:[#allocation22 + $0x70] sm:$0xff]
    %v1645 = vld [vmem:[#allocation22 + $0x78] sm:$0xff]
    %v1646 = vld [vmem:[#allocation22 + $0x80] sm:$0xff]
    %v1647 = vld [vmem:[#allocation22 + $0x88] sm:$0xff]
    %v1648 = vld [vmem:[#allocation22 + $0x90] sm:$0xff]
    %v1649 = vld [vmem:[#allocation22 + $0x98] sm:$0xff]
    %v1650 = vld [vmem:[#allocation22 + $0xa0] sm:$0xff]
    %v1651 = vld [vmem:[#allocation22 + $0xa8] sm:$0xff]
    %v1652 = vld [vmem:[#allocation22 + $0xb0] sm:$0xff]
    %v1653 = vld [vmem:[#allocation22 + $0xb8] sm:$0xff]
    %v1654 = vld [vmem:[#allocation22 + $0xc0] sm:$0xff]
    %v1655 = vld [vmem:[#allocation22 + $0xc8] sm:$0xff]
    %v1656 = vld [vmem:[#allocation22 + $0xd0] sm:$0xff]
    %v1657 = vld [vmem:[#allocation22 + $0xd8] sm:$0xff]
    %v1658 = vld [vmem:[#allocation22 + $0xe0] sm:$0xff]
    %v1659 = vld [vmem:[#allocation22 + $0xe8] sm:$0xff]
    %v1660 = vld [vmem:[#allocation22 + $0xf0] sm:$0xff]
    %v1661 = vld [vmem:[#allocation22 + $0xf8] sm:$0xff]
    %v1662 = vld [vmem:[#allocation22 + $0x100] sm:$0xff]
    %v1663 = vld [vmem:[#allocation22 + $0x108] sm:$0xff]
    %v1664 = vld [vmem:[#allocation22 + $0x110] sm:$0xff]
    %v1665 = vld [vmem:[#allocation22 + $0x118] sm:$0xff]
    %v1666 = vld [vmem:[#allocation22 + $0x120] sm:$0xff]
    %v1667 = vld [vmem:[#allocation22 + $0x128] sm:$0xff]
    %v1668 = vld [vmem:[#allocation22 + $0x130] sm:$0xff]
    %v1669 = vld [vmem:[#allocation22 + $0x138] sm:$0xff]
    %v1670 = vld [vmem:[#allocation22 + $0x140] sm:$0xff]
    %v1671 = vld [vmem:[#allocation22 + $0x148] sm:$0xff]
    %v1672 = vld [vmem:[#allocation22 + $0x150] sm:$0xff]
    %v1673 = vld [vmem:[#allocation22 + $0x158] sm:$0xff]
    %v1674 = vld [vmem:[#allocation22 + $0x160] sm:$0xff]
    %v1675 = vld [vmem:[#allocation22 + $0x168] sm:$0xff]
    %v1676 = vld [vmem:[#allocation22 + $0x170] sm:$0xff]
    %v1677 = vld [vmem:[#allocation22 + $0x178] sm:$0xff]
    %v1678 = vld [vmem:[#allocation22 + $0x180] sm:$0xff]
    %v1679 = vld [vmem:[#allocation22 + $0x188] sm:$0xff]
    %v1680 = vld [vmem:[#allocation22 + $0x190] sm:$0xff]
    %v1681 = vld [vmem:[#allocation22 + $0x198] sm:$0xff]
    %v1682 = vld [vmem:[#allocation22 + $0x1a0] sm:$0xff]
    %v1683 = vld [vmem:[#allocation22 + $0x1a8] sm:$0xff]
    %v1684 = vld [vmem:[#allocation22 + $0x1b0] sm:$0xff]
    %v1685 = vld [vmem:[#allocation22 + $0x1b8] sm:$0xff]
    %v1686 = vld [vmem:[#allocation22 + $0x1c0] sm:$0xff]
    %v1687 = vld [vmem:[#allocation22 + $0x1c8] sm:$0xff]
    %v1688 = vld [vmem:[#allocation22 + $0x1d0] sm:$0xff]
    %v1689 = vld [vmem:[#allocation22 + $0x1d8] sm:$0xff]
    %v1690 = vld [vmem:[#allocation22 + $0x1e0] sm:$0xff]
    %v1691 = vld [vmem:[#allocation22 + $0x1e8] sm:$0xff]
    %v1692 = vld [vmem:[#allocation22 + $0x1f0] sm:$0xff]
    %v1693 = vld [vmem:[#allocation22 + $0x1f8] sm:$0xff]
    %v1694 = vld [vmem:[%s19] sm:$0x3]
    %v1696 = vlaneseq
    %v1697 = vshrl.u32 %v1696, 7
    %v1698 = vsub.s32 0, %v1697
    %v1699 = vrot.slane %v1694, %v1698
    %v1700 = vlaneseq
    %v1701 = vshrl.u32 %v1700, 7
    %v1702 = vsub.s32 1, %v1701
    %v1703 = vrot.slane %v1694, %v1702
    %1706 = vmatprep.subr.mxu0 %v1631
    %1707 = vmatpush1.msra.mxu0 %v1630
    %1708 = vmatprep.subr.mxu0 %v1633
    %1709 = vmatpush1.msra.mxu0 %v1632
    %1710 = vmatprep.subr.mxu0 %v1635
    %1711 = vmatpush1.msra.mxu0 %v1634
    %1712 = vmatprep.subr.mxu0 %v1637
    %1713 = vmatpush1.msra.mxu0 %v1636
    %1714 = vmatprep.subr.mxu0 %v1639
    %1715 = vmatpush1.msra.mxu0 %v1638
    %1716 = vmatprep.subr.mxu0 %v1641
    %1717 = vmatpush1.msra.mxu0 %v1640
    %1718 = vmatprep.subr.mxu0 %v1643
    %1719 = vmatpush1.msra.mxu0 %v1642
    %1720 = vmatprep.subr.mxu0 %v1645
    %1721 = vmatpush1.msra.mxu0 %v1644
    %1722 = vmatprep.subr.mxu0 %v1647
    %1723 = vmatpush1.msra.mxu0 %v1646
    %1724 = vmatprep.subr.mxu0 %v1649
    %1725 = vmatpush1.msra.mxu0 %v1648
    %1726 = vmatprep.subr.mxu0 %v1651
    %1727 = vmatpush1.msra.mxu0 %v1650
    %1728 = vmatprep.subr.mxu0 %v1653
    %1729 = vmatpush1.msra.mxu0 %v1652
    %1730 = vmatprep.subr.mxu0 %v1655
    %1731 = vmatpush1.msra.mxu0 %v1654
    %1732 = vmatprep.subr.mxu0 %v1657
    %1733 = vmatpush1.msra.mxu0 %v1656
    %1734 = vmatprep.subr.mxu0 %v1659
    %1735 = vmatpush1.msra.mxu0 %v1658
    %1736 = vmatprep.subr.mxu0 %v1661
    %1737 = vmatpush1.msra.mxu0 %v1660
    %1738 = vmatprep.subr.mxu0 %v1663
    %1739 = vmatpush1.msra.mxu0 %v1662
    %1740 = vmatprep.subr.mxu0 %v1665
    %1741 = vmatpush1.msra.mxu0 %v1664
    %1742 = vmatprep.subr.mxu0 %v1667
    %1743 = vmatpush1.msra.mxu0 %v1666
    %1744 = vmatprep.subr.mxu0 %v1669
    %1745 = vmatpush1.msra.mxu0 %v1668
    %1746 = vmatprep.subr.mxu0 %v1671
    %1747 = vmatpush1.msra.mxu0 %v1670
    %1748 = vmatprep.subr.mxu0 %v1673
    %1749 = vmatpush1.msra.mxu0 %v1672
    %1750 = vmatprep.subr.mxu0 %v1675
    %1751 = vmatpush1.msra.mxu0 %v1674
    %1752 = vmatprep.subr.mxu0 %v1677
    %1753 = vmatpush1.msra.mxu0 %v1676
    %1754 = vmatprep.subr.mxu0 %v1679
    %1755 = vmatpush1.msra.mxu0 %v1678
    %1756 = vmatprep.subr.mxu0 %v1681
    %1757 = vmatpush1.msra.mxu0 %v1680
    %1758 = vmatprep.subr.mxu0 %v1683
    %1759 = vmatpush1.msra.mxu0 %v1682
    %1760 = vmatprep.subr.mxu0 %v1685
    %1761 = vmatpush1.msra.mxu0 %v1684
    %1762 = vmatprep.subr.mxu0 %v1687
    %1763 = vmatpush1.msra.mxu0 %v1686
    %1764 = vmatprep.subr.mxu0 %v1689
    %1765 = vmatpush1.msra.mxu0 %v1688
    %1766 = vmatprep.subr.mxu0 %v1691
    %1767 = vmatpush1.msra.mxu0 %v1690
    %1768 = vmatprep.subr.mxu0 %v1693
    %1769 = vmatpush1.msra.mxu0 %v1692
    %1770 = vmatprep.mubr.f32.mxu0 %v1628
    %1771 = vmatmul.mubr.f32.gmra.mrb[0].mxu0 %v1626
    %v1772 = vpop.f32.mrb[0].mxu0
    %v1773 = vadd.f32 %v1699, %v1772
    %v1774 = vpop.f32.mrb[0].mxu0
    %v1775 = vadd.f32 %v1703, %v1774
    %1776 = vdwg.mxu0
    %v1777 = vtanh.pop %v1773
    %v1778 = vxor.u32 %v1775, 2147483648
    %v1779 = vmul.f32 %v1778, 1.442695
    %v1780 = vpow.pop %v1779
    %v1781 = vadd.f32 %v1780, 1.0
    %v1782 = vrcp.pop %v1781
    %v1783 = vmul.f32 1.0, %v1782
    %v1784 = vmul.f32 %v1777, %v1783
    %1785 = vmatprep.subr.mxu0 %v1075
    %1786 = vmatpush1.msra.mxu0 %v1074
    %1787 = vmatprep.subr.mxu0 %v1079
    %1788 = vmatpush1.msra.mxu0 %v1078
    %1789 = vmatprep.subr.mxu0 %v1083
    %1790 = vmatpush1.msra.mxu0 %v1082
    %1791 = vmatprep.subr.mxu0 %v1087
    %1792 = vmatpush1.msra.mxu0 %v1086
    %1793 = vmatprep.subr.mxu0 %v1091
    %1794 = vmatpush1.msra.mxu0 %v1090
    %1795 = vmatprep.subr.mxu0 %v1095
    %1796 = vmatpush1.msra.mxu0 %v1094
    %1797 = vmatprep.subr.mxu0 %v1099
    %1798 = vmatpush1.msra.mxu0 %v1098
    %1799 = vmatprep.subr.mxu0 %v1103
    %1800 = vmatpush1.msra.mxu0 %v1102
    %1801 = vmatprep.subr.mxu0 %v1107
    %1802 = vmatpush1.msra.mxu0 %v1106
    %1803 = vmatprep.subr.mxu0 %v1111
    %1804 = vmatpush1.msra.mxu0 %v1110
    %1805 = vmatprep.subr.mxu0 %v1115
    %1806 = vmatpush1.msra.mxu0 %v1114
    %1807 = vmatprep.subr.mxu0 %v1119
    %1808 = vmatpush1.msra.mxu0 %v1118
    %1809 = vmatprep.subr.mxu0 %v1123
    %1810 = vmatpush1.msra.mxu0 %v1122
    %1811 = vmatprep.subr.mxu0 %v1127
    %1812 = vmatpush1.msra.mxu0 %v1126
    %1813 = vmatprep.subr.mxu0 %v1131
    %1814 = vmatpush1.msra.mxu0 %v1130
    %1815 = vmatprep.subr.mxu0 %v1135
    %1816 = vmatpush1.msra.mxu0 %v1134
    %1817 = vmatprep.subr.mxu0 %v1139
    %1818 = vmatpush1.msra.mxu0 %v1138
    %1819 = vmatprep.subr.mxu0 %v1143
    %1820 = vmatpush1.msra.mxu0 %v1142
    %1821 = vmatprep.subr.mxu0 %v1147
    %1822 = vmatpush1.msra.mxu0 %v1146
    %1823 = vmatprep.subr.mxu0 %v1151
    %1824 = vmatpush1.msra.mxu0 %v1150
    %1825 = vmatprep.subr.mxu0 %v1155
    %1826 = vmatpush1.msra.mxu0 %v1154
    %1827 = vmatprep.subr.mxu0 %v1159
    %1828 = vmatpush1.msra.mxu0 %v1158
    %1829 = vmatprep.subr.mxu0 %v1163
    %1830 = vmatpush1.msra.mxu0 %v1162
    %1831 = vmatprep.subr.mxu0 %v1167
    %1832 = vmatpush1.msra.mxu0 %v1166
    %1833 = vmatprep.subr.mxu0 %v1171
    %1834 = vmatpush1.msra.mxu0 %v1170
    %1835 = vmatprep.subr.mxu0 %v1175
    %1836 = vmatpush1.msra.mxu0 %v1174
    %1837 = vmatprep.subr.mxu0 %v1179
    %1838 = vmatpush1.msra.mxu0 %v1178
    %1839 = vmatprep.subr.mxu0 %v1183
    %1840 = vmatpush1.msra.mxu0 %v1182
    %1841 = vmatprep.subr.mxu0 %v1187
    %1842 = vmatpush1.msra.mxu0 %v1186
    %1843 = vmatprep.subr.mxu0 %v1191
    %1844 = vmatpush1.msra.mxu0 %v1190
    %1845 = vmatprep.subr.mxu0 %v1195
    %1846 = vmatpush1.msra.mxu0 %v1194
    %1847 = vmatprep.subr.mxu0 %v1199
    %1848 = vmatpush1.msra.mxu0 %v1198
    %1849 = vmatprep.mubr.f32.mxu0 %v1784
    %1850 = vmatmul.mubr.f32.gmra.mrb[0].mxu0 %v1371
    %v1851 = vpop.f32.mrb[0].mxu0
    %v1852 = vadd.f32 0.0, %v1851
    %v1853 = vpop.f32.mrb[0].mxu0
    %v1854 = vadd.f32 0.0, %v1853
    %1855 = vdwg.mxu0
    %1856 = vmatprep.subr.mxu0 %v1077
    %1857 = vmatpush1.msra.mxu0 %v1076
    %1858 = vmatprep.subr.mxu0 %v1081
    %1859 = vmatpush1.msra.mxu0 %v1080
    %1860 = vmatprep.subr.mxu0 %v1085
    %1861 = vmatpush1.msra.mxu0 %v1084
    %1862 = vmatprep.subr.mxu0 %v1089
    %1863 = vmatpush1.msra.mxu0 %v1088
    %1864 = vmatprep.subr.mxu0 %v1093
    %1865 = vmatpush1.msra.mxu0 %v1092
    %1866 = vmatprep.subr.mxu0 %v1097
    %1867 = vmatpush1.msra.mxu0 %v1096
    %1868 = vmatprep.subr.mxu0 %v1101
    %1869 = vmatpush1.msra.mxu0 %v1100
    %1870 = vmatprep.subr.mxu0 %v1105
    %1871 = vmatpush1.msra.mxu0 %v1104
    %1872 = vmatprep.subr.mxu0 %v1109
    %1873 = vmatpush1.msra.mxu0 %v1108
    %1874 = vmatprep.subr.mxu0 %v1113
    %1875 = vmatpush1.msra.mxu0 %v1112
    %1876 = vmatprep.subr.mxu0 %v1117
    %1877 = vmatpush1.msra.mxu0 %v1116
    %1878 = vmatprep.subr.mxu0 %v1121
    %1879 = vmatpush1.msra.mxu0 %v1120
    %1880 = vmatprep.subr.mxu0 %v1125
    %1881 = vmatpush1.msra.mxu0 %v1124
    %1882 = vmatprep.subr.mxu0 %v1129
    %1883 = vmatpush1.msra.mxu0 %v1128
    %1884 = vmatprep.subr.mxu0 %v1133
    %1885 = vmatpush1.msra.mxu0 %v1132
    %1886 = vmatprep.subr.mxu0 %v1137
    %1887 = vmatpush1.msra.mxu0 %v1136
    %1888 = vmatprep.subr.mxu0 %v1141
    %1889 = vmatpush1.msra.mxu0 %v1140
    %1890 = vmatprep.subr.mxu0 %v1145
    %1891 = vmatpush1.msra.mxu0 %v1144
    %1892 = vmatprep.subr.mxu0 %v1149
    %1893 = vmatpush1.msra.mxu0 %v1148
    %1894 = vmatprep.subr.mxu0 %v1153
    %1895 = vmatpush1.msra.mxu0 %v1152
    %1896 = vmatprep.subr.mxu0 %v1157
    %1897 = vmatpush1.msra.mxu0 %v1156
    %1898 = vmatprep.subr.mxu0 %v1161
    %1899 = vmatpush1.msra.mxu0 %v1160
    %1900 = vmatprep.subr.mxu0 %v1165
    %1901 = vmatpush1.msra.mxu0 %v1164
    %1902 = vmatprep.subr.mxu0 %v1169
    %1903 = vmatpush1.msra.mxu0 %v1168
    %1904 = vmatprep.subr.mxu0 %v1173
    %1905 = vmatpush1.msra.mxu0 %v1172
    %1906 = vmatprep.subr.mxu0 %v1177
    %1907 = vmatpush1.msra.mxu0 %v1176
    %1908 = vmatprep.subr.mxu0 %v1181
    %1909 = vmatpush1.msra.mxu0 %v1180
    %1910 = vmatprep.subr.mxu0 %v1185
    %1911 = vmatpush1.msra.mxu0 %v1184
    %1912 = vmatprep.subr.mxu0 %v1189
    %1913 = vmatpush1.msra.mxu0 %v1188
    %1914 = vmatprep.subr.mxu0 %v1193
    %1915 = vmatpush1.msra.mxu0 %v1192
    %1916 = vmatprep.subr.mxu0 %v1197
    %1917 = vmatpush1.msra.mxu0 %v1196
    %1918 = vmatprep.subr.mxu0 %v1201
    %1919 = vmatpush1.msra.mxu0 %v1200
    %1920 = vmatprep.mubr.f32.mxu0 %v1784
    %1921 = vmatmul.mubr.f32.gmra.mrb[0].mxu0 %v1371
    %v1922 = vpop.f32.mrb[0].mxu0
    %v1923 = vadd.f32 0.0, %v1922
    %v1924 = vpop.f32.mrb[0].mxu0
    %v1925 = vadd.f32 0.0, %v1924
    %1926 = vdwg.mxu0
    %v1931 = vrot.slane %v1852, 6
    %v1932 = vrot.slane %v1854, 6
    %v1933 = vrot.slane %v1923, 6
    %v1934 = vrot.slane %v1925, 6
    %v1939 = vadd.f32 %v1064, %v1931
    %v1940 = vadd.f32 %v1065, %v1932
    %v1941 = vadd.f32 %v1066, %v1933
    %v1942 = vadd.f32 %v1067, %v1934
    %v1943 = vxor.u32 %v1939, 2147483648
    %v1944 = vmul.f32 %v1943, 1.442695
    %v1945 = vpow.pop %v1944
    %v1946 = vadd.f32 %v1945, 1.0
    %v1947 = vrcp.pop %v1946
    %v1948 = vmul.f32 1.0, %v1947
    %v1949 = vxor.u32 %v1940, 2147483648
    %v1950 = vmul.f32 %v1949, 1.442695
    %v1951 = vpow.pop %v1950
    %v1952 = vadd.f32 %v1951, 1.0
    %v1953 = vrcp.pop %v1952
    %v1954 = vmul.f32 1.0, %v1953
    %v1955 = vxor.u32 %v1941, 2147483648
    %v1956 = vmul.f32 %v1955, 1.442695
    %v1957 = vpow.pop %v1956
    %v1958 = vadd.f32 %v1957, 1.0
    %v1959 = vrcp.pop %v1958
    %v1960 = vmul.f32 1.0, %v1959
    %v1961 = vtanh.pop %v1942
    %v1963 = vrot.slane %v1369, 6
    %v1965 = vmul.f32 %v1948, %v1963
    %v1966 = vmul.f32 %v1954, %v1961
    %v1967 = vadd.f32 %v1965, %v1966
    %v1968 = vtanh.pop %v1967
    %v1969 = vmul.f32 %v1968, %v1960
    %v1971 = vrot.slane %v1969, 2
    %1973 = vmatprep.subr.mxu0 %v1373
    %1974 = vmatpush1.msra.mxu0 %v1372
    %1975 = vmatprep.subr.mxu0 %v1375
    %1976 = vmatpush1.msra.mxu0 %v1374
    %1977 = vmatprep.subr.mxu0 %v1377
    %1978 = vmatpush1.msra.mxu0 %v1376
    %1979 = vmatprep.subr.mxu0 %v1379
    %1980 = vmatpush1.msra.mxu0 %v1378
    %1981 = vmatprep.subr.mxu0 %v1381
    %1982 = vmatpush1.msra.mxu0 %v1380
    %1983 = vmatprep.subr.mxu0 %v1383
    %1984 = vmatpush1.msra.mxu0 %v1382
    %1985 = vmatprep.subr.mxu0 %v1385
    %1986 = vmatpush1.msra.mxu0 %v1384
    %1987 = vmatprep.subr.mxu0 %v1387
    %1988 = vmatpush1.msra.mxu0 %v1386
    %1989 = vmatprep.subr.mxu0 %v1389
    %1990 = vmatpush1.msra.mxu0 %v1388
    %1991 = vmatprep.subr.mxu0 %v1391
    %1992 = vmatpush1.msra.mxu0 %v1390
    %1993 = vmatprep.subr.mxu0 %v1393
    %1994 = vmatpush1.msra.mxu0 %v1392
    %1995 = vmatprep.subr.mxu0 %v1395
    %1996 = vmatpush1.msra.mxu0 %v1394
    %1997 = vmatprep.subr.mxu0 %v1397
    %1998 = vmatpush1.msra.mxu0 %v1396
    %1999 = vmatprep.subr.mxu0 %v1399
    %2000 = vmatpush1.msra.mxu0 %v1398
    %2001 = vmatprep.subr.mxu0 %v1401
    %2002 = vmatpush1.msra.mxu0 %v1400
    %2003 = vmatprep.subr.mxu0 %v1403
    %2004 = vmatpush1.msra.mxu0 %v1402
    %2005 = vmatprep.subr.mxu0 0.0
    %2006 = vmatpush1.msra.mxu0 0.0
    %2007 = vmatprep.subr.mxu0 0.0
    %2008 = vmatpush1.msra.mxu0 0.0
    %2009 = vmatprep.subr.mxu0 0.0
    %2010 = vmatpush1.msra.mxu0 0.0
    %2011 = vmatprep.subr.mxu0 0.0
    %2012 = vmatpush1.msra.mxu0 0.0
    %2013 = vmatprep.subr.mxu0 0.0
    %2014 = vmatpush1.msra.mxu0 0.0
    %2015 = vmatprep.subr.mxu0 0.0
    %2016 = vmatpush1.msra.mxu0 0.0
    %2017 = vmatprep.subr.mxu0 0.0
    %2018 = vmatpush1.msra.mxu0 0.0
    %2019 = vmatprep.subr.mxu0 0.0
    %2020 = vmatpush1.msra.mxu0 0.0
    %2021 = vmatprep.subr.mxu0 0.0
    %2022 = vmatpush1.msra.mxu0 0.0
    %2023 = vmatprep.subr.mxu0 0.0
    %2024 = vmatpush1.msra.mxu0 0.0
    %2025 = vmatprep.subr.mxu0 0.0
    %2026 = vmatpush1.msra.mxu0 0.0
    %2027 = vmatprep.subr.mxu0 0.0
    %2028 = vmatpush1.msra.mxu0 0.0
    %2029 = vmatprep.subr.mxu0 0.0
    %2030 = vmatpush1.msra.mxu0 0.0
    %2031 = vmatprep.subr.mxu0 0.0
    %2032 = vmatpush1.msra.mxu0 0.0
    %2033 = vmatprep.subr.mxu0 0.0
    %2034 = vmatpush1.msra.mxu0 0.0
    %2035 = vmatprep.subr.mxu0 0.0
    %2036 = vmatpush1.msra.mxu0 0.0
    %2037 = vmatprep.mubr.f32.mxu0 0.0
    %2038 = vmatmul.mubr.f32.gmra.mrb[0].mxu0 %v1971
    %v2039 = vpop.f32.mrb[0].mxu0
    %v2040 = vadd.f32 %v1409, %v2039
    %v2041 = vpop.f32.mrb[0].mxu0
    %v2042 = vadd.f32 %v1413, %v2041
    %2043 = vdwg.mxu0
    %v2044 = vxor.u32 %v2040, 2147483648
    %v2045 = vxor.u32 %v2042, 2147483648
    %v2046 = vmul.f32 %v2044, 1.442695
    %v2047 = vpow.pop %v2046
    %v2048 = vmul.f32 %v2045, 1.442695
    %v2049 = vpow.pop %v2048
    %v2050 = vadd.f32 %v2047, 1.0
    %v2051 = vadd.f32 %v2049, 1.0
    %v2052 = vrcp.pop %v2050
    %v2053 = vmul.f32 1.0, %v2052
    %v2054 = vrcp.pop %v2051
    %v2055 = vmul.f32 1.0, %v2054
    %v2056 = vmul.f32 %v1503, %v2053
    %v2057 = vmul.f32 %v1510, %v2055
    %v2058 = vadd.f32 %v2056, %v2057
    %v2060 = vrot.slane %v2058, 6
    %v2062 = vmul.f32 %v1969, %v2060
    %v2064 = vrot.slane %v2062, 2
    %2066 = vmatprep.subr.mxu0 %v1516
    %2067 = vmatpush1.msra.mxu0 %v1515
    %2068 = vmatprep.subr.mxu0 %v1518
    %2069 = vmatpush1.msra.mxu0 %v1517
    %2070 = vmatprep.subr.mxu0 %v1520
    %2071 = vmatpush1.msra.mxu0 %v1519
    %2072 = vmatprep.subr.mxu0 %v1522
    %2073 = vmatpush1.msra.mxu0 %v1521
    %2074 = vmatprep.subr.mxu0 %v1524
    %2075 = vmatpush1.msra.mxu0 %v1523
    %2076 = vmatprep.subr.mxu0 %v1526
    %2077 = vmatpush1.msra.mxu0 %v1525
    %2078 = vmatprep.subr.mxu0 %v1528
    %2079 = vmatpush1.msra.mxu0 %v1527
    %2080 = vmatprep.subr.mxu0 %v1530
    %2081 = vmatpush1.msra.mxu0 %v1529
    %2082 = vmatprep.subr.mxu0 %v1532
    %2083 = vmatpush1.msra.mxu0 %v1531
    %2084 = vmatprep.subr.mxu0 %v1534
    %2085 = vmatpush1.msra.mxu0 %v1533
    %2086 = vmatprep.subr.mxu0 %v1536
    %2087 = vmatpush1.msra.mxu0 %v1535
    %2088 = vmatprep.subr.mxu0 %v1538
    %2089 = vmatpush1.msra.mxu0 %v1537
    %2090 = vmatprep.subr.mxu0 %v1540
    %2091 = vmatpush1.msra.mxu0 %v1539
    %2092 = vmatprep.subr.mxu0 %v1542
    %2093 = vmatpush1.msra.mxu0 %v1541
    %2094 = vmatprep.subr.mxu0 %v1544
    %2095 = vmatpush1.msra.mxu0 %v1543
    %2096 = vmatprep.subr.mxu0 %v1546
    %2097 = vmatpush1.msra.mxu0 %v1545
    %2098 = vmatprep.subr.mxu0 0.0
    %2099 = vmatpush1.msra.mxu0 0.0
    %2100 = vmatprep.subr.mxu0 0.0
    %2101 = vmatpush1.msra.mxu0 0.0
    %2102 = vmatprep.subr.mxu0 0.0
    %2103 = vmatpush1.msra.mxu0 0.0
    %2104 = vmatprep.subr.mxu0 0.0
    %2105 = vmatpush1.msra.mxu0 0.0
    %2106 = vmatprep.subr.mxu0 0.0
    %2107 = vmatpush1.msra.mxu0 0.0
    %2108 = vmatprep.subr.mxu0 0.0
    %2109 = vmatpush1.msra.mxu0 0.0
    %2110 = vmatprep.subr.mxu0 0.0
    %2111 = vmatpush1.msra.mxu0 0.0
    %2112 = vmatprep.subr.mxu0 0.0
    %2113 = vmatpush1.msra.mxu0 0.0
    %2114 = vmatprep.subr.mxu0 0.0
    %2115 = vmatpush1.msra.mxu0 0.0
    %2116 = vmatprep.subr.mxu0 0.0
    %2117 = vmatpush1.msra.mxu0 0.0
    %2118 = vmatprep.subr.mxu0 0.0
    %2119 = vmatpush1.msra.mxu0 0.0
    %2120 = vmatprep.subr.mxu0 0.0
    %2121 = vmatpush1.msra.mxu0 0.0
    %2122 = vmatprep.subr.mxu0 0.0
    %2123 = vmatpush1.msra.mxu0 0.0
    %2124 = vmatprep.subr.mxu0 0.0
    %2125 = vmatpush1.msra.mxu0 0.0
    %2126 = vmatprep.subr.mxu0 0.0
    %2127 = vmatpush1.msra.mxu0 0.0
    %2128 = vmatprep.subr.mxu0 0.0
    %2129 = vmatpush1.msra.mxu0 0.0
    %2130 = vmatprep.mubr.f32.mxu0 0.0
    %2131 = vmatmul.mubr.f32.gmra.mrb[0].mxu0 %v2064
    %v2132 = vpop.f32.mrb[0].mxu0
    %v2133 = vadd.f32 %v1552, %v2132
    %v2134 = vpop.f32.mrb[0].mxu0
    %v2135 = vadd.f32 %v1556, %v2134
    %2136 = vdwg.mxu0
    %2137 = vmatprep.subr.mxu0 %v1631
    %2138 = vmatpush1.msra.mxu0 %v1630
    %2139 = vmatprep.subr.mxu0 %v1633
    %2140 = vmatpush1.msra.mxu0 %v1632
    %2141 = vmatprep.subr.mxu0 %v1635
    %2142 = vmatpush1.msra.mxu0 %v1634
    %2143 = vmatprep.subr.mxu0 %v1637
    %2144 = vmatpush1.msra.mxu0 %v1636
    %2145 = vmatprep.subr.mxu0 %v1639
    %2146 = vmatpush1.msra.mxu0 %v1638
    %2147 = vmatprep.subr.mxu0 %v1641
    %2148 = vmatpush1.msra.mxu0 %v1640
    %2149 = vmatprep.subr.mxu0 %v1643
    %2150 = vmatpush1.msra.mxu0 %v1642
    %2151 = vmatprep.subr.mxu0 %v1645
    %2152 = vmatpush1.msra.mxu0 %v1644
    %2153 = vmatprep.subr.mxu0 %v1647
    %2154 = vmatpush1.msra.mxu0 %v1646
    %2155 = vmatprep.subr.mxu0 %v1649
    %2156 = vmatpush1.msra.mxu0 %v1648
    %2157 = vmatprep.subr.mxu0 %v1651
    %2158 = vmatpush1.msra.mxu0 %v1650
    %2159 = vmatprep.subr.mxu0 %v1653
    %2160 = vmatpush1.msra.mxu0 %v1652
    %2161 = vmatprep.subr.mxu0 %v1655
    %2162 = vmatpush1.msra.mxu0 %v1654
    %2163 = vmatprep.subr.mxu0 %v1657
    %2164 = vmatpush1.msra.mxu0 %v1656
    %2165 = vmatprep.subr.mxu0 %v1659
    %2166 = vmatpush1.msra.mxu0 %v1658
    %2167 = vmatprep.subr.mxu0 %v1661
    %2168 = vmatpush1.msra.mxu0 %v1660
    %2169 = vmatprep.subr.mxu0 %v1663
    %2170 = vmatpush1.msra.mxu0 %v1662
    %2171 = vmatprep.subr.mxu0 %v1665
    %2172 = vmatpush1.msra.mxu0 %v1664
    %2173 = vmatprep.subr.mxu0 %v1667
    %2174 = vmatpush1.msra.mxu0 %v1666
    %2175 = vmatprep.subr.mxu0 %v1669
    %2176 = vmatpush1.msra.mxu0 %v1668
    %2177 = vmatprep.subr.mxu0 %v1671
    %2178 = vmatpush1.msra.mxu0 %v1670
    %2179 = vmatprep.subr.mxu0 %v1673
    %2180 = vmatpush1.msra.mxu0 %v1672
    %2181 = vmatprep.subr.mxu0 %v1675
    %2182 = vmatpush1.msra.mxu0 %v1674
    %2183 = vmatprep.subr.mxu0 %v1677
    %2184 = vmatpush1.msra.mxu0 %v1676
    %2185 = vmatprep.subr.mxu0 %v1679
    %2186 = vmatpush1.msra.mxu0 %v1678
    %2187 = vmatprep.subr.mxu0 %v1681
    %2188 = vmatpush1.msra.mxu0 %v1680
    %2189 = vmatprep.subr.mxu0 %v1683
    %2190 = vmatpush1.msra.mxu0 %v1682
    %2191 = vmatprep.subr.mxu0 %v1685
    %2192 = vmatpush1.msra.mxu0 %v1684
    %2193 = vmatprep.subr.mxu0 %v1687
    %2194 = vmatpush1.msra.mxu0 %v1686
    %2195 = vmatprep.subr.mxu0 %v1689
    %2196 = vmatpush1.msra.mxu0 %v1688
    %2197 = vmatprep.subr.mxu0 %v1691
    %2198 = vmatpush1.msra.mxu0 %v1690
    %2199 = vmatprep.subr.mxu0 %v1693
    %2200 = vmatpush1.msra.mxu0 %v1692
    %2201 = vmatprep.mubr.f32.mxu0 %v2135
    %2202 = vmatmul.mubr.f32.gmra.mrb[0].mxu0 %v2133
    %v2203 = vpop.f32.mrb[0].mxu0
    %v2204 = vadd.f32 %v1699, %v2203
    %v2205 = vpop.f32.mrb[0].mxu0
    %v2206 = vadd.f32 %v1703, %v2205
    %2207 = vdwg.mxu0
    %v2208 = vtanh.pop %v2204
    %v2209 = vxor.u32 %v2206, 2147483648
    %v2210 = vmul.f32 %v2209, 1.442695
    %v2211 = vpow.pop %v2210
    %v2212 = vadd.f32 %v2211, 1.0
    %v2213 = vrcp.pop %v2212
    %v2214 = vmul.f32 1.0, %v2213
    %v2215 = vmul.f32 %v2208, %v2214
    %v2217 = vrot.slane %v2215, 6
    %v2218 = vrot.slane %v2217, 2
    %2220 = vmatprep.subr.mxu0 %v1075
    %2221 = vmatpush1.msra.mxu0 %v1074
    %2222 = vmatprep.subr.mxu0 %v1079
    %2223 = vmatpush1.msra.mxu0 %v1078
    %2224 = vmatprep.subr.mxu0 %v1083
    %2225 = vmatpush1.msra.mxu0 %v1082
    %2226 = vmatprep.subr.mxu0 %v1087
    %2227 = vmatpush1.msra.mxu0 %v1086
    %2228 = vmatprep.subr.mxu0 %v1091
    %2229 = vmatpush1.msra.mxu0 %v1090
    %2230 = vmatprep.subr.mxu0 %v1095
    %2231 = vmatpush1.msra.mxu0 %v1094
    %2232 = vmatprep.subr.mxu0 %v1099
    %2233 = vmatpush1.msra.mxu0 %v1098
    %2234 = vmatprep.subr.mxu0 %v1103
    %2235 = vmatpush1.msra.mxu0 %v1102
    %2236 = vmatprep.subr.mxu0 %v1107
    %2237 = vmatpush1.msra.mxu0 %v1106
    %2238 = vmatprep.subr.mxu0 %v1111
    %2239 = vmatpush1.msra.mxu0 %v1110
    %2240 = vmatprep.subr.mxu0 %v1115
    %2241 = vmatpush1.msra.mxu0 %v1114
    %2242 = vmatprep.subr.mxu0 %v1119
    %2243 = vmatpush1.msra.mxu0 %v1118
    %2244 = vmatprep.subr.mxu0 %v1123
    %2245 = vmatpush1.msra.mxu0 %v1122
    %2246 = vmatprep.subr.mxu0 %v1127
    %2247 = vmatpush1.msra.mxu0 %v1126
    %2248 = vmatprep.subr.mxu0 %v1131
    %2249 = vmatpush1.msra.mxu0 %v1130
    %2250 = vmatprep.subr.mxu0 %v1135
    %2251 = vmatpush1.msra.mxu0 %v1134
    %2252 = vmatprep.subr.mxu0 %v1139
    %2253 = vmatpush1.msra.mxu0 %v1138
    %2254 = vmatprep.subr.mxu0 %v1143
    %2255 = vmatpush1.msra.mxu0 %v1142
    %2256 = vmatprep.subr.mxu0 %v1147
    %2257 = vmatpush1.msra.mxu0 %v1146
    %2258 = vmatprep.subr.mxu0 %v1151
    %2259 = vmatpush1.msra.mxu0 %v1150
    %2260 = vmatprep.subr.mxu0 %v1155
    %2261 = vmatpush1.msra.mxu0 %v1154
    %2262 = vmatprep.subr.mxu0 %v1159
    %2263 = vmatpush1.msra.mxu0 %v1158
    %2264 = vmatprep.subr.mxu0 %v1163
    %2265 = vmatpush1.msra.mxu0 %v1162
    %2266 = vmatprep.subr.mxu0 %v1167
    %2267 = vmatpush1.msra.mxu0 %v1166
    %2268 = vmatprep.subr.mxu0 %v1171
    %2269 = vmatpush1.msra.mxu0 %v1170
    %2270 = vmatprep.subr.mxu0 %v1175
    %2271 = vmatpush1.msra.mxu0 %v1174
    %2272 = vmatprep.subr.mxu0 %v1179
    %2273 = vmatpush1.msra.mxu0 %v1178
    %2274 = vmatprep.subr.mxu0 %v1183
    %2275 = vmatpush1.msra.mxu0 %v1182
    %2276 = vmatprep.subr.mxu0 %v1187
    %2277 = vmatpush1.msra.mxu0 %v1186
    %2278 = vmatprep.subr.mxu0 %v1191
    %2279 = vmatpush1.msra.mxu0 %v1190
    %2280 = vmatprep.subr.mxu0 %v1195
    %2281 = vmatpush1.msra.mxu0 %v1194
    %2282 = vmatprep.subr.mxu0 %v1199
    %2283 = vmatpush1.msra.mxu0 %v1198
    %2284 = vmatprep.mubr.f32.mxu0 %v2218
    %2285 = vmatmul.mubr.f32.gmra.mrb[0].mxu0 %v1971
    %v2286 = vpop.f32.mrb[0].mxu0
    %v2287 = vadd.f32 0.0, %v2286
    %v2288 = vpop.f32.mrb[0].mxu0
    %v2289 = vadd.f32 0.0, %v2288
    %2290 = vdwg.mxu0
    %2291 = vmatprep.subr.mxu0 %v1077
    %2292 = vmatpush1.msra.mxu0 %v1076
    %2293 = vmatprep.subr.mxu0 %v1081
    %2294 = vmatpush1.msra.mxu0 %v1080
    %2295 = vmatprep.subr.mxu0 %v1085
    %2296 = vmatpush1.msra.mxu0 %v1084
    %2297 = vmatprep.subr.mxu0 %v1089
    %2298 = vmatpush1.msra.mxu0 %v1088
    %2299 = vmatprep.subr.mxu0 %v1093
    %2300 = vmatpush1.msra.mxu0 %v1092
    %2301 = vmatprep.subr.mxu0 %v1097
    %2302 = vmatpush1.msra.mxu0 %v1096
    %2303 = vmatprep.subr.mxu0 %v1101
    %2304 = vmatpush1.msra.mxu0 %v1100
    %2305 = vmatprep.subr.mxu0 %v1105
    %2306 = vmatpush1.msra.mxu0 %v1104
    %2307 = vmatprep.subr.mxu0 %v1109
    %2308 = vmatpush1.msra.mxu0 %v1108
    %2309 = vmatprep.subr.mxu0 %v1113
    %2310 = vmatpush1.msra.mxu0 %v1112
    %2311 = vmatprep.subr.mxu0 %v1117
    %2312 = vmatpush1.msra.mxu0 %v1116
    %2313 = vmatprep.subr.mxu0 %v1121
    %2314 = vmatpush1.msra.mxu0 %v1120
    %2315 = vmatprep.subr.mxu0 %v1125
    %2316 = vmatpush1.msra.mxu0 %v1124
    %2317 = vmatprep.subr.mxu0 %v1129
    %2318 = vmatpush1.msra.mxu0 %v1128
    %2319 = vmatprep.subr.mxu0 %v1133
    %2320 = vmatpush1.msra.mxu0 %v1132
    %2321 = vmatprep.subr.mxu0 %v1137
    %2322 = vmatpush1.msra.mxu0 %v1136
    %2323 = vmatprep.subr.mxu0 %v1141
    %2324 = vmatpush1.msra.mxu0 %v1140
    %2325 = vmatprep.subr.mxu0 %v1145
    %2326 = vmatpush1.msra.mxu0 %v1144
    %2327 = vmatprep.subr.mxu0 %v1149
    %2328 = vmatpush1.msra.mxu0 %v1148
    %2329 = vmatprep.subr.mxu0 %v1153
    %2330 = vmatpush1.msra.mxu0 %v1152
    %2331 = vmatprep.subr.mxu0 %v1157
    %2332 = vmatpush1.msra.mxu0 %v1156
    %2333 = vmatprep.subr.mxu0 %v1161
    %2334 = vmatpush1.msra.mxu0 %v1160
    %2335 = vmatprep.subr.mxu0 %v1165
    %2336 = vmatpush1.msra.mxu0 %v1164
    %2337 = vmatprep.subr.mxu0 %v1169
    %2338 = vmatpush1.msra.mxu0 %v1168
    %2339 = vmatprep.subr.mxu0 %v1173
    %2340 = vmatpush1.msra.mxu0 %v1172
    %2341 = vmatprep.subr.mxu0 %v1177
    %2342 = vmatpush1.msra.mxu0 %v1176
    %2343 = vmatprep.subr.mxu0 %v1181
    %2344 = vmatpush1.msra.mxu0 %v1180
    %2345 = vmatprep.subr.mxu0 %v1185
    %2346 = vmatpush1.msra.mxu0 %v1184
    %2347 = vmatprep.subr.mxu0 %v1189
    %2348 = vmatpush1.msra.mxu0 %v1188
    %2349 = vmatprep.subr.mxu0 %v1193
    %2350 = vmatpush1.msra.mxu0 %v1192
    %2351 = vmatprep.subr.mxu0 %v1197
    %2352 = vmatpush1.msra.mxu0 %v1196
    %2353 = vmatprep.subr.mxu0 %v1201
    %2354 = vmatpush1.msra.mxu0 %v1200
    %2355 = vmatprep.mubr.f32.mxu0 %v2218
    %2356 = vmatmul.mubr.f32.gmra.mrb[0].mxu0 %v1971
    %v2357 = vpop.f32.mrb[0].mxu0
    %v2358 = vadd.f32 0.0, %v2357
    %v2359 = vpop.f32.mrb[0].mxu0
    %v2360 = vadd.f32 0.0, %v2359
    %2361 = vdwg.mxu0
    %v2366 = vrot.slane %v2287, 4
    %v2367 = vrot.slane %v2289, 4
    %v2368 = vrot.slane %v2358, 4
    %v2369 = vrot.slane %v2360, 4
    %v2374 = vadd.f32 %v1064, %v2366
    %v2375 = vadd.f32 %v1065, %v2367
    %v2376 = vadd.f32 %v1066, %v2368
    %v2377 = vadd.f32 %v1067, %v2369
    %v2378 = vxor.u32 %v2374, 2147483648
    %v2379 = vmul.f32 %v2378, 1.442695
    %v2380 = vpow.pop %v2379
    %v2381 = vadd.f32 %v2380, 1.0
    %v2382 = vrcp.pop %v2381
    %v2383 = vmul.f32 1.0, %v2382
    %v2384 = vxor.u32 %v2375, 2147483648
    %v2385 = vmul.f32 %v2384, 1.442695
    %v2386 = vpow.pop %v2385
    %v2387 = vadd.f32 %v2386, 1.0
    %v2388 = vrcp.pop %v2387
    %v2389 = vmul.f32 1.0, %v2388
    %v2390 = vxor.u32 %v2376, 2147483648
    %v2391 = vmul.f32 %v2390, 1.442695
    %v2392 = vpow.pop %v2391
    %v2393 = vadd.f32 %v2392, 1.0
    %v2394 = vrcp.pop %v2393
    %v2395 = vmul.f32 1.0, %v2394
    %v2396 = vtanh.pop %v2377
    %v2398 = vrot.slane %v1967, 6
    %v2400 = vmul.f32 %v2383, %v2398
    %v2401 = vmul.f32 %v2389, %v2396
    %v2402 = vadd.f32 %v2400, %v2401
    %v2403 = vtanh.pop %v2402
    %v2404 = vmul.f32 %v2403, %v2395
    %v2406 = vrot.slane %v2404, 4
    %2408 = vmatprep.subr.mxu0 %v1373
    %2409 = vmatpush1.msra.mxu0 %v1372
    %2410 = vmatprep.subr.mxu0 %v1375
    %2411 = vmatpush1.msra.mxu0 %v1374
    %2412 = vmatprep.subr.mxu0 %v1377
    %2413 = vmatpush1.msra.mxu0 %v1376
    %2414 = vmatprep.subr.mxu0 %v1379
    %2415 = vmatpush1.msra.mxu0 %v1378
    %2416 = vmatprep.subr.mxu0 %v1381
    %2417 = vmatpush1.msra.mxu0 %v1380
    %2418 = vmatprep.subr.mxu0 %v1383
    %2419 = vmatpush1.msra.mxu0 %v1382
    %2420 = vmatprep.subr.mxu0 %v1385
    %2421 = vmatpush1.msra.mxu0 %v1384
    %2422 = vmatprep.subr.mxu0 %v1387
    %2423 = vmatpush1.msra.mxu0 %v1386
    %2424 = vmatprep.subr.mxu0 %v1389
    %2425 = vmatpush1.msra.mxu0 %v1388
    %2426 = vmatprep.subr.mxu0 %v1391
    %2427 = vmatpush1.msra.mxu0 %v1390
    %2428 = vmatprep.subr.mxu0 %v1393
    %2429 = vmatpush1.msra.mxu0 %v1392
    %2430 = vmatprep.subr.mxu0 %v1395
    %2431 = vmatpush1.msra.mxu0 %v1394
    %2432 = vmatprep.subr.mxu0 %v1397
    %2433 = vmatpush1.msra.mxu0 %v1396
    %2434 = vmatprep.subr.mxu0 %v1399
    %2435 = vmatpush1.msra.mxu0 %v1398
    %2436 = vmatprep.subr.mxu0 %v1401
    %2437 = vmatpush1.msra.mxu0 %v1400
    %2438 = vmatprep.subr.mxu0 %v1403
    %2439 = vmatpush1.msra.mxu0 %v1402
    %2440 = vmatprep.subr.mxu0 0.0
    %2441 = vmatpush1.msra.mxu0 0.0
    %2442 = vmatprep.subr.mxu0 0.0
    %2443 = vmatpush1.msra.mxu0 0.0
    %2444 = vmatprep.subr.mxu0 0.0
    %2445 = vmatpush1.msra.mxu0 0.0
    %2446 = vmatprep.subr.mxu0 0.0
    %2447 = vmatpush1.msra.mxu0 0.0
    %2448 = vmatprep.subr.mxu0 0.0
    %2449 = vmatpush1.msra.mxu0 0.0
    %2450 = vmatprep.subr.mxu0 0.0
    %2451 = vmatpush1.msra.mxu0 0.0
    %2452 = vmatprep.subr.mxu0 0.0
    %2453 = vmatpush1.msra.mxu0 0.0
    %2454 = vmatprep.subr.mxu0 0.0
    %2455 = vmatpush1.msra.mxu0 0.0
    %2456 = vmatprep.subr.mxu0 0.0
    %2457 = vmatpush1.msra.mxu0 0.0
    %2458 = vmatprep.subr.mxu0 0.0
    %2459 = vmatpush1.msra.mxu0 0.0
    %2460 = vmatprep.subr.mxu0 0.0
    %2461 = vmatpush1.msra.mxu0 0.0
    %2462 = vmatprep.subr.mxu0 0.0
    %2463 = vmatpush1.msra.mxu0 0.0
    %2464 = vmatprep.subr.mxu0 0.0
    %2465 = vmatpush1.msra.mxu0 0.0
    %2466 = vmatprep.subr.mxu0 0.0
    %2467 = vmatpush1.msra.mxu0 0.0
    %2468 = vmatprep.subr.mxu0 0.0
    %2469 = vmatpush1.msra.mxu0 0.0
    %2470 = vmatprep.subr.mxu0 0.0
    %2471 = vmatpush1.msra.mxu0 0.0
    %2472 = vmatprep.mubr.f32.mxu0 0.0
    %2473 = vmatmul.mubr.f32.gmra.mrb[0].mxu0 %v2406
    %v2474 = vpop.f32.mrb[0].mxu0
    %v2475 = vadd.f32 %v1409, %v2474
    %v2476 = vpop.f32.mrb[0].mxu0
    %v2477 = vadd.f32 %v1413, %v2476
    %2478 = vdwg.mxu0
    %v2479 = vxor.u32 %v2475, 2147483648
    %v2480 = vxor.u32 %v2477, 2147483648
    %v2481 = vmul.f32 %v2479, 1.442695
    %v2482 = vpow.pop %v2481
    %v2483 = vmul.f32 %v2480, 1.442695
    %v2484 = vpow.pop %v2483
    %v2485 = vadd.f32 %v2482, 1.0
    %v2486 = vadd.f32 %v2484, 1.0
    %v2487 = vrcp.pop %v2485
    %v2488 = vmul.f32 1.0, %v2487
    %v2489 = vrcp.pop %v2486
    %v2490 = vmul.f32 1.0, %v2489
    %v2491 = vmul.f32 %v1503, %v2488
    %v2492 = vmul.f32 %v1510, %v2490
    %v2493 = vadd.f32 %v2491, %v2492
    %v2495 = vrot.slane %v2493, 4
    %v2497 = vmul.f32 %v2404, %v2495
    %v2499 = vrot.slane %v2497, 4
    %2501 = vmatprep.subr.mxu0 %v1516
    %2502 = vmatpush1.msra.mxu0 %v1515
    %2503 = vmatprep.subr.mxu0 %v1518
    %2504 = vmatpush1.msra.mxu0 %v1517
    %2505 = vmatprep.subr.mxu0 %v1520
    %2506 = vmatpush1.msra.mxu0 %v1519
    %2507 = vmatprep.subr.mxu0 %v1522
    %2508 = vmatpush1.msra.mxu0 %v1521
    %2509 = vmatprep.subr.mxu0 %v1524
    %2510 = vmatpush1.msra.mxu0 %v1523
    %2511 = vmatprep.subr.mxu0 %v1526
    %2512 = vmatpush1.msra.mxu0 %v1525
    %2513 = vmatprep.subr.mxu0 %v1528
    %2514 = vmatpush1.msra.mxu0 %v1527
    %2515 = vmatprep.subr.mxu0 %v1530
    %2516 = vmatpush1.msra.mxu0 %v1529
    %2517 = vmatprep.subr.mxu0 %v1532
    %2518 = vmatpush1.msra.mxu0 %v1531
    %2519 = vmatprep.subr.mxu0 %v1534
    %2520 = vmatpush1.msra.mxu0 %v1533
    %2521 = vmatprep.subr.mxu0 %v1536
    %2522 = vmatpush1.msra.mxu0 %v1535
    %2523 = vmatprep.subr.mxu0 %v1538
    %2524 = vmatpush1.msra.mxu0 %v1537
    %2525 = vmatprep.subr.mxu0 %v1540
    %2526 = vmatpush1.msra.mxu0 %v1539
    %2527 = vmatprep.subr.mxu0 %v1542
    %2528 = vmatpush1.msra.mxu0 %v1541
    %2529 = vmatprep.subr.mxu0 %v1544
    %2530 = vmatpush1.msra.mxu0 %v1543
    %2531 = vmatprep.subr.mxu0 %v1546
    %2532 = vmatpush1.msra.mxu0 %v1545
    %2533 = vmatprep.subr.mxu0 0.0
    %2534 = vmatpush1.msra.mxu0 0.0
    %2535 = vmatprep.subr.mxu0 0.0
    %2536 = vmatpush1.msra.mxu0 0.0
    %2537 = vmatprep.subr.mxu0 0.0
    %2538 = vmatpush1.msra.mxu0 0.0
    %2539 = vmatprep.subr.mxu0 0.0
    %2540 = vmatpush1.msra.mxu0 0.0
    %2541 = vmatprep.subr.mxu0 0.0
    %2542 = vmatpush1.msra.mxu0 0.0
    %2543 = vmatprep.subr.mxu0 0.0
    %2544 = vmatpush1.msra.mxu0 0.0
    %2545 = vmatprep.subr.mxu0 0.0
    %2546 = vmatpush1.msra.mxu0 0.0
    %2547 = vmatprep.subr.mxu0 0.0
    %2548 = vmatpush1.msra.mxu0 0.0
    %2549 = vmatprep.subr.mxu0 0.0
    %2550 = vmatpush1.msra.mxu0 0.0
    %2551 = vmatprep.subr.mxu0 0.0
    %2552 = vmatpush1.msra.mxu0 0.0
    %2553 = vmatprep.subr.mxu0 0.0
    %2554 = vmatpush1.msra.mxu0 0.0
    %2555 = vmatprep.subr.mxu0 0.0
    %2556 = vmatpush1.msra.mxu0 0.0
    %2557 = vmatprep.subr.mxu0 0.0
    %2558 = vmatpush1.msra.mxu0 0.0
    %2559 = vmatprep.subr.mxu0 0.0
    %2560 = vmatpush1.msra.mxu0 0.0
    %2561 = vmatprep.subr.mxu0 0.0
    %2562 = vmatpush1.msra.mxu0 0.0
    %2563 = vmatprep.subr.mxu0 0.0
    %2564 = vmatpush1.msra.mxu0 0.0
    %2565 = vmatprep.mubr.f32.mxu0 0.0
    %2566 = vmatmul.mubr.f32.gmra.mrb[0].mxu0 %v2499
    %v2567 = vpop.f32.mrb[0].mxu0
    %v2568 = vadd.f32 %v1552, %v2567
    %v2569 = vpop.f32.mrb[0].mxu0
    %v2570 = vadd.f32 %v1556, %v2569
    %2571 = vdwg.mxu0
    %2572 = vmatprep.subr.mxu0 %v1631
    %2573 = vmatpush1.msra.mxu0 %v1630
    %2574 = vmatprep.subr.mxu0 %v1633
    %2575 = vmatpush1.msra.mxu0 %v1632
    %2576 = vmatprep.subr.mxu0 %v1635
    %2577 = vmatpush1.msra.mxu0 %v1634
    %2578 = vmatprep.subr.mxu0 %v1637
    %2579 = vmatpush1.msra.mxu0 %v1636
    %2580 = vmatprep.subr.mxu0 %v1639
    %2581 = vmatpush1.msra.mxu0 %v1638
    %2582 = vmatprep.subr.mxu0 %v1641
    %2583 = vmatpush1.msra.mxu0 %v1640
    %2584 = vmatprep.subr.mxu0 %v1643
    %2585 = vmatpush1.msra.mxu0 %v1642
    %2586 = vmatprep.subr.mxu0 %v1645
    %2587 = vmatpush1.msra.mxu0 %v1644
    %2588 = vmatprep.subr.mxu0 %v1647
    %2589 = vmatpush1.msra.mxu0 %v1646
    %2590 = vmatprep.subr.mxu0 %v1649
    %2591 = vmatpush1.msra.mxu0 %v1648
    %2592 = vmatprep.subr.mxu0 %v1651
    %2593 = vmatpush1.msra.mxu0 %v1650
    %2594 = vmatprep.subr.mxu0 %v1653
    %2595 = vmatpush1.msra.mxu0 %v1652
    %2596 = vmatprep.subr.mxu0 %v1655
    %2597 = vmatpush1.msra.mxu0 %v1654
    %2598 = vmatprep.subr.mxu0 %v1657
    %2599 = vmatpush1.msra.mxu0 %v1656
    %2600 = vmatprep.subr.mxu0 %v1659
    %2601 = vmatpush1.msra.mxu0 %v1658
    %2602 = vmatprep.subr.mxu0 %v1661
    %2603 = vmatpush1.msra.mxu0 %v1660
    %2604 = vmatprep.subr.mxu0 %v1663
    %2605 = vmatpush1.msra.mxu0 %v1662
    %2606 = vmatprep.subr.mxu0 %v1665
    %2607 = vmatpush1.msra.mxu0 %v1664
    %2608 = vmatprep.subr.mxu0 %v1667
    %2609 = vmatpush1.msra.mxu0 %v1666
    %2610 = vmatprep.subr.mxu0 %v1669
    %2611 = vmatpush1.msra.mxu0 %v1668
    %2612 = vmatprep.subr.mxu0 %v1671
    %2613 = vmatpush1.msra.mxu0 %v1670
    %2614 = vmatprep.subr.mxu0 %v1673
    %2615 = vmatpush1.msra.mxu0 %v1672
    %2616 = vmatprep.subr.mxu0 %v1675
    %2617 = vmatpush1.msra.mxu0 %v1674
    %2618 = vmatprep.subr.mxu0 %v1677
    %2619 = vmatpush1.msra.mxu0 %v1676
    %2620 = vmatprep.subr.mxu0 %v1679
    %2621 = vmatpush1.msra.mxu0 %v1678
    %2622 = vmatprep.subr.mxu0 %v1681
    %2623 = vmatpush1.msra.mxu0 %v1680
    %2624 = vmatprep.subr.mxu0 %v1683
    %2625 = vmatpush1.msra.mxu0 %v1682
    %2626 = vmatprep.subr.mxu0 %v1685
    %2627 = vmatpush1.msra.mxu0 %v1684
    %2628 = vmatprep.subr.mxu0 %v1687
    %2629 = vmatpush1.msra.mxu0 %v1686
    %2630 = vmatprep.subr.mxu0 %v1689
    %2631 = vmatpush1.msra.mxu0 %v1688
    %2632 = vmatprep.subr.mxu0 %v1691
    %2633 = vmatpush1.msra.mxu0 %v1690
    %2634 = vmatprep.subr.mxu0 %v1693
    %2635 = vmatpush1.msra.mxu0 %v1692
    %2636 = vmatprep.mubr.f32.mxu0 %v2570
    %2637 = vmatmul.mubr.f32.gmra.mrb[0].mxu0 %v2568
    %v2638 = vpop.f32.mrb[0].mxu0
    %v2639 = vadd.f32 %v1699, %v2638
    %v2640 = vpop.f32.mrb[0].mxu0
    %v2641 = vadd.f32 %v1703, %v2640
    %2642 = vdwg.mxu0
    %v2643 = vtanh.pop %v2639
    %v2644 = vxor.u32 %v2641, 2147483648
    %v2645 = vmul.f32 %v2644, 1.442695
    %v2646 = vpow.pop %v2645
    %v2647 = vadd.f32 %v2646, 1.0
    %v2648 = vrcp.pop %v2647
    %v2649 = vmul.f32 1.0, %v2648
    %v2650 = vmul.f32 %v2643, %v2649
    %v2652 = vrot.slane %v2650, 4
    %v2653 = vrot.slane %v2652, 4
    %2655 = vmatprep.subr.mxu0 %v1075
    %2656 = vmatpush1.msra.mxu0 %v1074
    %2657 = vmatprep.subr.mxu0 %v1079
    %2658 = vmatpush1.msra.mxu0 %v1078
    %2659 = vmatprep.subr.mxu0 %v1083
    %2660 = vmatpush1.msra.mxu0 %v1082
    %2661 = vmatprep.subr.mxu0 %v1087
    %2662 = vmatpush1.msra.mxu0 %v1086
    %2663 = vmatprep.subr.mxu0 %v1091
    %2664 = vmatpush1.msra.mxu0 %v1090
    %2665 = vmatprep.subr.mxu0 %v1095
    %2666 = vmatpush1.msra.mxu0 %v1094
    %2667 = vmatprep.subr.mxu0 %v1099
    %2668 = vmatpush1.msra.mxu0 %v1098
    %2669 = vmatprep.subr.mxu0 %v1103
    %2670 = vmatpush1.msra.mxu0 %v1102
    %2671 = vmatprep.subr.mxu0 %v1107
    %2672 = vmatpush1.msra.mxu0 %v1106
    %2673 = vmatprep.subr.mxu0 %v1111
    %2674 = vmatpush1.msra.mxu0 %v1110
    %2675 = vmatprep.subr.mxu0 %v1115
    %2676 = vmatpush1.msra.mxu0 %v1114
    %2677 = vmatprep.subr.mxu0 %v1119
    %2678 = vmatpush1.msra.mxu0 %v1118
    %2679 = vmatprep.subr.mxu0 %v1123
    %2680 = vmatpush1.msra.mxu0 %v1122
    %2681 = vmatprep.subr.mxu0 %v1127
    %2682 = vmatpush1.msra.mxu0 %v1126
    %2683 = vmatprep.subr.mxu0 %v1131
    %2684 = vmatpush1.msra.mxu0 %v1130
    %2685 = vmatprep.subr.mxu0 %v1135
    %2686 = vmatpush1.msra.mxu0 %v1134
    %2687 = vmatprep.subr.mxu0 %v1139
    %2688 = vmatpush1.msra.mxu0 %v1138
    %2689 = vmatprep.subr.mxu0 %v1143
    %2690 = vmatpush1.msra.mxu0 %v1142
    %2691 = vmatprep.subr.mxu0 %v1147
    %2692 = vmatpush1.msra.mxu0 %v1146
    %2693 = vmatprep.subr.mxu0 %v1151
    %2694 = vmatpush1.msra.mxu0 %v1150
    %2695 = vmatprep.subr.mxu0 %v1155
    %2696 = vmatpush1.msra.mxu0 %v1154
    %2697 = vmatprep.subr.mxu0 %v1159
    %2698 = vmatpush1.msra.mxu0 %v1158
    %2699 = vmatprep.subr.mxu0 %v1163
    %2700 = vmatpush1.msra.mxu0 %v1162
    %2701 = vmatprep.subr.mxu0 %v1167
    %2702 = vmatpush1.msra.mxu0 %v1166
    %2703 = vmatprep.subr.mxu0 %v1171
    %2704 = vmatpush1.msra.mxu0 %v1170
    %2705 = vmatprep.subr.mxu0 %v1175
    %2706 = vmatpush1.msra.mxu0 %v1174
    %2707 = vmatprep.subr.mxu0 %v1179
    %2708 = vmatpush1.msra.mxu0 %v1178
    %2709 = vmatprep.subr.mxu0 %v1183
    %2710 = vmatpush1.msra.mxu0 %v1182
    %2711 = vmatprep.subr.mxu0 %v1187
    %2712 = vmatpush1.msra.mxu0 %v1186
    %2713 = vmatprep.subr.mxu0 %v1191
    %2714 = vmatpush1.msra.mxu0 %v1190
    %2715 = vmatprep.subr.mxu0 %v1195
    %2716 = vmatpush1.msra.mxu0 %v1194
    %2717 = vmatprep.subr.mxu0 %v1199
    %2718 = vmatpush1.msra.mxu0 %v1198
    %2719 = vmatprep.mubr.f32.mxu0 %v2653
    %2720 = vmatmul.mubr.f32.gmra.mrb[0].mxu0 %v2406
    %v2721 = vpop.f32.mrb[0].mxu0
    %v2722 = vadd.f32 0.0, %v2721
    %v2723 = vpop.f32.mrb[0].mxu0
    %v2724 = vadd.f32 0.0, %v2723
    %2725 = vdwg.mxu0
    %2726 = vmatprep.subr.mxu0 %v1077
    %2727 = vmatpush1.msra.mxu0 %v1076
    %2728 = vmatprep.subr.mxu0 %v1081
    %2729 = vmatpush1.msra.mxu0 %v1080
    %2730 = vmatprep.subr.mxu0 %v1085
    %2731 = vmatpush1.msra.mxu0 %v1084
    %2732 = vmatprep.subr.mxu0 %v1089
    %2733 = vmatpush1.msra.mxu0 %v1088
    %2734 = vmatprep.subr.mxu0 %v1093
    %2735 = vmatpush1.msra.mxu0 %v1092
    %2736 = vmatprep.subr.mxu0 %v1097
    %2737 = vmatpush1.msra.mxu0 %v1096
    %2738 = vmatprep.subr.mxu0 %v1101
    %2739 = vmatpush1.msra.mxu0 %v1100
    %2740 = vmatprep.subr.mxu0 %v1105
    %2741 = vmatpush1.msra.mxu0 %v1104
    %2742 = vmatprep.subr.mxu0 %v1109
    %2743 = vmatpush1.msra.mxu0 %v1108
    %2744 = vmatprep.subr.mxu0 %v1113
    %2745 = vmatpush1.msra.mxu0 %v1112
    %2746 = vmatprep.subr.mxu0 %v1117
    %2747 = vmatpush1.msra.mxu0 %v1116
    %2748 = vmatprep.subr.mxu0 %v1121
    %2749 = vmatpush1.msra.mxu0 %v1120
    %2750 = vmatprep.subr.mxu0 %v1125
    %2751 = vmatpush1.msra.mxu0 %v1124
    %2752 = vmatprep.subr.mxu0 %v1129
    %2753 = vmatpush1.msra.mxu0 %v1128
    %2754 = vmatprep.subr.mxu0 %v1133
    %2755 = vmatpush1.msra.mxu0 %v1132
    %2756 = vmatprep.subr.mxu0 %v1137
    %2757 = vmatpush1.msra.mxu0 %v1136
    %2758 = vmatprep.subr.mxu0 %v1141
    %2759 = vmatpush1.msra.mxu0 %v1140
    %2760 = vmatprep.subr.mxu0 %v1145
    %2761 = vmatpush1.msra.mxu0 %v1144
    %2762 = vmatprep.subr.mxu0 %v1149
    %2763 = vmatpush1.msra.mxu0 %v1148
    %2764 = vmatprep.subr.mxu0 %v1153
    %2765 = vmatpush1.msra.mxu0 %v1152
    %2766 = vmatprep.subr.mxu0 %v1157
    %2767 = vmatpush1.msra.mxu0 %v1156
    %2768 = vmatprep.subr.mxu0 %v1161
    %2769 = vmatpush1.msra.mxu0 %v1160
    %2770 = vmatprep.subr.mxu0 %v1165
    %2771 = vmatpush1.msra.mxu0 %v1164
    %2772 = vmatprep.subr.mxu0 %v1169
    %2773 = vmatpush1.msra.mxu0 %v1168
    %2774 = vmatprep.subr.mxu0 %v1173
    %2775 = vmatpush1.msra.mxu0 %v1172
    %2776 = vmatprep.subr.mxu0 %v1177
    %2777 = vmatpush1.msra.mxu0 %v1176
    %2778 = vmatprep.subr.mxu0 %v1181
    %2779 = vmatpush1.msra.mxu0 %v1180
    %2780 = vmatprep.subr.mxu0 %v1185
    %2781 = vmatpush1.msra.mxu0 %v1184
    %2782 = vmatprep.subr.mxu0 %v1189
    %2783 = vmatpush1.msra.mxu0 %v1188
    %2784 = vmatprep.subr.mxu0 %v1193
    %2785 = vmatpush1.msra.mxu0 %v1192
    %2786 = vmatprep.subr.mxu0 %v1197
    %2787 = vmatpush1.msra.mxu0 %v1196
    %2788 = vmatprep.subr.mxu0 %v1201
    %2789 = vmatpush1.msra.mxu0 %v1200
    %2790 = vmatprep.mubr.f32.mxu0 %v2653
    %2791 = vmatmul.mubr.f32.gmra.mrb[0].mxu0 %v2406
    %v2792 = vpop.f32.mrb[0].mxu0
    %v2793 = vadd.f32 0.0, %v2792
    %v2794 = vpop.f32.mrb[0].mxu0
    %v2795 = vadd.f32 0.0, %v2794
    %2796 = vdwg.mxu0
    %v2801 = vrot.slane %v2722, 2
    %v2802 = vrot.slane %v2724, 2
    %v2803 = vrot.slane %v2793, 2
    %v2804 = vrot.slane %v2795, 2
    %v2809 = vadd.f32 %v1064, %v2801
    %v2810 = vadd.f32 %v1065, %v2802
    %v2811 = vadd.f32 %v1066, %v2803
    %v2812 = vadd.f32 %v1067, %v2804
    %v2813 = vxor.u32 %v2809, 2147483648
    %v2814 = vmul.f32 %v2813, 1.442695
    %v2815 = vpow.pop %v2814
    %v2816 = vadd.f32 %v2815, 1.0
    %v2817 = vrcp.pop %v2816
    %v2818 = vmul.f32 1.0, %v2817
    %v2819 = vxor.u32 %v2810, 2147483648
    %v2820 = vmul.f32 %v2819, 1.442695
    %v2821 = vpow.pop %v2820
    %v2822 = vadd.f32 %v2821, 1.0
    %v2823 = vrcp.pop %v2822
    %v2824 = vmul.f32 1.0, %v2823
    %v2825 = vxor.u32 %v2811, 2147483648
    %v2826 = vmul.f32 %v2825, 1.442695
    %v2827 = vpow.pop %v2826
    %v2828 = vadd.f32 %v2827, 1.0
    %v2829 = vrcp.pop %v2828
    %v2830 = vmul.f32 1.0, %v2829
    %v2831 = vtanh.pop %v2812
    %v2833 = vrot.slane %v2402, 6
    %v2835 = vmul.f32 %v2818, %v2833
    %v2836 = vmul.f32 %v2824, %v2831
    %v2837 = vadd.f32 %v2835, %v2836
    %v2838 = vtanh.pop %v2837
    %v2839 = vmul.f32 %v2838, %v2830
    %v2841 = vrot.slane %v2839, 6
    %2843 = vmatprep.subr.mxu0 %v1373
    %2844 = vmatpush1.msra.mxu0 %v1372
    %2845 = vmatprep.subr.mxu0 %v1375
    %2846 = vmatpush1.msra.mxu0 %v1374
    %2847 = vmatprep.subr.mxu0 %v1377
    %2848 = vmatpush1.msra.mxu0 %v1376
    %2849 = vmatprep.subr.mxu0 %v1379
    %2850 = vmatpush1.msra.mxu0 %v1378
    %2851 = vmatprep.subr.mxu0 %v1381
    %2852 = vmatpush1.msra.mxu0 %v1380
    %2853 = vmatprep.subr.mxu0 %v1383
    %2854 = vmatpush1.msra.mxu0 %v1382
    %2855 = vmatprep.subr.mxu0 %v1385
    %2856 = vmatpush1.msra.mxu0 %v1384
    %2857 = vmatprep.subr.mxu0 %v1387
    %2858 = vmatpush1.msra.mxu0 %v1386
    %2859 = vmatprep.subr.mxu0 %v1389
    %2860 = vmatpush1.msra.mxu0 %v1388
    %2861 = vmatprep.subr.mxu0 %v1391
    %2862 = vmatpush1.msra.mxu0 %v1390
    %2863 = vmatprep.subr.mxu0 %v1393
    %2864 = vmatpush1.msra.mxu0 %v1392
    %2865 = vmatprep.subr.mxu0 %v1395
    %2866 = vmatpush1.msra.mxu0 %v1394
    %2867 = vmatprep.subr.mxu0 %v1397
    %2868 = vmatpush1.msra.mxu0 %v1396
    %2869 = vmatprep.subr.mxu0 %v1399
    %2870 = vmatpush1.msra.mxu0 %v1398
    %2871 = vmatprep.subr.mxu0 %v1401
    %2872 = vmatpush1.msra.mxu0 %v1400
    %2873 = vmatprep.subr.mxu0 %v1403
    %2874 = vmatpush1.msra.mxu0 %v1402
    %2875 = vmatprep.subr.mxu0 0.0
    %2876 = vmatpush1.msra.mxu0 0.0
    %2877 = vmatprep.subr.mxu0 0.0
    %2878 = vmatpush1.msra.mxu0 0.0
    %2879 = vmatprep.subr.mxu0 0.0
    %2880 = vmatpush1.msra.mxu0 0.0
    %2881 = vmatprep.subr.mxu0 0.0
    %2882 = vmatpush1.msra.mxu0 0.0
    %2883 = vmatprep.subr.mxu0 0.0
    %2884 = vmatpush1.msra.mxu0 0.0
    %2885 = vmatprep.subr.mxu0 0.0
    %2886 = vmatpush1.msra.mxu0 0.0
    %2887 = vmatprep.subr.mxu0 0.0
    %2888 = vmatpush1.msra.mxu0 0.0
    %2889 = vmatprep.subr.mxu0 0.0
    %2890 = vmatpush1.msra.mxu0 0.0
    %2891 = vmatprep.subr.mxu0 0.0
    %2892 = vmatpush1.msra.mxu0 0.0
    %2893 = vmatprep.subr.mxu0 0.0
    %2894 = vmatpush1.msra.mxu0 0.0
    %2895 = vmatprep.subr.mxu0 0.0
    %2896 = vmatpush1.msra.mxu0 0.0
    %2897 = vmatprep.subr.mxu0 0.0
    %2898 = vmatpush1.msra.mxu0 0.0
    %2899 = vmatprep.subr.mxu0 0.0
    %2900 = vmatpush1.msra.mxu0 0.0
    %2901 = vmatprep.subr.mxu0 0.0
    %2902 = vmatpush1.msra.mxu0 0.0
    %2903 = vmatprep.subr.mxu0 0.0
    %2904 = vmatpush1.msra.mxu0 0.0
    %2905 = vmatprep.subr.mxu0 0.0
    %2906 = vmatpush1.msra.mxu0 0.0
    %2907 = vmatprep.mubr.f32.mxu0 0.0
    %2908 = vmatmul.mubr.f32.gmra.mrb[0].mxu0 %v2841
    %v2909 = vpop.f32.mrb[0].mxu0
    %v2910 = vadd.f32 %v1409, %v2909
    %v2911 = vpop.f32.mrb[0].mxu0
    %v2912 = vadd.f32 %v1413, %v2911
    %2913 = vdwg.mxu0
    %v2914 = vxor.u32 %v2910, 2147483648
    %v2915 = vxor.u32 %v2912, 2147483648
    %v2916 = vmul.f32 %v2914, 1.442695
    %v2917 = vpow.pop %v2916
    %v2918 = vmul.f32 %v2915, 1.442695
    %v2919 = vpow.pop %v2918
    %v2920 = vadd.f32 %v2917, 1.0
    %v2921 = vadd.f32 %v2919, 1.0
    %v2922 = vrcp.pop %v2920
    %v2923 = vmul.f32 1.0, %v2922
    %v2924 = vrcp.pop %v2921
    %v2925 = vmul.f32 1.0, %v2924
    %v2926 = vmul.f32 %v1503, %v2923
    %v2927 = vmul.f32 %v1510, %v2925
    %v2928 = vadd.f32 %v2926, %v2927
    %v2930 = vrot.slane %v2928, 2
    %v2932 = vmul.f32 %v2839, %v2930
    %v2934 = vrot.slane %v2932, 6
    %2936 = vmatprep.subr.mxu0 %v1516
    %2937 = vmatpush1.msra.mxu0 %v1515
    %2938 = vmatprep.subr.mxu0 %v1518
    %2939 = vmatpush1.msra.mxu0 %v1517
    %2940 = vmatprep.subr.mxu0 %v1520
    %2941 = vmatpush1.msra.mxu0 %v1519
    %2942 = vmatprep.subr.mxu0 %v1522
    %2943 = vmatpush1.msra.mxu0 %v1521
    %2944 = vmatprep.subr.mxu0 %v1524
    %2945 = vmatpush1.msra.mxu0 %v1523
    %2946 = vmatprep.subr.mxu0 %v1526
    %2947 = vmatpush1.msra.mxu0 %v1525
    %2948 = vmatprep.subr.mxu0 %v1528
    %2949 = vmatpush1.msra.mxu0 %v1527
    %2950 = vmatprep.subr.mxu0 %v1530
    %2951 = vmatpush1.msra.mxu0 %v1529
    %2952 = vmatprep.subr.mxu0 %v1532
    %2953 = vmatpush1.msra.mxu0 %v1531
    %2954 = vmatprep.subr.mxu0 %v1534
    %2955 = vmatpush1.msra.mxu0 %v1533
    %2956 = vmatprep.subr.mxu0 %v1536
    %2957 = vmatpush1.msra.mxu0 %v1535
    %2958 = vmatprep.subr.mxu0 %v1538
    %2959 = vmatpush1.msra.mxu0 %v1537
    %2960 = vmatprep.subr.mxu0 %v1540
    %2961 = vmatpush1.msra.mxu0 %v1539
    %2962 = vmatprep.subr.mxu0 %v1542
    %2963 = vmatpush1.msra.mxu0 %v1541
    %2964 = vmatprep.subr.mxu0 %v1544
    %2965 = vmatpush1.msra.mxu0 %v1543
    %2966 = vmatprep.subr.mxu0 %v1546
    %2967 = vmatpush1.msra.mxu0 %v1545
    %2968 = vmatprep.subr.mxu0 0.0
    %2969 = vmatpush1.msra.mxu0 0.0
    %2970 = vmatprep.subr.mxu0 0.0
    %2971 = vmatpush1.msra.mxu0 0.0
    %2972 = vmatprep.subr.mxu0 0.0
    %2973 = vmatpush1.msra.mxu0 0.0
    %2974 = vmatprep.subr.mxu0 0.0
    %2975 = vmatpush1.msra.mxu0 0.0
    %2976 = vmatprep.subr.mxu0 0.0
    %2977 = vmatpush1.msra.mxu0 0.0
    %2978 = vmatprep.subr.mxu0 0.0
    %2979 = vmatpush1.msra.mxu0 0.0
    %2980 = vmatprep.subr.mxu0 0.0
    %2981 = vmatpush1.msra.mxu0 0.0
    %2982 = vmatprep.subr.mxu0 0.0
    %2983 = vmatpush1.msra.mxu0 0.0
    %2984 = vmatprep.subr.mxu0 0.0
    %2985 = vmatpush1.msra.mxu0 0.0
    %2986 = vmatprep.subr.mxu0 0.0
    %2987 = vmatpush1.msra.mxu0 0.0
    %2988 = vmatprep.subr.mxu0 0.0
    %2989 = vmatpush1.msra.mxu0 0.0
    %2990 = vmatprep.subr.mxu0 0.0
    %2991 = vmatpush1.msra.mxu0 0.0
    %2992 = vmatprep.subr.mxu0 0.0
    %2993 = vmatpush1.msra.mxu0 0.0
    %2994 = vmatprep.subr.mxu0 0.0
    %2995 = vmatpush1.msra.mxu0 0.0
    %2996 = vmatprep.subr.mxu0 0.0
    %2997 = vmatpush1.msra.mxu0 0.0
    %2998 = vmatprep.subr.mxu0 0.0
    %2999 = vmatpush1.msra.mxu0 0.0
    %3000 = vmatprep.mubr.f32.mxu0 0.0
    %3001 = vmatmul.mubr.f32.gmra.mrb[0].mxu0 %v2934
    %v3002 = vpop.f32.mrb[0].mxu0
    %v3003 = vadd.f32 %v1552, %v3002
    %v3004 = vpop.f32.mrb[0].mxu0
    %v3005 = vadd.f32 %v1556, %v3004
    %3006 = vdwg.mxu0
    %3007 = vmatprep.subr.mxu0 %v1631
    %3008 = vmatpush1.msra.mxu0 %v1630
    %3009 = vmatprep.subr.mxu0 %v1633
    %3010 = vmatpush1.msra.mxu0 %v1632
    %3011 = vmatprep.subr.mxu0 %v1635
    %3012 = vmatpush1.msra.mxu0 %v1634
    %3013 = vmatprep.subr.mxu0 %v1637
    %3014 = vmatpush1.msra.mxu0 %v1636
    %3015 = vmatprep.subr.mxu0 %v1639
    %3016 = vmatpush1.msra.mxu0 %v1638
    %3017 = vmatprep.subr.mxu0 %v1641
    %3018 = vmatpush1.msra.mxu0 %v1640
    %3019 = vmatprep.subr.mxu0 %v1643
    %3020 = vmatpush1.msra.mxu0 %v1642
    %3021 = vmatprep.subr.mxu0 %v1645
    %3022 = vmatpush1.msra.mxu0 %v1644
    %3023 = vmatprep.subr.mxu0 %v1647
    %3024 = vmatpush1.msra.mxu0 %v1646
    %3025 = vmatprep.subr.mxu0 %v1649
    %3026 = vmatpush1.msra.mxu0 %v1648
    %3027 = vmatprep.subr.mxu0 %v1651
    %3028 = vmatpush1.msra.mxu0 %v1650
    %3029 = vmatprep.subr.mxu0 %v1653
    %3030 = vmatpush1.msra.mxu0 %v1652
    %3031 = vmatprep.subr.mxu0 %v1655
    %3032 = vmatpush1.msra.mxu0 %v1654
    %3033 = vmatprep.subr.mxu0 %v1657
    %3034 = vmatpush1.msra.mxu0 %v1656
    %3035 = vmatprep.subr.mxu0 %v1659
    %3036 = vmatpush1.msra.mxu0 %v1658
    %3037 = vmatprep.subr.mxu0 %v1661
    %3038 = vmatpush1.msra.mxu0 %v1660
    %3039 = vmatprep.subr.mxu0 %v1663
    %3040 = vmatpush1.msra.mxu0 %v1662
    %3041 = vmatprep.subr.mxu0 %v1665
    %3042 = vmatpush1.msra.mxu0 %v1664
    %3043 = vmatprep.subr.mxu0 %v1667
    %3044 = vmatpush1.msra.mxu0 %v1666
    %3045 = vmatprep.subr.mxu0 %v1669
    %3046 = vmatpush1.msra.mxu0 %v1668
    %3047 = vmatprep.subr.mxu0 %v1671
    %3048 = vmatpush1.msra.mxu0 %v1670
    %3049 = vmatprep.subr.mxu0 %v1673
    %3050 = vmatpush1.msra.mxu0 %v1672
    %3051 = vmatprep.subr.mxu0 %v1675
    %3052 = vmatpush1.msra.mxu0 %v1674
    %3053 = vmatprep.subr.mxu0 %v1677
    %3054 = vmatpush1.msra.mxu0 %v1676
    %3055 = vmatprep.subr.mxu0 %v1679
    %3056 = vmatpush1.msra.mxu0 %v1678
    %3057 = vmatprep.subr.mxu0 %v1681
    %3058 = vmatpush1.msra.mxu0 %v1680
    %3059 = vmatprep.subr.mxu0 %v1683
    %3060 = vmatpush1.msra.mxu0 %v1682
    %3061 = vmatprep.subr.mxu0 %v1685
    %3062 = vmatpush1.msra.mxu0 %v1684
    %3063 = vmatprep.subr.mxu0 %v1687
    %3064 = vmatpush1.msra.mxu0 %v1686
    %3065 = vmatprep.subr.mxu0 %v1689
    %3066 = vmatpush1.msra.mxu0 %v1688
    %3067 = vmatprep.subr.mxu0 %v1691
    %3068 = vmatpush1.msra.mxu0 %v1690
    %3069 = vmatprep.subr.mxu0 %v1693
    %3070 = vmatpush1.msra.mxu0 %v1692
    %3071 = vmatprep.mubr.f32.mxu0 %v3005
    %3072 = vmatmul.mubr.f32.gmra.mrb[0].mxu0 %v3003
    %v3073 = vpop.f32.mrb[0].mxu0
    %v3074 = vadd.f32 %v1699, %v3073
    %v3075 = vpop.f32.mrb[0].mxu0
    %v3076 = vadd.f32 %v1703, %v3075
    %3077 = vdwg.mxu0
    %v3078 = vtanh.pop %v3074
    %v3079 = vxor.u32 %v3076, 2147483648
    %v3080 = vmul.f32 %v3079, 1.442695
    %v3081 = vpow.pop %v3080
    %v3082 = vadd.f32 %v3081, 1.0
    %v3083 = vrcp.pop %v3082
    %v3084 = vmul.f32 1.0, %v3083
    %v3085 = vmul.f32 %v3078, %v3084
    %v3087 = vrot.slane %v3085, 2
    %v3088 = vrot.slane %v3087, 6
    %3090 = vmatprep.subr.mxu0 %v1075
    %3091 = vmatpush1.msra.mxu0 %v1074
    %3092 = vmatprep.subr.mxu0 %v1079
    %3093 = vmatpush1.msra.mxu0 %v1078
    %3094 = vmatprep.subr.mxu0 %v1083
    %3095 = vmatpush1.msra.mxu0 %v1082
    %3096 = vmatprep.subr.mxu0 %v1087
    %3097 = vmatpush1.msra.mxu0 %v1086
    %3098 = vmatprep.subr.mxu0 %v1091
    %3099 = vmatpush1.msra.mxu0 %v1090
    %3100 = vmatprep.subr.mxu0 %v1095
    %3101 = vmatpush1.msra.mxu0 %v1094
    %3102 = vmatprep.subr.mxu0 %v1099
    %3103 = vmatpush1.msra.mxu0 %v1098
    %3104 = vmatprep.subr.mxu0 %v1103
    %3105 = vmatpush1.msra.mxu0 %v1102
    %3106 = vmatprep.subr.mxu0 %v1107
    %3107 = vmatpush1.msra.mxu0 %v1106
    %3108 = vmatprep.subr.mxu0 %v1111
    %3109 = vmatpush1.msra.mxu0 %v1110
    %3110 = vmatprep.subr.mxu0 %v1115
    %3111 = vmatpush1.msra.mxu0 %v1114
    %3112 = vmatprep.subr.mxu0 %v1119
    %3113 = vmatpush1.msra.mxu0 %v1118
    %3114 = vmatprep.subr.mxu0 %v1123
    %3115 = vmatpush1.msra.mxu0 %v1122
    %3116 = vmatprep.subr.mxu0 %v1127
    %3117 = vmatpush1.msra.mxu0 %v1126
    %3118 = vmatprep.subr.mxu0 %v1131
    %3119 = vmatpush1.msra.mxu0 %v1130
    %3120 = vmatprep.subr.mxu0 %v1135
    %3121 = vmatpush1.msra.mxu0 %v1134
    %3122 = vmatprep.subr.mxu0 %v1139
    %3123 = vmatpush1.msra.mxu0 %v1138
    %3124 = vmatprep.subr.mxu0 %v1143
    %3125 = vmatpush1.msra.mxu0 %v1142
    %3126 = vmatprep.subr.mxu0 %v1147
    %3127 = vmatpush1.msra.mxu0 %v1146
    %3128 = vmatprep.subr.mxu0 %v1151
    %3129 = vmatpush1.msra.mxu0 %v1150
    %3130 = vmatprep.subr.mxu0 %v1155
    %3131 = vmatpush1.msra.mxu0 %v1154
    %3132 = vmatprep.subr.mxu0 %v1159
    %3133 = vmatpush1.msra.mxu0 %v1158
    %3134 = vmatprep.subr.mxu0 %v1163
    %3135 = vmatpush1.msra.mxu0 %v1162
    %3136 = vmatprep.subr.mxu0 %v1167
    %3137 = vmatpush1.msra.mxu0 %v1166
    %3138 = vmatprep.subr.mxu0 %v1171
    %3139 = vmatpush1.msra.mxu0 %v1170
    %3140 = vmatprep.subr.mxu0 %v1175
    %3141 = vmatpush1.msra.mxu0 %v1174
    %3142 = vmatprep.subr.mxu0 %v1179
    %3143 = vmatpush1.msra.mxu0 %v1178
    %3144 = vmatprep.subr.mxu0 %v1183
    %3145 = vmatpush1.msra.mxu0 %v1182
    %3146 = vmatprep.subr.mxu0 %v1187
    %3147 = vmatpush1.msra.mxu0 %v1186
    %3148 = vmatprep.subr.mxu0 %v1191
    %3149 = vmatpush1.msra.mxu0 %v1190
    %3150 = vmatprep.subr.mxu0 %v1195
    %3151 = vmatpush1.msra.mxu0 %v1194
    %3152 = vmatprep.subr.mxu0 %v1199
    %3153 = vmatpush1.msra.mxu0 %v1198
    %3154 = vmatprep.mubr.f32.mxu0 %v3088
    %3155 = vmatmul.mubr.f32.gmra.mrb[0].mxu0 %v2841
    %v3156 = vpop.f32.mrb[0].mxu0
    %v3157 = vadd.f32 0.0, %v3156
    %v3158 = vpop.f32.mrb[0].mxu0
    %v3159 = vadd.f32 0.0, %v3158
    %3160 = vdwg.mxu0
    %3161 = vmatprep.subr.mxu0 %v1077
    %3162 = vmatpush1.msra.mxu0 %v1076
    %3163 = vmatprep.subr.mxu0 %v1081
    %3164 = vmatpush1.msra.mxu0 %v1080
    %3165 = vmatprep.subr.mxu0 %v1085
    %3166 = vmatpush1.msra.mxu0 %v1084
    %3167 = vmatprep.subr.mxu0 %v1089
    %3168 = vmatpush1.msra.mxu0 %v1088
    %3169 = vmatprep.subr.mxu0 %v1093
    %3170 = vmatpush1.msra.mxu0 %v1092
    %3171 = vmatprep.subr.mxu0 %v1097
    %3172 = vmatpush1.msra.mxu0 %v1096
    %3173 = vmatprep.subr.mxu0 %v1101
    %3174 = vmatpush1.msra.mxu0 %v1100
    %3175 = vmatprep.subr.mxu0 %v1105
    %3176 = vmatpush1.msra.mxu0 %v1104
    %3177 = vmatprep.subr.mxu0 %v1109
    %3178 = vmatpush1.msra.mxu0 %v1108
    %3179 = vmatprep.subr.mxu0 %v1113
    %3180 = vmatpush1.msra.mxu0 %v1112
    %3181 = vmatprep.subr.mxu0 %v1117
    %3182 = vmatpush1.msra.mxu0 %v1116
    %3183 = vmatprep.subr.mxu0 %v1121
    %3184 = vmatpush1.msra.mxu0 %v1120
    %3185 = vmatprep.subr.mxu0 %v1125
    %3186 = vmatpush1.msra.mxu0 %v1124
    %3187 = vmatprep.subr.mxu0 %v1129
    %3188 = vmatpush1.msra.mxu0 %v1128
    %3189 = vmatprep.subr.mxu0 %v1133
    %3190 = vmatpush1.msra.mxu0 %v1132
    %3191 = vmatprep.subr.mxu0 %v1137
    %3192 = vmatpush1.msra.mxu0 %v1136
    %3193 = vmatprep.subr.mxu0 %v1141
    %3194 = vmatpush1.msra.mxu0 %v1140
    %3195 = vmatprep.subr.mxu0 %v1145
    %3196 = vmatpush1.msra.mxu0 %v1144
    %3197 = vmatprep.subr.mxu0 %v1149
    %3198 = vmatpush1.msra.mxu0 %v1148
    %3199 = vmatprep.subr.mxu0 %v1153
    %3200 = vmatpush1.msra.mxu0 %v1152
    %3201 = vmatprep.subr.mxu0 %v1157
    %3202 = vmatpush1.msra.mxu0 %v1156
    %3203 = vmatprep.subr.mxu0 %v1161
    %3204 = vmatpush1.msra.mxu0 %v1160
    %3205 = vmatprep.subr.mxu0 %v1165
    %3206 = vmatpush1.msra.mxu0 %v1164
    %3207 = vmatprep.subr.mxu0 %v1169
    %3208 = vmatpush1.msra.mxu0 %v1168
    %3209 = vmatprep.subr.mxu0 %v1173
    %3210 = vmatpush1.msra.mxu0 %v1172
    %3211 = vmatprep.subr.mxu0 %v1177
    %3212 = vmatpush1.msra.mxu0 %v1176
    %3213 = vmatprep.subr.mxu0 %v1181
    %3214 = vmatpush1.msra.mxu0 %v1180
    %3215 = vmatprep.subr.mxu0 %v1185
    %3216 = vmatpush1.msra.mxu0 %v1184
    %3217 = vmatprep.subr.mxu0 %v1189
    %3218 = vmatpush1.msra.mxu0 %v1188
    %3219 = vmatprep.subr.mxu0 %v1193
    %3220 = vmatpush1.msra.mxu0 %v1192
    %3221 = vmatprep.subr.mxu0 %v1197
    %3222 = vmatpush1.msra.mxu0 %v1196
    %3223 = vmatprep.subr.mxu0 %v1201
    %3224 = vmatpush1.msra.mxu0 %v1200
    %3225 = vmatprep.mubr.f32.mxu0 %v3088
    %3226 = vmatmul.mubr.f32.gmra.mrb[0].mxu0 %v2841
    %v3227 = vpop.f32.mrb[0].mxu0
    %v3228 = vadd.f32 0.0, %v3227
    %v3229 = vpop.f32.mrb[0].mxu0
    %v3230 = vadd.f32 0.0, %v3229
    %3231 = vdwg.mxu0
    %v3232 = vadd.f32 %v1068, %v3157
    %v3233 = vadd.f32 %v1069, %v3159
    %v3234 = vadd.f32 %v1070, %v3228
    %v3235 = vadd.f32 %v1071, %v3230
    %v3236 = vxor.u32 %v3232, 2147483648
    %v3237 = vmul.f32 %v3236, 1.442695
    %v3238 = vpow.pop %v3237
    %v3239 = vadd.f32 %v3238, 1.0
    %v3240 = vrcp.pop %v3239
    %v3241 = vmul.f32 1.0, %v3240
    %v3242 = vxor.u32 %v3233, 2147483648
    %v3243 = vmul.f32 %v3242, 1.442695
    %v3244 = vpow.pop %v3243
    %v3245 = vadd.f32 %v3244, 1.0
    %v3246 = vrcp.pop %v3245
    %v3247 = vmul.f32 1.0, %v3246
    %v3248 = vxor.u32 %v3234, 2147483648
    %v3249 = vmul.f32 %v3248, 1.442695
    %v3250 = vpow.pop %v3249
    %v3251 = vadd.f32 %v3250, 1.0
    %v3252 = vrcp.pop %v3251
    %v3253 = vmul.f32 1.0, %v3252
    %v3254 = vtanh.pop %v3235
    %v3256 = vrot.slane %v2837, 6
    %v3258 = vmul.f32 %v3241, %v3256
    %v3259 = vmul.f32 %v3247, %v3254
    %v3260 = vadd.f32 %v3258, %v3259
    %v3261 = vtanh.pop %v3260
    %v3262 = vmul.f32 %v3261, %v3253
    %3263 = vmatprep.subr.mxu0 %v1373
    %3264 = vmatpush1.msra.mxu0 %v1372
    %3265 = vmatprep.subr.mxu0 %v1375
    %3266 = vmatpush1.msra.mxu0 %v1374
    %3267 = vmatprep.subr.mxu0 %v1377
    %3268 = vmatpush1.msra.mxu0 %v1376
    %3269 = vmatprep.subr.mxu0 %v1379
    %3270 = vmatpush1.msra.mxu0 %v1378
    %3271 = vmatprep.subr.mxu0 %v1381
    %3272 = vmatpush1.msra.mxu0 %v1380
    %3273 = vmatprep.subr.mxu0 %v1383
    %3274 = vmatpush1.msra.mxu0 %v1382
    %3275 = vmatprep.subr.mxu0 %v1385
    %3276 = vmatpush1.msra.mxu0 %v1384
    %3277 = vmatprep.subr.mxu0 %v1387
    %3278 = vmatpush1.msra.mxu0 %v1386
    %3279 = vmatprep.subr.mxu0 %v1389
    %3280 = vmatpush1.msra.mxu0 %v1388
    %3281 = vmatprep.subr.mxu0 %v1391
    %3282 = vmatpush1.msra.mxu0 %v1390
    %3283 = vmatprep.subr.mxu0 %v1393
    %3284 = vmatpush1.msra.mxu0 %v1392
    %3285 = vmatprep.subr.mxu0 %v1395
    %3286 = vmatpush1.msra.mxu0 %v1394
    %3287 = vmatprep.subr.mxu0 %v1397
    %3288 = vmatpush1.msra.mxu0 %v1396
    %3289 = vmatprep.subr.mxu0 %v1399
    %3290 = vmatpush1.msra.mxu0 %v1398
    %3291 = vmatprep.subr.mxu0 %v1401
    %3292 = vmatpush1.msra.mxu0 %v1400
    %3293 = vmatprep.subr.mxu0 %v1403
    %3294 = vmatpush1.msra.mxu0 %v1402
    %3295 = vmatprep.subr.mxu0 0.0
    %3296 = vmatpush1.msra.mxu0 0.0
    %3297 = vmatprep.subr.mxu0 0.0
    %3298 = vmatpush1.msra.mxu0 0.0
    %3299 = vmatprep.subr.mxu0 0.0
    %3300 = vmatpush1.msra.mxu0 0.0
    %3301 = vmatprep.subr.mxu0 0.0
    %3302 = vmatpush1.msra.mxu0 0.0
    %3303 = vmatprep.subr.mxu0 0.0
    %3304 = vmatpush1.msra.mxu0 0.0
    %3305 = vmatprep.subr.mxu0 0.0
    %3306 = vmatpush1.msra.mxu0 0.0
    %3307 = vmatprep.subr.mxu0 0.0
    %3308 = vmatpush1.msra.mxu0 0.0
    %3309 = vmatprep.subr.mxu0 0.0
    %3310 = vmatpush1.msra.mxu0 0.0
    %3311 = vmatprep.subr.mxu0 0.0
    %3312 = vmatpush1.msra.mxu0 0.0
    %3313 = vmatprep.subr.mxu0 0.0
    %3314 = vmatpush1.msra.mxu0 0.0
    %3315 = vmatprep.subr.mxu0 0.0
    %3316 = vmatpush1.msra.mxu0 0.0
    %3317 = vmatprep.subr.mxu0 0.0
    %3318 = vmatpush1.msra.mxu0 0.0
    %3319 = vmatprep.subr.mxu0 0.0
    %3320 = vmatpush1.msra.mxu0 0.0
    %3321 = vmatprep.subr.mxu0 0.0
    %3322 = vmatpush1.msra.mxu0 0.0
    %3323 = vmatprep.subr.mxu0 0.0
    %3324 = vmatpush1.msra.mxu0 0.0
    %3325 = vmatprep.subr.mxu0 0.0
    %3326 = vmatpush1.msra.mxu0 0.0
    %3327 = vmatprep.mubr.f32.mxu0 0.0
    %3328 = vmatmul.mubr.f32.gmra.mrb[0].mxu0 %v3262
    %v3329 = vpop.f32.mrb[0].mxu0
    %v3330 = vadd.f32 %v1409, %v3329
    %v3331 = vpop.f32.mrb[0].mxu0
    %v3332 = vadd.f32 %v1413, %v3331
    %3333 = vdwg.mxu0
    %v3334 = vxor.u32 %v3330, 2147483648
    %v3335 = vxor.u32 %v3332, 2147483648
    %v3336 = vmul.f32 %v3334, 1.442695
    %v3337 = vpow.pop %v3336
    %v3338 = vmul.f32 %v3335, 1.442695
    %v3339 = vpow.pop %v3338
    %v3340 = vadd.f32 %v3337, 1.0
    %v3341 = vadd.f32 %v3339, 1.0
    %v3342 = vrcp.pop %v3340
    %v3343 = vmul.f32 1.0, %v3342
    %v3344 = vrcp.pop %v3341
    %v3345 = vmul.f32 1.0, %v3344
    %v3346 = vmul.f32 %v1503, %v3343
    %v3347 = vmul.f32 %v1510, %v3345
    %v3348 = vadd.f32 %v3346, %v3347
    %v3349 = vmul.f32 %v3262, %v3348
    %3350 = vmatprep.subr.mxu0 %v1516
    %3351 = vmatpush1.msra.mxu0 %v1515
    %3352 = vmatprep.subr.mxu0 %v1518
    %3353 = vmatpush1.msra.mxu0 %v1517
    %3354 = vmatprep.subr.mxu0 %v1520
    %3355 = vmatpush1.msra.mxu0 %v1519
    %3356 = vmatprep.subr.mxu0 %v1522
    %3357 = vmatpush1.msra.mxu0 %v1521
    %3358 = vmatprep.subr.mxu0 %v1524
    %3359 = vmatpush1.msra.mxu0 %v1523
    %3360 = vmatprep.subr.mxu0 %v1526
    %3361 = vmatpush1.msra.mxu0 %v1525
    %3362 = vmatprep.subr.mxu0 %v1528
    %3363 = vmatpush1.msra.mxu0 %v1527
    %3364 = vmatprep.subr.mxu0 %v1530
    %3365 = vmatpush1.msra.mxu0 %v1529
    %3366 = vmatprep.subr.mxu0 %v1532
    %3367 = vmatpush1.msra.mxu0 %v1531
    %3368 = vmatprep.subr.mxu0 %v1534
    %3369 = vmatpush1.msra.mxu0 %v1533
    %3370 = vmatprep.subr.mxu0 %v1536
    %3371 = vmatpush1.msra.mxu0 %v1535
    %3372 = vmatprep.subr.mxu0 %v1538
    %3373 = vmatpush1.msra.mxu0 %v1537
    %3374 = vmatprep.subr.mxu0 %v1540
    %3375 = vmatpush1.msra.mxu0 %v1539
    %3376 = vmatprep.subr.mxu0 %v1542
    %3377 = vmatpush1.msra.mxu0 %v1541
    %3378 = vmatprep.subr.mxu0 %v1544
    %3379 = vmatpush1.msra.mxu0 %v1543
    %3380 = vmatprep.subr.mxu0 %v1546
    %3381 = vmatpush1.msra.mxu0 %v1545
    %3382 = vmatprep.subr.mxu0 0.0
    %3383 = vmatpush1.msra.mxu0 0.0
    %3384 = vmatprep.subr.mxu0 0.0
    %3385 = vmatpush1.msra.mxu0 0.0
    %3386 = vmatprep.subr.mxu0 0.0
    %3387 = vmatpush1.msra.mxu0 0.0
    %3388 = vmatprep.subr.mxu0 0.0
    %3389 = vmatpush1.msra.mxu0 0.0
    %3390 = vmatprep.subr.mxu0 0.0
    %3391 = vmatpush1.msra.mxu0 0.0
    %3392 = vmatprep.subr.mxu0 0.0
    %3393 = vmatpush1.msra.mxu0 0.0
    %3394 = vmatprep.subr.mxu0 0.0
    %3395 = vmatpush1.msra.mxu0 0.0
    %3396 = vmatprep.subr.mxu0 0.0
    %3397 = vmatpush1.msra.mxu0 0.0
    %3398 = vmatprep.subr.mxu0 0.0
    %3399 = vmatpush1.msra.mxu0 0.0
    %3400 = vmatprep.subr.mxu0 0.0
    %3401 = vmatpush1.msra.mxu0 0.0
    %3402 = vmatprep.subr.mxu0 0.0
    %3403 = vmatpush1.msra.mxu0 0.0
    %3404 = vmatprep.subr.mxu0 0.0
    %3405 = vmatpush1.msra.mxu0 0.0
    %3406 = vmatprep.subr.mxu0 0.0
    %3407 = vmatpush1.msra.mxu0 0.0
    %3408 = vmatprep.subr.mxu0 0.0
    %3409 = vmatpush1.msra.mxu0 0.0
    %3410 = vmatprep.subr.mxu0 0.0
    %3411 = vmatpush1.msra.mxu0 0.0
    %3412 = vmatprep.subr.mxu0 0.0
    %3413 = vmatpush1.msra.mxu0 0.0
    %3414 = vmatprep.mubr.f32.mxu0 0.0
    %3415 = vmatmul.mubr.f32.gmra.mrb[0].mxu0 %v3349
    %v3416 = vpop.f32.mrb[0].mxu0
    %v3417 = vadd.f32 %v1552, %v3416
    %v3418 = vpop.f32.mrb[0].mxu0
    %v3419 = vadd.f32 %v1556, %v3418
    %3420 = vdwg.mxu0
    %3421 = vmatprep.subr.mxu0 %v1631
    %3422 = vmatpush1.msra.mxu0 %v1630
    %3423 = vmatprep.subr.mxu0 %v1633
    %3424 = vmatpush1.msra.mxu0 %v1632
    %3425 = vmatprep.subr.mxu0 %v1635
    %3426 = vmatpush1.msra.mxu0 %v1634
    %3427 = vmatprep.subr.mxu0 %v1637
    %3428 = vmatpush1.msra.mxu0 %v1636
    %3429 = vmatprep.subr.mxu0 %v1639
    %3430 = vmatpush1.msra.mxu0 %v1638
    %3431 = vmatprep.subr.mxu0 %v1641
    %3432 = vmatpush1.msra.mxu0 %v1640
    %3433 = vmatprep.subr.mxu0 %v1643
    %3434 = vmatpush1.msra.mxu0 %v1642
    %3435 = vmatprep.subr.mxu0 %v1645
    %3436 = vmatpush1.msra.mxu0 %v1644
    %3437 = vmatprep.subr.mxu0 %v1647
    %3438 = vmatpush1.msra.mxu0 %v1646
    %3439 = vmatprep.subr.mxu0 %v1649
    %3440 = vmatpush1.msra.mxu0 %v1648
    %3441 = vmatprep.subr.mxu0 %v1651
    %3442 = vmatpush1.msra.mxu0 %v1650
    %3443 = vmatprep.subr.mxu0 %v1653
    %3444 = vmatpush1.msra.mxu0 %v1652
    %3445 = vmatprep.subr.mxu0 %v1655
    %3446 = vmatpush1.msra.mxu0 %v1654
    %3447 = vmatprep.subr.mxu0 %v1657
    %3448 = vmatpush1.msra.mxu0 %v1656
    %3449 = vmatprep.subr.mxu0 %v1659
    %3450 = vmatpush1.msra.mxu0 %v1658
    %3451 = vmatprep.subr.mxu0 %v1661
    %3452 = vmatpush1.msra.mxu0 %v1660
    %3453 = vmatprep.subr.mxu0 %v1663
    %3454 = vmatpush1.msra.mxu0 %v1662
    %3455 = vmatprep.subr.mxu0 %v1665
    %3456 = vmatpush1.msra.mxu0 %v1664
    %3457 = vmatprep.subr.mxu0 %v1667
    %3458 = vmatpush1.msra.mxu0 %v1666
    %3459 = vmatprep.subr.mxu0 %v1669
    %3460 = vmatpush1.msra.mxu0 %v1668
    %3461 = vmatprep.subr.mxu0 %v1671
    %3462 = vmatpush1.msra.mxu0 %v1670
    %3463 = vmatprep.subr.mxu0 %v1673
    %3464 = vmatpush1.msra.mxu0 %v1672
    %3465 = vmatprep.subr.mxu0 %v1675
    %3466 = vmatpush1.msra.mxu0 %v1674
    %3467 = vmatprep.subr.mxu0 %v1677
    %3468 = vmatpush1.msra.mxu0 %v1676
    %3469 = vmatprep.subr.mxu0 %v1679
    %3470 = vmatpush1.msra.mxu0 %v1678
    %3471 = vmatprep.subr.mxu0 %v1681
    %3472 = vmatpush1.msra.mxu0 %v1680
    %3473 = vmatprep.subr.mxu0 %v1683
    %3474 = vmatpush1.msra.mxu0 %v1682
    %3475 = vmatprep.subr.mxu0 %v1685
    %3476 = vmatpush1.msra.mxu0 %v1684
    %3477 = vmatprep.subr.mxu0 %v1687
    %3478 = vmatpush1.msra.mxu0 %v1686
    %3479 = vmatprep.subr.mxu0 %v1689
    %3480 = vmatpush1.msra.mxu0 %v1688
    %3481 = vmatprep.subr.mxu0 %v1691
    %3482 = vmatpush1.msra.mxu0 %v1690
    %3483 = vmatprep.subr.mxu0 %v1693
    %3484 = vmatpush1.msra.mxu0 %v1692
    %3485 = vmatprep.mubr.f32.mxu0 %v3419
    %3486 = vmatmul.mubr.f32.gmra.mrb[0].mxu0 %v3417
    %v3487 = vpop.f32.mrb[0].mxu0
    %v3488 = vadd.f32 %v1699, %v3487
    %v3489 = vpop.f32.mrb[0].mxu0
    %v3490 = vadd.f32 %v1703, %v3489
    %3491 = vdwg.mxu0
    %v3492 = vtanh.pop %v3488
    %v3493 = vxor.u32 %v3490, 2147483648
    %v3494 = vmul.f32 %v3493, 1.442695
    %v3495 = vpow.pop %v3494
    %v3496 = vadd.f32 %v3495, 1.0
    %v3497 = vrcp.pop %v3496
    %v3498 = vmul.f32 1.0, %v3497
    %v3499 = vmul.f32 %v3492, %v3498
    %3500 = vmatprep.subr.mxu0 %v1075
    %3501 = vmatpush1.msra.mxu0 %v1074
    %3502 = vmatprep.subr.mxu0 %v1079
    %3503 = vmatpush1.msra.mxu0 %v1078
    %3504 = vmatprep.subr.mxu0 %v1083
    %3505 = vmatpush1.msra.mxu0 %v1082
    %3506 = vmatprep.subr.mxu0 %v1087
    %3507 = vmatpush1.msra.mxu0 %v1086
    %3508 = vmatprep.subr.mxu0 %v1091
    %3509 = vmatpush1.msra.mxu0 %v1090
    %3510 = vmatprep.subr.mxu0 %v1095
    %3511 = vmatpush1.msra.mxu0 %v1094
    %3512 = vmatprep.subr.mxu0 %v1099
    %3513 = vmatpush1.msra.mxu0 %v1098
    %3514 = vmatprep.subr.mxu0 %v1103
    %3515 = vmatpush1.msra.mxu0 %v1102
    %3516 = vmatprep.subr.mxu0 %v1107
    %3517 = vmatpush1.msra.mxu0 %v1106
    %3518 = vmatprep.subr.mxu0 %v1111
    %3519 = vmatpush1.msra.mxu0 %v1110
    %3520 = vmatprep.subr.mxu0 %v1115
    %3521 = vmatpush1.msra.mxu0 %v1114
    %3522 = vmatprep.subr.mxu0 %v1119
    %3523 = vmatpush1.msra.mxu0 %v1118
    %3524 = vmatprep.subr.mxu0 %v1123
    %3525 = vmatpush1.msra.mxu0 %v1122
    %3526 = vmatprep.subr.mxu0 %v1127
    %3527 = vmatpush1.msra.mxu0 %v1126
    %3528 = vmatprep.subr.mxu0 %v1131
    %3529 = vmatpush1.msra.mxu0 %v1130
    %3530 = vmatprep.subr.mxu0 %v1135
    %3531 = vmatpush1.msra.mxu0 %v1134
    %3532 = vmatprep.subr.mxu0 %v1139
    %3533 = vmatpush1.msra.mxu0 %v1138
    %3534 = vmatprep.subr.mxu0 %v1143
    %3535 = vmatpush1.msra.mxu0 %v1142
    %3536 = vmatprep.subr.mxu0 %v1147
    %3537 = vmatpush1.msra.mxu0 %v1146
    %3538 = vmatprep.subr.mxu0 %v1151
    %3539 = vmatpush1.msra.mxu0 %v1150
    %3540 = vmatprep.subr.mxu0 %v1155
    %3541 = vmatpush1.msra.mxu0 %v1154
    %3542 = vmatprep.subr.mxu0 %v1159
    %3543 = vmatpush1.msra.mxu0 %v1158
    %3544 = vmatprep.subr.mxu0 %v1163
    %3545 = vmatpush1.msra.mxu0 %v1162
    %3546 = vmatprep.subr.mxu0 %v1167
    %3547 = vmatpush1.msra.mxu0 %v1166
    %3548 = vmatprep.subr.mxu0 %v1171
    %3549 = vmatpush1.msra.mxu0 %v1170
    %3550 = vmatprep.subr.mxu0 %v1175
    %3551 = vmatpush1.msra.mxu0 %v1174
    %3552 = vmatprep.subr.mxu0 %v1179
    %3553 = vmatpush1.msra.mxu0 %v1178
    %3554 = vmatprep.subr.mxu0 %v1183
    %3555 = vmatpush1.msra.mxu0 %v1182
    %3556 = vmatprep.subr.mxu0 %v1187
    %3557 = vmatpush1.msra.mxu0 %v1186
    %3558 = vmatprep.subr.mxu0 %v1191
    %3559 = vmatpush1.msra.mxu0 %v1190
    %3560 = vmatprep.subr.mxu0 %v1195
    %3561 = vmatpush1.msra.mxu0 %v1194
    %3562 = vmatprep.subr.mxu0 %v1199
    %3563 = vmatpush1.msra.mxu0 %v1198
    %3564 = vmatprep.mubr.f32.mxu0 %v3499
    %3565 = vmatmul.mubr.f32.gmra.mrb[0].mxu0 %v3262
    %v3566 = vpop.f32.mrb[0].mxu0
    %v3567 = vadd.f32 0.0, %v3566
    %v3568 = vpop.f32.mrb[0].mxu0
    %v3569 = vadd.f32 0.0, %v3568
    %3570 = vdwg.mxu0
    %3571 = vmatprep.subr.mxu0 %v1077
    %3572 = vmatpush1.msra.mxu0 %v1076
    %3573 = vmatprep.subr.mxu0 %v1081
    %3574 = vmatpush1.msra.mxu0 %v1080
    %3575 = vmatprep.subr.mxu0 %v1085
    %3576 = vmatpush1.msra.mxu0 %v1084
    %3577 = vmatprep.subr.mxu0 %v1089
    %3578 = vmatpush1.msra.mxu0 %v1088
    %3579 = vmatprep.subr.mxu0 %v1093
    %3580 = vmatpush1.msra.mxu0 %v1092
    %3581 = vmatprep.subr.mxu0 %v1097
    %3582 = vmatpush1.msra.mxu0 %v1096
    %3583 = vmatprep.subr.mxu0 %v1101
    %3584 = vmatpush1.msra.mxu0 %v1100
    %3585 = vmatprep.subr.mxu0 %v1105
    %3586 = vmatpush1.msra.mxu0 %v1104
    %3587 = vmatprep.subr.mxu0 %v1109
    %3588 = vmatpush1.msra.mxu0 %v1108
    %3589 = vmatprep.subr.mxu0 %v1113
    %3590 = vmatpush1.msra.mxu0 %v1112
    %3591 = vmatprep.subr.mxu0 %v1117
    %3592 = vmatpush1.msra.mxu0 %v1116
    %3593 = vmatprep.subr.mxu0 %v1121
    %3594 = vmatpush1.msra.mxu0 %v1120
    %3595 = vmatprep.subr.mxu0 %v1125
    %3596 = vmatpush1.msra.mxu0 %v1124
    %3597 = vmatprep.subr.mxu0 %v1129
    %3598 = vmatpush1.msra.mxu0 %v1128
    %3599 = vmatprep.subr.mxu0 %v1133
    %3600 = vmatpush1.msra.mxu0 %v1132
    %3601 = vmatprep.subr.mxu0 %v1137
    %3602 = vmatpush1.msra.mxu0 %v1136
    %3603 = vmatprep.subr.mxu0 %v1141
    %3604 = vmatpush1.msra.mxu0 %v1140
    %3605 = vmatprep.subr.mxu0 %v1145
    %3606 = vmatpush1.msra.mxu0 %v1144
    %3607 = vmatprep.subr.mxu0 %v1149
    %3608 = vmatpush1.msra.mxu0 %v1148
    %3609 = vmatprep.subr.mxu0 %v1153
    %3610 = vmatpush1.msra.mxu0 %v1152
    %3611 = vmatprep.subr.mxu0 %v1157
    %3612 = vmatpush1.msra.mxu0 %v1156
    %3613 = vmatprep.subr.mxu0 %v1161
    %3614 = vmatpush1.msra.mxu0 %v1160
    %3615 = vmatprep.subr.mxu0 %v1165
    %3616 = vmatpush1.msra.mxu0 %v1164
    %3617 = vmatprep.subr.mxu0 %v1169
    %3618 = vmatpush1.msra.mxu0 %v1168
    %3619 = vmatprep.subr.mxu0 %v1173
    %3620 = vmatpush1.msra.mxu0 %v1172
    %3621 = vmatprep.subr.mxu0 %v1177
    %3622 = vmatpush1.msra.mxu0 %v1176
    %3623 = vmatprep.subr.mxu0 %v1181
    %3624 = vmatpush1.msra.mxu0 %v1180
    %3625 = vmatprep.subr.mxu0 %v1185
    %3626 = vmatpush1.msra.mxu0 %v1184
    %3627 = vmatprep.subr.mxu0 %v1189
    %3628 = vmatpush1.msra.mxu0 %v1188
    %3629 = vmatprep.subr.mxu0 %v1193
    %3630 = vmatpush1.msra.mxu0 %v1192
    %3631 = vmatprep.subr.mxu0 %v1197
    %3632 = vmatpush1.msra.mxu0 %v1196
    %3633 = vmatprep.subr.mxu0 %v1201
    %3634 = vmatpush1.msra.mxu0 %v1200
    %3635 = vmatprep.mubr.f32.mxu0 %v3499
    %3636 = vmatmul.mubr.f32.gmra.mrb[0].mxu0 %v3262
    %v3637 = vpop.f32.mrb[0].mxu0
    %v3638 = vadd.f32 0.0, %v3637
    %v3639 = vpop.f32.mrb[0].mxu0
    %v3640 = vadd.f32 0.0, %v3639
    %3641 = vdwg.mxu0
    %v3646 = vrot.slane %v3567, 6
    %v3647 = vrot.slane %v3569, 6
    %v3648 = vrot.slane %v3638, 6
    %v3649 = vrot.slane %v3640, 6
    %v3654 = vadd.f32 %v1068, %v3646
    %v3655 = vadd.f32 %v1069, %v3647
    %v3656 = vadd.f32 %v1070, %v3648
    %v3657 = vadd.f32 %v1071, %v3649
    %v3658 = vxor.u32 %v3654, 2147483648
    %v3659 = vmul.f32 %v3658, 1.442695
    %v3660 = vpow.pop %v3659
    %v3661 = vadd.f32 %v3660, 1.0
    %v3662 = vrcp.pop %v3661
    %v3663 = vmul.f32 1.0, %v3662
    %v3664 = vxor.u32 %v3655, 2147483648
    %v3665 = vmul.f32 %v3664, 1.442695
    %v3666 = vpow.pop %v3665
    %v3667 = vadd.f32 %v3666, 1.0
    %v3668 = vrcp.pop %v3667
    %v3669 = vmul.f32 1.0, %v3668
    %v3670 = vxor.u32 %v3656, 2147483648
    %v3671 = vmul.f32 %v3670, 1.442695
    %v3672 = vpow.pop %v3671
    %v3673 = vadd.f32 %v3672, 1.0
    %v3674 = vrcp.pop %v3673
    %v3675 = vmul.f32 1.0, %v3674
    %v3676 = vtanh.pop %v3657
    %v3678 = vrot.slane %v3260, 6
    %v3680 = vmul.f32 %v3663, %v3678
    %v3681 = vmul.f32 %v3669, %v3676
    %v3682 = vadd.f32 %v3680, %v3681
    %v3683 = vtanh.pop %v3682
    %v3684 = vmul.f32 %v3683, %v3675
    %v3686 = vrot.slane %v3684, 2
    %3688 = vmatprep.subr.mxu0 %v1373
    %3689 = vmatpush1.msra.mxu0 %v1372
    %3690 = vmatprep.subr.mxu0 %v1375
    %3691 = vmatpush1.msra.mxu0 %v1374
    %3692 = vmatprep.subr.mxu0 %v1377
    %3693 = vmatpush1.msra.mxu0 %v1376
    %3694 = vmatprep.subr.mxu0 %v1379
    %3695 = vmatpush1.msra.mxu0 %v1378
    %3696 = vmatprep.subr.mxu0 %v1381
    %3697 = vmatpush1.msra.mxu0 %v1380
    %3698 = vmatprep.subr.mxu0 %v1383
    %3699 = vmatpush1.msra.mxu0 %v1382
    %3700 = vmatprep.subr.mxu0 %v1385
    %3701 = vmatpush1.msra.mxu0 %v1384
    %3702 = vmatprep.subr.mxu0 %v1387
    %3703 = vmatpush1.msra.mxu0 %v1386
    %3704 = vmatprep.subr.mxu0 %v1389
    %3705 = vmatpush1.msra.mxu0 %v1388
    %3706 = vmatprep.subr.mxu0 %v1391
    %3707 = vmatpush1.msra.mxu0 %v1390
    %3708 = vmatprep.subr.mxu0 %v1393
    %3709 = vmatpush1.msra.mxu0 %v1392
    %3710 = vmatprep.subr.mxu0 %v1395
    %3711 = vmatpush1.msra.mxu0 %v1394
    %3712 = vmatprep.subr.mxu0 %v1397
    %3713 = vmatpush1.msra.mxu0 %v1396
    %3714 = vmatprep.subr.mxu0 %v1399
    %3715 = vmatpush1.msra.mxu0 %v1398
    %3716 = vmatprep.subr.mxu0 %v1401
    %3717 = vmatpush1.msra.mxu0 %v1400
    %3718 = vmatprep.subr.mxu0 %v1403
    %3719 = vmatpush1.msra.mxu0 %v1402
    %3720 = vmatprep.subr.mxu0 0.0
    %3721 = vmatpush1.msra.mxu0 0.0
    %3722 = vmatprep.subr.mxu0 0.0
    %3723 = vmatpush1.msra.mxu0 0.0
    %3724 = vmatprep.subr.mxu0 0.0
    %3725 = vmatpush1.msra.mxu0 0.0
    %3726 = vmatprep.subr.mxu0 0.0
    %3727 = vmatpush1.msra.mxu0 0.0
    %3728 = vmatprep.subr.mxu0 0.0
    %3729 = vmatpush1.msra.mxu0 0.0
    %3730 = vmatprep.subr.mxu0 0.0
    %3731 = vmatpush1.msra.mxu0 0.0
    %3732 = vmatprep.subr.mxu0 0.0
    %3733 = vmatpush1.msra.mxu0 0.0
    %3734 = vmatprep.subr.mxu0 0.0
    %3735 = vmatpush1.msra.mxu0 0.0
    %3736 = vmatprep.subr.mxu0 0.0
    %3737 = vmatpush1.msra.mxu0 0.0
    %3738 = vmatprep.subr.mxu0 0.0
    %3739 = vmatpush1.msra.mxu0 0.0
    %3740 = vmatprep.subr.mxu0 0.0
    %3741 = vmatpush1.msra.mxu0 0.0
    %3742 = vmatprep.subr.mxu0 0.0
    %3743 = vmatpush1.msra.mxu0 0.0
    %3744 = vmatprep.subr.mxu0 0.0
    %3745 = vmatpush1.msra.mxu0 0.0
    %3746 = vmatprep.subr.mxu0 0.0
    %3747 = vmatpush1.msra.mxu0 0.0
    %3748 = vmatprep.subr.mxu0 0.0
    %3749 = vmatpush1.msra.mxu0 0.0
    %3750 = vmatprep.subr.mxu0 0.0
    %3751 = vmatpush1.msra.mxu0 0.0
    %3752 = vmatprep.mubr.f32.mxu0 0.0
    %3753 = vmatmul.mubr.f32.gmra.mrb[0].mxu0 %v3686
    %v3754 = vpop.f32.mrb[0].mxu0
    %v3755 = vadd.f32 %v1409, %v3754
    %v3756 = vpop.f32.mrb[0].mxu0
    %v3757 = vadd.f32 %v1413, %v3756
    %3758 = vdwg.mxu0
    %v3759 = vxor.u32 %v3755, 2147483648
    %v3760 = vxor.u32 %v3757, 2147483648
    %v3761 = vmul.f32 %v3759, 1.442695
    %v3762 = vpow.pop %v3761
    %v3763 = vmul.f32 %v3760, 1.442695
    %v3764 = vpow.pop %v3763
    %v3765 = vadd.f32 %v3762, 1.0
    %v3766 = vadd.f32 %v3764, 1.0
    %v3767 = vrcp.pop %v3765
    %v3768 = vmul.f32 1.0, %v3767
    %v3769 = vrcp.pop %v3766
    %v3770 = vmul.f32 1.0, %v3769
    %v3771 = vmul.f32 %v1503, %v3768
    %v3772 = vmul.f32 %v1510, %v3770
    %v3773 = vadd.f32 %v3771, %v3772
    %v3775 = vrot.slane %v3773, 6
    %v3777 = vmul.f32 %v3684, %v3775
    %v3779 = vrot.slane %v3777, 2
    %3781 = vmatprep.subr.mxu0 %v1516
    %3782 = vmatpush1.msra.mxu0 %v1515
    %3783 = vmatprep.subr.mxu0 %v1518
    %3784 = vmatpush1.msra.mxu0 %v1517
    %3785 = vmatprep.subr.mxu0 %v1520
    %3786 = vmatpush1.msra.mxu0 %v1519
    %3787 = vmatprep.subr.mxu0 %v1522
    %3788 = vmatpush1.msra.mxu0 %v1521
    %3789 = vmatprep.subr.mxu0 %v1524
    %3790 = vmatpush1.msra.mxu0 %v1523
    %3791 = vmatprep.subr.mxu0 %v1526
    %3792 = vmatpush1.msra.mxu0 %v1525
    %3793 = vmatprep.subr.mxu0 %v1528
    %3794 = vmatpush1.msra.mxu0 %v1527
    %3795 = vmatprep.subr.mxu0 %v1530
    %3796 = vmatpush1.msra.mxu0 %v1529
    %3797 = vmatprep.subr.mxu0 %v1532
    %3798 = vmatpush1.msra.mxu0 %v1531
    %3799 = vmatprep.subr.mxu0 %v1534
    %3800 = vmatpush1.msra.mxu0 %v1533
    %3801 = vmatprep.subr.mxu0 %v1536
    %3802 = vmatpush1.msra.mxu0 %v1535
    %3803 = vmatprep.subr.mxu0 %v1538
    %3804 = vmatpush1.msra.mxu0 %v1537
    %3805 = vmatprep.subr.mxu0 %v1540
    %3806 = vmatpush1.msra.mxu0 %v1539
    %3807 = vmatprep.subr.mxu0 %v1542
    %3808 = vmatpush1.msra.mxu0 %v1541
    %3809 = vmatprep.subr.mxu0 %v1544
    %3810 = vmatpush1.msra.mxu0 %v1543
    %3811 = vmatprep.subr.mxu0 %v1546
    %3812 = vmatpush1.msra.mxu0 %v1545
    %3813 = vmatprep.subr.mxu0 0.0
    %3814 = vmatpush1.msra.mxu0 0.0
    %3815 = vmatprep.subr.mxu0 0.0
    %3816 = vmatpush1.msra.mxu0 0.0
    %3817 = vmatprep.subr.mxu0 0.0
    %3818 = vmatpush1.msra.mxu0 0.0
    %3819 = vmatprep.subr.mxu0 0.0
    %3820 = vmatpush1.msra.mxu0 0.0
    %3821 = vmatprep.subr.mxu0 0.0
    %3822 = vmatpush1.msra.mxu0 0.0
    %3823 = vmatprep.subr.mxu0 0.0
    %3824 = vmatpush1.msra.mxu0 0.0
    %3825 = vmatprep.subr.mxu0 0.0
    %3826 = vmatpush1.msra.mxu0 0.0
    %3827 = vmatprep.subr.mxu0 0.0
    %3828 = vmatpush1.msra.mxu0 0.0
    %3829 = vmatprep.subr.mxu0 0.0
    %3830 = vmatpush1.msra.mxu0 0.0
    %3831 = vmatprep.subr.mxu0 0.0
    %3832 = vmatpush1.msra.mxu0 0.0
    %3833 = vmatprep.subr.mxu0 0.0
    %3834 = vmatpush1.msra.mxu0 0.0
    %3835 = vmatprep.subr.mxu0 0.0
    %3836 = vmatpush1.msra.mxu0 0.0
    %3837 = vmatprep.subr.mxu0 0.0
    %3838 = vmatpush1.msra.mxu0 0.0
    %3839 = vmatprep.subr.mxu0 0.0
    %3840 = vmatpush1.msra.mxu0 0.0
    %3841 = vmatprep.subr.mxu0 0.0
    %3842 = vmatpush1.msra.mxu0 0.0
    %3843 = vmatprep.subr.mxu0 0.0
    %3844 = vmatpush1.msra.mxu0 0.0
    %3845 = vmatprep.mubr.f32.mxu0 0.0
    %3846 = vmatmul.mubr.f32.gmra.mrb[0].mxu0 %v3779
    %v3847 = vpop.f32.mrb[0].mxu0
    %v3848 = vadd.f32 %v1552, %v3847
    %v3849 = vpop.f32.mrb[0].mxu0
    %v3850 = vadd.f32 %v1556, %v3849
    %3851 = vdwg.mxu0
    %3852 = vmatprep.subr.mxu0 %v1631
    %3853 = vmatpush1.msra.mxu0 %v1630
    %3854 = vmatprep.subr.mxu0 %v1633
    %3855 = vmatpush1.msra.mxu0 %v1632
    %3856 = vmatprep.subr.mxu0 %v1635
    %3857 = vmatpush1.msra.mxu0 %v1634
    %3858 = vmatprep.subr.mxu0 %v1637
    %3859 = vmatpush1.msra.mxu0 %v1636
    %3860 = vmatprep.subr.mxu0 %v1639
    %3861 = vmatpush1.msra.mxu0 %v1638
    %3862 = vmatprep.subr.mxu0 %v1641
    %3863 = vmatpush1.msra.mxu0 %v1640
    %3864 = vmatprep.subr.mxu0 %v1643
    %3865 = vmatpush1.msra.mxu0 %v1642
    %3866 = vmatprep.subr.mxu0 %v1645
    %3867 = vmatpush1.msra.mxu0 %v1644
    %3868 = vmatprep.subr.mxu0 %v1647
    %3869 = vmatpush1.msra.mxu0 %v1646
    %3870 = vmatprep.subr.mxu0 %v1649
    %3871 = vmatpush1.msra.mxu0 %v1648
    %3872 = vmatprep.subr.mxu0 %v1651
    %3873 = vmatpush1.msra.mxu0 %v1650
    %3874 = vmatprep.subr.mxu0 %v1653
    %3875 = vmatpush1.msra.mxu0 %v1652
    %3876 = vmatprep.subr.mxu0 %v1655
    %3877 = vmatpush1.msra.mxu0 %v1654
    %3878 = vmatprep.subr.mxu0 %v1657
    %3879 = vmatpush1.msra.mxu0 %v1656
    %3880 = vmatprep.subr.mxu0 %v1659
    %3881 = vmatpush1.msra.mxu0 %v1658
    %3882 = vmatprep.subr.mxu0 %v1661
    %3883 = vmatpush1.msra.mxu0 %v1660
    %3884 = vmatprep.subr.mxu0 %v1663
    %3885 = vmatpush1.msra.mxu0 %v1662
    %3886 = vmatprep.subr.mxu0 %v1665
    %3887 = vmatpush1.msra.mxu0 %v1664
    %3888 = vmatprep.subr.mxu0 %v1667
    %3889 = vmatpush1.msra.mxu0 %v1666
    %3890 = vmatprep.subr.mxu0 %v1669
    %3891 = vmatpush1.msra.mxu0 %v1668
    %3892 = vmatprep.subr.mxu0 %v1671
    %3893 = vmatpush1.msra.mxu0 %v1670
    %3894 = vmatprep.subr.mxu0 %v1673
    %3895 = vmatpush1.msra.mxu0 %v1672
    %3896 = vmatprep.subr.mxu0 %v1675
    %3897 = vmatpush1.msra.mxu0 %v1674
    %3898 = vmatprep.subr.mxu0 %v1677
    %3899 = vmatpush1.msra.mxu0 %v1676
    %3900 = vmatprep.subr.mxu0 %v1679
    %3901 = vmatpush1.msra.mxu0 %v1678
    %3902 = vmatprep.subr.mxu0 %v1681
    %3903 = vmatpush1.msra.mxu0 %v1680
    %3904 = vmatprep.subr.mxu0 %v1683
    %3905 = vmatpush1.msra.mxu0 %v1682
    %3906 = vmatprep.subr.mxu0 %v1685
    %3907 = vmatpush1.msra.mxu0 %v1684
    %3908 = vmatprep.subr.mxu0 %v1687
    %3909 = vmatpush1.msra.mxu0 %v1686
    %3910 = vmatprep.subr.mxu0 %v1689
    %3911 = vmatpush1.msra.mxu0 %v1688
    %3912 = vmatprep.subr.mxu0 %v1691
    %3913 = vmatpush1.msra.mxu0 %v1690
    %3914 = vmatprep.subr.mxu0 %v1693
    %3915 = vmatpush1.msra.mxu0 %v1692
    %3916 = vmatprep.mubr.f32.mxu0 %v3850
    %3917 = vmatmul.mubr.f32.gmra.mrb[0].mxu0 %v3848
    %v3918 = vpop.f32.mrb[0].mxu0
    %v3919 = vadd.f32 %v1699, %v3918
    %v3920 = vpop.f32.mrb[0].mxu0
    %v3921 = vadd.f32 %v1703, %v3920
    %3922 = vdwg.mxu0
    %v3923 = vtanh.pop %v3919
    %v3924 = vxor.u32 %v3921, 2147483648
    %v3925 = vmul.f32 %v3924, 1.442695
    %v3926 = vpow.pop %v3925
    %v3927 = vadd.f32 %v3926, 1.0
    %v3928 = vrcp.pop %v3927
    %v3929 = vmul.f32 1.0, %v3928
    %v3930 = vmul.f32 %v3923, %v3929
    %v3932 = vrot.slane %v3930, 6
    %v3933 = vrot.slane %v3932, 2
    %3935 = vmatprep.subr.mxu0 %v1075
    %3936 = vmatpush1.msra.mxu0 %v1074
    %3937 = vmatprep.subr.mxu0 %v1079
    %3938 = vmatpush1.msra.mxu0 %v1078
    %3939 = vmatprep.subr.mxu0 %v1083
    %3940 = vmatpush1.msra.mxu0 %v1082
    %3941 = vmatprep.subr.mxu0 %v1087
    %3942 = vmatpush1.msra.mxu0 %v1086
    %3943 = vmatprep.subr.mxu0 %v1091
    %3944 = vmatpush1.msra.mxu0 %v1090
    %3945 = vmatprep.subr.mxu0 %v1095
    %3946 = vmatpush1.msra.mxu0 %v1094
    %3947 = vmatprep.subr.mxu0 %v1099
    %3948 = vmatpush1.msra.mxu0 %v1098
    %3949 = vmatprep.subr.mxu0 %v1103
    %3950 = vmatpush1.msra.mxu0 %v1102
    %3951 = vmatprep.subr.mxu0 %v1107
    %3952 = vmatpush1.msra.mxu0 %v1106
    %3953 = vmatprep.subr.mxu0 %v1111
    %3954 = vmatpush1.msra.mxu0 %v1110
    %3955 = vmatprep.subr.mxu0 %v1115
    %3956 = vmatpush1.msra.mxu0 %v1114
    %3957 = vmatprep.subr.mxu0 %v1119
    %3958 = vmatpush1.msra.mxu0 %v1118
    %3959 = vmatprep.subr.mxu0 %v1123
    %3960 = vmatpush1.msra.mxu0 %v1122
    %3961 = vmatprep.subr.mxu0 %v1127
    %3962 = vmatpush1.msra.mxu0 %v1126
    %3963 = vmatprep.subr.mxu0 %v1131
    %3964 = vmatpush1.msra.mxu0 %v1130
    %3965 = vmatprep.subr.mxu0 %v1135
    %3966 = vmatpush1.msra.mxu0 %v1134
    %3967 = vmatprep.subr.mxu0 %v1139
    %3968 = vmatpush1.msra.mxu0 %v1138
    %3969 = vmatprep.subr.mxu0 %v1143
    %3970 = vmatpush1.msra.mxu0 %v1142
    %3971 = vmatprep.subr.mxu0 %v1147
    %3972 = vmatpush1.msra.mxu0 %v1146
    %3973 = vmatprep.subr.mxu0 %v1151
    %3974 = vmatpush1.msra.mxu0 %v1150
    %3975 = vmatprep.subr.mxu0 %v1155
    %3976 = vmatpush1.msra.mxu0 %v1154
    %3977 = vmatprep.subr.mxu0 %v1159
    %3978 = vmatpush1.msra.mxu0 %v1158
    %3979 = vmatprep.subr.mxu0 %v1163
    %3980 = vmatpush1.msra.mxu0 %v1162
    %3981 = vmatprep.subr.mxu0 %v1167
    %3982 = vmatpush1.msra.mxu0 %v1166
    %3983 = vmatprep.subr.mxu0 %v1171
    %3984 = vmatpush1.msra.mxu0 %v1170
    %3985 = vmatprep.subr.mxu0 %v1175
    %3986 = vmatpush1.msra.mxu0 %v1174
    %3987 = vmatprep.subr.mxu0 %v1179
    %3988 = vmatpush1.msra.mxu0 %v1178
    %3989 = vmatprep.subr.mxu0 %v1183
    %3990 = vmatpush1.msra.mxu0 %v1182
    %3991 = vmatprep.subr.mxu0 %v1187
    %3992 = vmatpush1.msra.mxu0 %v1186
    %3993 = vmatprep.subr.mxu0 %v1191
    %3994 = vmatpush1.msra.mxu0 %v1190
    %3995 = vmatprep.subr.mxu0 %v1195
    %3996 = vmatpush1.msra.mxu0 %v1194
    %3997 = vmatprep.subr.mxu0 %v1199
    %3998 = vmatpush1.msra.mxu0 %v1198
    %3999 = vmatprep.mubr.f32.mxu0 %v3933
    %4000 = vmatmul.mubr.f32.gmra.mrb[0].mxu0 %v3686
    %v4001 = vpop.f32.mrb[0].mxu0
    %v4002 = vadd.f32 0.0, %v4001
    %v4003 = vpop.f32.mrb[0].mxu0
    %v4004 = vadd.f32 0.0, %v4003
    %4005 = vdwg.mxu0
    %4006 = vmatprep.subr.mxu0 %v1077
    %4007 = vmatpush1.msra.mxu0 %v1076
    %4008 = vmatprep.subr.mxu0 %v1081
    %4009 = vmatpush1.msra.mxu0 %v1080
    %4010 = vmatprep.subr.mxu0 %v1085
    %4011 = vmatpush1.msra.mxu0 %v1084
    %4012 = vmatprep.subr.mxu0 %v1089
    %4013 = vmatpush1.msra.mxu0 %v1088
    %4014 = vmatprep.subr.mxu0 %v1093
    %4015 = vmatpush1.msra.mxu0 %v1092
    %4016 = vmatprep.subr.mxu0 %v1097
    %4017 = vmatpush1.msra.mxu0 %v1096
    %4018 = vmatprep.subr.mxu0 %v1101
    %4019 = vmatpush1.msra.mxu0 %v1100
    %4020 = vmatprep.subr.mxu0 %v1105
    %4021 = vmatpush1.msra.mxu0 %v1104
    %4022 = vmatprep.subr.mxu0 %v1109
    %4023 = vmatpush1.msra.mxu0 %v1108
    %4024 = vmatprep.subr.mxu0 %v1113
    %4025 = vmatpush1.msra.mxu0 %v1112
    %4026 = vmatprep.subr.mxu0 %v1117
    %4027 = vmatpush1.msra.mxu0 %v1116
    %4028 = vmatprep.subr.mxu0 %v1121
    %4029 = vmatpush1.msra.mxu0 %v1120
    %4030 = vmatprep.subr.mxu0 %v1125
    %4031 = vmatpush1.msra.mxu0 %v1124
    %4032 = vmatprep.subr.mxu0 %v1129
    %4033 = vmatpush1.msra.mxu0 %v1128
    %4034 = vmatprep.subr.mxu0 %v1133
    %4035 = vmatpush1.msra.mxu0 %v1132
    %4036 = vmatprep.subr.mxu0 %v1137
    %4037 = vmatpush1.msra.mxu0 %v1136
    %4038 = vmatprep.subr.mxu0 %v1141
    %4039 = vmatpush1.msra.mxu0 %v1140
    %4040 = vmatprep.subr.mxu0 %v1145
    %4041 = vmatpush1.msra.mxu0 %v1144
    %4042 = vmatprep.subr.mxu0 %v1149
    %4043 = vmatpush1.msra.mxu0 %v1148
    %4044 = vmatprep.subr.mxu0 %v1153
    %4045 = vmatpush1.msra.mxu0 %v1152
    %4046 = vmatprep.subr.mxu0 %v1157
    %4047 = vmatpush1.msra.mxu0 %v1156
    %4048 = vmatprep.subr.mxu0 %v1161
    %4049 = vmatpush1.msra.mxu0 %v1160
    %4050 = vmatprep.subr.mxu0 %v1165
    %4051 = vmatpush1.msra.mxu0 %v1164
    %4052 = vmatprep.subr.mxu0 %v1169
    %4053 = vmatpush1.msra.mxu0 %v1168
    %4054 = vmatprep.subr.mxu0 %v1173
    %4055 = vmatpush1.msra.mxu0 %v1172
    %4056 = vmatprep.subr.mxu0 %v1177
    %4057 = vmatpush1.msra.mxu0 %v1176
    %4058 = vmatprep.subr.mxu0 %v1181
    %4059 = vmatpush1.msra.mxu0 %v1180
    %4060 = vmatprep.subr.mxu0 %v1185
    %4061 = vmatpush1.msra.mxu0 %v1184
    %4062 = vmatprep.subr.mxu0 %v1189
    %4063 = vmatpush1.msra.mxu0 %v1188
    %4064 = vmatprep.subr.mxu0 %v1193
    %4065 = vmatpush1.msra.mxu0 %v1192
    %4066 = vmatprep.subr.mxu0 %v1197
    %4067 = vmatpush1.msra.mxu0 %v1196
    %4068 = vmatprep.subr.mxu0 %v1201
    %4069 = vmatpush1.msra.mxu0 %v1200
    %4070 = vmatprep.mubr.f32.mxu0 %v3933
    %4071 = vmatmul.mubr.f32.gmra.mrb[0].mxu0 %v3686
    %v4072 = vpop.f32.mrb[0].mxu0
    %v4073 = vadd.f32 0.0, %v4072
    %v4074 = vpop.f32.mrb[0].mxu0
    %v4075 = vadd.f32 0.0, %v4074
    %4076 = vdwg.mxu0
    %v4081 = vrot.slane %v4002, 4
    %v4082 = vrot.slane %v4004, 4
    %v4083 = vrot.slane %v4073, 4
    %v4084 = vrot.slane %v4075, 4
    %v4089 = vadd.f32 %v1068, %v4081
    %v4090 = vadd.f32 %v1069, %v4082
    %v4091 = vadd.f32 %v1070, %v4083
    %v4092 = vadd.f32 %v1071, %v4084
    %v4093 = vxor.u32 %v4089, 2147483648
    %v4094 = vmul.f32 %v4093, 1.442695
    %v4095 = vpow.pop %v4094
    %v4096 = vadd.f32 %v4095, 1.0
    %v4097 = vrcp.pop %v4096
    %v4098 = vmul.f32 1.0, %v4097
    %v4099 = vxor.u32 %v4090, 2147483648
    %v4100 = vmul.f32 %v4099, 1.442695
    %v4101 = vpow.pop %v4100
    %v4102 = vadd.f32 %v4101, 1.0
    %v4103 = vrcp.pop %v4102
    %v4104 = vmul.f32 1.0, %v4103
    %v4105 = vxor.u32 %v4091, 2147483648
    %v4106 = vmul.f32 %v4105, 1.442695
    %v4107 = vpow.pop %v4106
    %v4108 = vadd.f32 %v4107, 1.0
    %v4109 = vrcp.pop %v4108
    %v4110 = vmul.f32 1.0, %v4109
    %v4111 = vtanh.pop %v4092
    %v4113 = vrot.slane %v3682, 6
    %v4115 = vmul.f32 %v4098, %v4113
    %v4116 = vmul.f32 %v4104, %v4111
    %v4117 = vadd.f32 %v4115, %v4116
    %v4118 = vtanh.pop %v4117
    %v4119 = vmul.f32 %v4118, %v4110
    %v4121 = vrot.slane %v4119, 4
    %4123 = vmatprep.subr.mxu0 %v1373
    %4124 = vmatpush1.msra.mxu0 %v1372
    %4125 = vmatprep.subr.mxu0 %v1375
    %4126 = vmatpush1.msra.mxu0 %v1374
    %4127 = vmatprep.subr.mxu0 %v1377
    %4128 = vmatpush1.msra.mxu0 %v1376
    %4129 = vmatprep.subr.mxu0 %v1379
    %4130 = vmatpush1.msra.mxu0 %v1378
    %4131 = vmatprep.subr.mxu0 %v1381
    %4132 = vmatpush1.msra.mxu0 %v1380
    %4133 = vmatprep.subr.mxu0 %v1383
    %4134 = vmatpush1.msra.mxu0 %v1382
    %4135 = vmatprep.subr.mxu0 %v1385
    %4136 = vmatpush1.msra.mxu0 %v1384
    %4137 = vmatprep.subr.mxu0 %v1387
    %4138 = vmatpush1.msra.mxu0 %v1386
    %4139 = vmatprep.subr.mxu0 %v1389
    %4140 = vmatpush1.msra.mxu0 %v1388
    %4141 = vmatprep.subr.mxu0 %v1391
    %4142 = vmatpush1.msra.mxu0 %v1390
    %4143 = vmatprep.subr.mxu0 %v1393
    %4144 = vmatpush1.msra.mxu0 %v1392
    %4145 = vmatprep.subr.mxu0 %v1395
    %4146 = vmatpush1.msra.mxu0 %v1394
    %4147 = vmatprep.subr.mxu0 %v1397
    %4148 = vmatpush1.msra.mxu0 %v1396
    %4149 = vmatprep.subr.mxu0 %v1399
    %4150 = vmatpush1.msra.mxu0 %v1398
    %4151 = vmatprep.subr.mxu0 %v1401
    %4152 = vmatpush1.msra.mxu0 %v1400
    %4153 = vmatprep.subr.mxu0 %v1403
    %4154 = vmatpush1.msra.mxu0 %v1402
    %4155 = vmatprep.subr.mxu0 0.0
    %4156 = vmatpush1.msra.mxu0 0.0
    %4157 = vmatprep.subr.mxu0 0.0
    %4158 = vmatpush1.msra.mxu0 0.0
    %4159 = vmatprep.subr.mxu0 0.0
    %4160 = vmatpush1.msra.mxu0 0.0
    %4161 = vmatprep.subr.mxu0 0.0
    %4162 = vmatpush1.msra.mxu0 0.0
    %4163 = vmatprep.subr.mxu0 0.0
    %4164 = vmatpush1.msra.mxu0 0.0
    %4165 = vmatprep.subr.mxu0 0.0
    %4166 = vmatpush1.msra.mxu0 0.0
    %4167 = vmatprep.subr.mxu0 0.0
    %4168 = vmatpush1.msra.mxu0 0.0
    %4169 = vmatprep.subr.mxu0 0.0
    %4170 = vmatpush1.msra.mxu0 0.0
    %4171 = vmatprep.subr.mxu0 0.0
    %4172 = vmatpush1.msra.mxu0 0.0
    %4173 = vmatprep.subr.mxu0 0.0
    %4174 = vmatpush1.msra.mxu0 0.0
    %4175 = vmatprep.subr.mxu0 0.0
    %4176 = vmatpush1.msra.mxu0 0.0
    %4177 = vmatprep.subr.mxu0 0.0
    %4178 = vmatpush1.msra.mxu0 0.0
    %4179 = vmatprep.subr.mxu0 0.0
    %4180 = vmatpush1.msra.mxu0 0.0
    %4181 = vmatprep.subr.mxu0 0.0
    %4182 = vmatpush1.msra.mxu0 0.0
    %4183 = vmatprep.subr.mxu0 0.0
    %4184 = vmatpush1.msra.mxu0 0.0
    %4185 = vmatprep.subr.mxu0 0.0
    %4186 = vmatpush1.msra.mxu0 0.0
    %4187 = vmatprep.mubr.f32.mxu0 0.0
    %4188 = vmatmul.mubr.f32.gmra.mrb[0].mxu0 %v4121
    %v4189 = vpop.f32.mrb[0].mxu0
    %v4190 = vadd.f32 %v1409, %v4189
    %v4191 = vpop.f32.mrb[0].mxu0
    %v4192 = vadd.f32 %v1413, %v4191
    %4193 = vdwg.mxu0
    %v4194 = vxor.u32 %v4190, 2147483648
    %v4195 = vxor.u32 %v4192, 2147483648
    %v4196 = vmul.f32 %v4194, 1.442695
    %v4197 = vpow.pop %v4196
    %v4198 = vmul.f32 %v4195, 1.442695
    %v4199 = vpow.pop %v4198
    %v4200 = vadd.f32 %v4197, 1.0
    %v4201 = vadd.f32 %v4199, 1.0
    %v4202 = vrcp.pop %v4200
    %v4203 = vmul.f32 1.0, %v4202
    %v4204 = vrcp.pop %v4201
    %v4205 = vmul.f32 1.0, %v4204
    %v4206 = vmul.f32 %v1503, %v4203
    %v4207 = vmul.f32 %v1510, %v4205
    %v4208 = vadd.f32 %v4206, %v4207
    %v4210 = vrot.slane %v4208, 4
    %v4212 = vmul.f32 %v4119, %v4210
    %v4214 = vrot.slane %v4212, 4
    %4216 = vmatprep.subr.mxu0 %v1516
    %4217 = vmatpush1.msra.mxu0 %v1515
    %4218 = vmatprep.subr.mxu0 %v1518
    %4219 = vmatpush1.msra.mxu0 %v1517
    %4220 = vmatprep.subr.mxu0 %v1520
    %4221 = vmatpush1.msra.mxu0 %v1519
    %4222 = vmatprep.subr.mxu0 %v1522
    %4223 = vmatpush1.msra.mxu0 %v1521
    %4224 = vmatprep.subr.mxu0 %v1524
    %4225 = vmatpush1.msra.mxu0 %v1523
    %4226 = vmatprep.subr.mxu0 %v1526
    %4227 = vmatpush1.msra.mxu0 %v1525
    %4228 = vmatprep.subr.mxu0 %v1528
    %4229 = vmatpush1.msra.mxu0 %v1527
    %4230 = vmatprep.subr.mxu0 %v1530
    %4231 = vmatpush1.msra.mxu0 %v1529
    %4232 = vmatprep.subr.mxu0 %v1532
    %4233 = vmatpush1.msra.mxu0 %v1531
    %4234 = vmatprep.subr.mxu0 %v1534
    %4235 = vmatpush1.msra.mxu0 %v1533
    %4236 = vmatprep.subr.mxu0 %v1536
    %4237 = vmatpush1.msra.mxu0 %v1535
    %4238 = vmatprep.subr.mxu0 %v1538
    %4239 = vmatpush1.msra.mxu0 %v1537
    %4240 = vmatprep.subr.mxu0 %v1540
    %4241 = vmatpush1.msra.mxu0 %v1539
    %4242 = vmatprep.subr.mxu0 %v1542
    %4243 = vmatpush1.msra.mxu0 %v1541
    %4244 = vmatprep.subr.mxu0 %v1544
    %4245 = vmatpush1.msra.mxu0 %v1543
    %4246 = vmatprep.subr.mxu0 %v1546
    %4247 = vmatpush1.msra.mxu0 %v1545
    %4248 = vmatprep.subr.mxu0 0.0
    %4249 = vmatpush1.msra.mxu0 0.0
    %4250 = vmatprep.subr.mxu0 0.0
    %4251 = vmatpush1.msra.mxu0 0.0
    %4252 = vmatprep.subr.mxu0 0.0
    %4253 = vmatpush1.msra.mxu0 0.0
    %4254 = vmatprep.subr.mxu0 0.0
    %4255 = vmatpush1.msra.mxu0 0.0
    %4256 = vmatprep.subr.mxu0 0.0
    %4257 = vmatpush1.msra.mxu0 0.0
    %4258 = vmatprep.subr.mxu0 0.0
    %4259 = vmatpush1.msra.mxu0 0.0
    %4260 = vmatprep.subr.mxu0 0.0
    %4261 = vmatpush1.msra.mxu0 0.0
    %4262 = vmatprep.subr.mxu0 0.0
    %4263 = vmatpush1.msra.mxu0 0.0
    %4264 = vmatprep.subr.mxu0 0.0
    %4265 = vmatpush1.msra.mxu0 0.0
    %4266 = vmatprep.subr.mxu0 0.0
    %4267 = vmatpush1.msra.mxu0 0.0
    %4268 = vmatprep.subr.mxu0 0.0
    %4269 = vmatpush1.msra.mxu0 0.0
    %4270 = vmatprep.subr.mxu0 0.0
    %4271 = vmatpush1.msra.mxu0 0.0
    %4272 = vmatprep.subr.mxu0 0.0
    %4273 = vmatpush1.msra.mxu0 0.0
    %4274 = vmatprep.subr.mxu0 0.0
    %4275 = vmatpush1.msra.mxu0 0.0
    %4276 = vmatprep.subr.mxu0 0.0
    %4277 = vmatpush1.msra.mxu0 0.0
    %4278 = vmatprep.subr.mxu0 0.0
    %4279 = vmatpush1.msra.mxu0 0.0
    %4280 = vmatprep.mubr.f32.mxu0 0.0
    %4281 = vmatmul.mubr.f32.gmra.mrb[0].mxu0 %v4214
    %v4282 = vpop.f32.mrb[0].mxu0
    %v4283 = vadd.f32 %v1552, %v4282
    %v4284 = vpop.f32.mrb[0].mxu0
    %v4285 = vadd.f32 %v1556, %v4284
    %4286 = vdwg.mxu0
    %4287 = vmatprep.subr.mxu0 %v1631
    %4288 = vmatpush1.msra.mxu0 %v1630
    %4289 = vmatprep.subr.mxu0 %v1633
    %4290 = vmatpush1.msra.mxu0 %v1632
    %4291 = vmatprep.subr.mxu0 %v1635
    %4292 = vmatpush1.msra.mxu0 %v1634
    %4293 = vmatprep.subr.mxu0 %v1637
    %4294 = vmatpush1.msra.mxu0 %v1636
    %4295 = vmatprep.subr.mxu0 %v1639
    %4296 = vmatpush1.msra.mxu0 %v1638
    %4297 = vmatprep.subr.mxu0 %v1641
    %4298 = vmatpush1.msra.mxu0 %v1640
    %4299 = vmatprep.subr.mxu0 %v1643
    %4300 = vmatpush1.msra.mxu0 %v1642
    %4301 = vmatprep.subr.mxu0 %v1645
    %4302 = vmatpush1.msra.mxu0 %v1644
    %4303 = vmatprep.subr.mxu0 %v1647
    %4304 = vmatpush1.msra.mxu0 %v1646
    %4305 = vmatprep.subr.mxu0 %v1649
    %4306 = vmatpush1.msra.mxu0 %v1648
    %4307 = vmatprep.subr.mxu0 %v1651
    %4308 = vmatpush1.msra.mxu0 %v1650
    %4309 = vmatprep.subr.mxu0 %v1653
    %4310 = vmatpush1.msra.mxu0 %v1652
    %4311 = vmatprep.subr.mxu0 %v1655
    %4312 = vmatpush1.msra.mxu0 %v1654
    %4313 = vmatprep.subr.mxu0 %v1657
    %4314 = vmatpush1.msra.mxu0 %v1656
    %4315 = vmatprep.subr.mxu0 %v1659
    %4316 = vmatpush1.msra.mxu0 %v1658
    %4317 = vmatprep.subr.mxu0 %v1661
    %4318 = vmatpush1.msra.mxu0 %v1660
    %4319 = vmatprep.subr.mxu0 %v1663
    %4320 = vmatpush1.msra.mxu0 %v1662
    %4321 = vmatprep.subr.mxu0 %v1665
    %4322 = vmatpush1.msra.mxu0 %v1664
    %4323 = vmatprep.subr.mxu0 %v1667
    %4324 = vmatpush1.msra.mxu0 %v1666
    %4325 = vmatprep.subr.mxu0 %v1669
    %4326 = vmatpush1.msra.mxu0 %v1668
    %4327 = vmatprep.subr.mxu0 %v1671
    %4328 = vmatpush1.msra.mxu0 %v1670
    %4329 = vmatprep.subr.mxu0 %v1673
    %4330 = vmatpush1.msra.mxu0 %v1672
    %4331 = vmatprep.subr.mxu0 %v1675
    %4332 = vmatpush1.msra.mxu0 %v1674
    %4333 = vmatprep.subr.mxu0 %v1677
    %4334 = vmatpush1.msra.mxu0 %v1676
    %4335 = vmatprep.subr.mxu0 %v1679
    %4336 = vmatpush1.msra.mxu0 %v1678
    %4337 = vmatprep.subr.mxu0 %v1681
    %4338 = vmatpush1.msra.mxu0 %v1680
    %4339 = vmatprep.subr.mxu0 %v1683
    %4340 = vmatpush1.msra.mxu0 %v1682
    %4341 = vmatprep.subr.mxu0 %v1685
    %4342 = vmatpush1.msra.mxu0 %v1684
    %4343 = vmatprep.subr.mxu0 %v1687
    %4344 = vmatpush1.msra.mxu0 %v1686
    %4345 = vmatprep.subr.mxu0 %v1689
    %4346 = vmatpush1.msra.mxu0 %v1688
    %4347 = vmatprep.subr.mxu0 %v1691
    %4348 = vmatpush1.msra.mxu0 %v1690
    %4349 = vmatprep.subr.mxu0 %v1693
    %4350 = vmatpush1.msra.mxu0 %v1692
    %4351 = vmatprep.mubr.f32.mxu0 %v4285
    %4352 = vmatmul.mubr.f32.gmra.mrb[0].mxu0 %v4283
    %v4353 = vpop.f32.mrb[0].mxu0
    %v4354 = vadd.f32 %v1699, %v4353
    %v4355 = vpop.f32.mrb[0].mxu0
    %v4356 = vadd.f32 %v1703, %v4355
    %4357 = vdwg.mxu0
    %v4358 = vtanh.pop %v4354
    %v4359 = vxor.u32 %v4356, 2147483648
    %v4360 = vmul.f32 %v4359, 1.442695
    %v4361 = vpow.pop %v4360
    %v4362 = vadd.f32 %v4361, 1.0
    %v4363 = vrcp.pop %v4362
    %v4364 = vmul.f32 1.0, %v4363
    %v4365 = vmul.f32 %v4358, %v4364
    %v4367 = vrot.slane %v4365, 4
    %v4368 = vrot.slane %v4367, 4
    %4370 = vmatprep.subr.mxu0 %v1075
    %4371 = vmatpush1.msra.mxu0 %v1074
    %4372 = vmatprep.subr.mxu0 %v1079
    %4373 = vmatpush1.msra.mxu0 %v1078
    %4374 = vmatprep.subr.mxu0 %v1083
    %4375 = vmatpush1.msra.mxu0 %v1082
    %4376 = vmatprep.subr.mxu0 %v1087
    %4377 = vmatpush1.msra.mxu0 %v1086
    %4378 = vmatprep.subr.mxu0 %v1091
    %4379 = vmatpush1.msra.mxu0 %v1090
    %4380 = vmatprep.subr.mxu0 %v1095
    %4381 = vmatpush1.msra.mxu0 %v1094
    %4382 = vmatprep.subr.mxu0 %v1099
    %4383 = vmatpush1.msra.mxu0 %v1098
    %4384 = vmatprep.subr.mxu0 %v1103
    %4385 = vmatpush1.msra.mxu0 %v1102
    %4386 = vmatprep.subr.mxu0 %v1107
    %4387 = vmatpush1.msra.mxu0 %v1106
    %4388 = vmatprep.subr.mxu0 %v1111
    %4389 = vmatpush1.msra.mxu0 %v1110
    %4390 = vmatprep.subr.mxu0 %v1115
    %4391 = vmatpush1.msra.mxu0 %v1114
    %4392 = vmatprep.subr.mxu0 %v1119
    %4393 = vmatpush1.msra.mxu0 %v1118
    %4394 = vmatprep.subr.mxu0 %v1123
    %4395 = vmatpush1.msra.mxu0 %v1122
    %4396 = vmatprep.subr.mxu0 %v1127
    %4397 = vmatpush1.msra.mxu0 %v1126
    %4398 = vmatprep.subr.mxu0 %v1131
    %4399 = vmatpush1.msra.mxu0 %v1130
    %4400 = vmatprep.subr.mxu0 %v1135
    %4401 = vmatpush1.msra.mxu0 %v1134
    %4402 = vmatprep.subr.mxu0 %v1139
    %4403 = vmatpush1.msra.mxu0 %v1138
    %4404 = vmatprep.subr.mxu0 %v1143
    %4405 = vmatpush1.msra.mxu0 %v1142
    %4406 = vmatprep.subr.mxu0 %v1147
    %4407 = vmatpush1.msra.mxu0 %v1146
    %4408 = vmatprep.subr.mxu0 %v1151
    %4409 = vmatpush1.msra.mxu0 %v1150
    %4410 = vmatprep.subr.mxu0 %v1155
    %4411 = vmatpush1.msra.mxu0 %v1154
    %4412 = vmatprep.subr.mxu0 %v1159
    %4413 = vmatpush1.msra.mxu0 %v1158
    %4414 = vmatprep.subr.mxu0 %v1163
    %4415 = vmatpush1.msra.mxu0 %v1162
    %4416 = vmatprep.subr.mxu0 %v1167
    %4417 = vmatpush1.msra.mxu0 %v1166
    %4418 = vmatprep.subr.mxu0 %v1171
    %4419 = vmatpush1.msra.mxu0 %v1170
    %4420 = vmatprep.subr.mxu0 %v1175
    %4421 = vmatpush1.msra.mxu0 %v1174
    %4422 = vmatprep.subr.mxu0 %v1179
    %4423 = vmatpush1.msra.mxu0 %v1178
    %4424 = vmatprep.subr.mxu0 %v1183
    %4425 = vmatpush1.msra.mxu0 %v1182
    %4426 = vmatprep.subr.mxu0 %v1187
    %4427 = vmatpush1.msra.mxu0 %v1186
    %4428 = vmatprep.subr.mxu0 %v1191
    %4429 = vmatpush1.msra.mxu0 %v1190
    %4430 = vmatprep.subr.mxu0 %v1195
    %4431 = vmatpush1.msra.mxu0 %v1194
    %4432 = vmatprep.subr.mxu0 %v1199
    %4433 = vmatpush1.msra.mxu0 %v1198
    %4434 = vmatprep.mubr.f32.mxu0 %v4368
    %4435 = vmatmul.mubr.f32.gmra.mrb[0].mxu0 %v4121
    %v4436 = vpop.f32.mrb[0].mxu0
    %v4437 = vadd.f32 0.0, %v4436
    %v4438 = vpop.f32.mrb[0].mxu0
    %v4439 = vadd.f32 0.0, %v4438
    %4440 = vdwg.mxu0
    %4441 = vmatprep.subr.mxu0 %v1077
    %4442 = vmatpush1.msra.mxu0 %v1076
    %4443 = vmatprep.subr.mxu0 %v1081
    %4444 = vmatpush1.msra.mxu0 %v1080
    %4445 = vmatprep.subr.mxu0 %v1085
    %4446 = vmatpush1.msra.mxu0 %v1084
    %4447 = vmatprep.subr.mxu0 %v1089
    %4448 = vmatpush1.msra.mxu0 %v1088
    %4449 = vmatprep.subr.mxu0 %v1093
    %4450 = vmatpush1.msra.mxu0 %v1092
    %4451 = vmatprep.subr.mxu0 %v1097
    %4452 = vmatpush1.msra.mxu0 %v1096
    %4453 = vmatprep.subr.mxu0 %v1101
    %4454 = vmatpush1.msra.mxu0 %v1100
    %4455 = vmatprep.subr.mxu0 %v1105
    %4456 = vmatpush1.msra.mxu0 %v1104
    %4457 = vmatprep.subr.mxu0 %v1109
    %4458 = vmatpush1.msra.mxu0 %v1108
    %4459 = vmatprep.subr.mxu0 %v1113
    %4460 = vmatpush1.msra.mxu0 %v1112
    %4461 = vmatprep.subr.mxu0 %v1117
    %4462 = vmatpush1.msra.mxu0 %v1116
    %4463 = vmatprep.subr.mxu0 %v1121
    %4464 = vmatpush1.msra.mxu0 %v1120
    %4465 = vmatprep.subr.mxu0 %v1125
    %4466 = vmatpush1.msra.mxu0 %v1124
    %4467 = vmatprep.subr.mxu0 %v1129
    %4468 = vmatpush1.msra.mxu0 %v1128
    %4469 = vmatprep.subr.mxu0 %v1133
    %4470 = vmatpush1.msra.mxu0 %v1132
    %4471 = vmatprep.subr.mxu0 %v1137
    %4472 = vmatpush1.msra.mxu0 %v1136
    %4473 = vmatprep.subr.mxu0 %v1141
    %4474 = vmatpush1.msra.mxu0 %v1140
    %4475 = vmatprep.subr.mxu0 %v1145
    %4476 = vmatpush1.msra.mxu0 %v1144
    %4477 = vmatprep.subr.mxu0 %v1149
    %4478 = vmatpush1.msra.mxu0 %v1148
    %4479 = vmatprep.subr.mxu0 %v1153
    %4480 = vmatpush1.msra.mxu0 %v1152
    %4481 = vmatprep.subr.mxu0 %v1157
    %4482 = vmatpush1.msra.mxu0 %v1156
    %4483 = vmatprep.subr.mxu0 %v1161
    %4484 = vmatpush1.msra.mxu0 %v1160
    %4485 = vmatprep.subr.mxu0 %v1165
    %4486 = vmatpush1.msra.mxu0 %v1164
    %4487 = vmatprep.subr.mxu0 %v1169
    %4488 = vmatpush1.msra.mxu0 %v1168
    %4489 = vmatprep.subr.mxu0 %v1173
    %4490 = vmatpush1.msra.mxu0 %v1172
    %4491 = vmatprep.subr.mxu0 %v1177
    %4492 = vmatpush1.msra.mxu0 %v1176
    %4493 = vmatprep.subr.mxu0 %v1181
    %4494 = vmatpush1.msra.mxu0 %v1180
    %4495 = vmatprep.subr.mxu0 %v1185
    %4496 = vmatpush1.msra.mxu0 %v1184
    %4497 = vmatprep.subr.mxu0 %v1189
    %4498 = vmatpush1.msra.mxu0 %v1188
    %4499 = vmatprep.subr.mxu0 %v1193
    %4500 = vmatpush1.msra.mxu0 %v1192
    %4501 = vmatprep.subr.mxu0 %v1197
    %4502 = vmatpush1.msra.mxu0 %v1196
    %4503 = vmatprep.subr.mxu0 %v1201
    %4504 = vmatpush1.msra.mxu0 %v1200
    %4505 = vmatprep.mubr.f32.mxu0 %v4368
    %4506 = vmatmul.mubr.f32.gmra.mrb[0].mxu0 %v4121
    %v4507 = vpop.f32.mrb[0].mxu0
    %v4508 = vadd.f32 0.0, %v4507
    %v4509 = vpop.f32.mrb[0].mxu0
    %v4510 = vadd.f32 0.0, %v4509
    %4511 = vdwg.mxu0
    %v4516 = vrot.slane %v4437, 2
    %v4517 = vrot.slane %v4439, 2
    %v4518 = vrot.slane %v4508, 2
    %v4519 = vrot.slane %v4510, 2
    %v4524 = vadd.f32 %v1068, %v4516
    %v4525 = vadd.f32 %v1069, %v4517
    %v4526 = vadd.f32 %v1070, %v4518
    %v4527 = vadd.f32 %v1071, %v4519
    %v4528 = vxor.u32 %v4524, 2147483648
    %v4529 = vmul.f32 %v4528, 1.442695
    %v4530 = vpow.pop %v4529
    %v4531 = vadd.f32 %v4530, 1.0
    %v4532 = vrcp.pop %v4531
    %v4533 = vmul.f32 1.0, %v4532
    %v4534 = vxor.u32 %v4525, 2147483648
    %v4535 = vmul.f32 %v4534, 1.442695
    %v4536 = vpow.pop %v4535
    %v4537 = vadd.f32 %v4536, 1.0
    %v4538 = vrcp.pop %v4537
    %v4539 = vmul.f32 1.0, %v4538
    %v4540 = vxor.u32 %v4526, 2147483648
    %v4541 = vmul.f32 %v4540, 1.442695
    %v4542 = vpow.pop %v4541
    %v4543 = vadd.f32 %v4542, 1.0
    %v4544 = vrcp.pop %v4543
    %v4545 = vmul.f32 1.0, %v4544
    %v4546 = vtanh.pop %v4527
    %v4548 = vrot.slane %v4117, 6
    %v4550 = vmul.f32 %v4533, %v4548
    %v4551 = vmul.f32 %v4539, %v4546
    %v4552 = vadd.f32 %v4550, %v4551
    %v4553 = vtanh.pop %v4552
    %v4554 = vmul.f32 %v4553, %v4545
    %v4556 = vrot.slane %v4554, 6
    %4558 = vmatprep.subr.mxu0 %v1373
    %4559 = vmatpush1.msra.mxu0 %v1372
    %4560 = vmatprep.subr.mxu0 %v1375
    %4561 = vmatpush1.msra.mxu0 %v1374
    %4562 = vmatprep.subr.mxu0 %v1377
    %4563 = vmatpush1.msra.mxu0 %v1376
    %4564 = vmatprep.subr.mxu0 %v1379
    %4565 = vmatpush1.msra.mxu0 %v1378
    %4566 = vmatprep.subr.mxu0 %v1381
    %4567 = vmatpush1.msra.mxu0 %v1380
    %4568 = vmatprep.subr.mxu0 %v1383
    %4569 = vmatpush1.msra.mxu0 %v1382
    %4570 = vmatprep.subr.mxu0 %v1385
    %4571 = vmatpush1.msra.mxu0 %v1384
    %4572 = vmatprep.subr.mxu0 %v1387
    %4573 = vmatpush1.msra.mxu0 %v1386
    %4574 = vmatprep.subr.mxu0 %v1389
    %4575 = vmatpush1.msra.mxu0 %v1388
    %4576 = vmatprep.subr.mxu0 %v1391
    %4577 = vmatpush1.msra.mxu0 %v1390
    %4578 = vmatprep.subr.mxu0 %v1393
    %4579 = vmatpush1.msra.mxu0 %v1392
    %4580 = vmatprep.subr.mxu0 %v1395
    %4581 = vmatpush1.msra.mxu0 %v1394
    %4582 = vmatprep.subr.mxu0 %v1397
    %4583 = vmatpush1.msra.mxu0 %v1396
    %4584 = vmatprep.subr.mxu0 %v1399
    %4585 = vmatpush1.msra.mxu0 %v1398
    %4586 = vmatprep.subr.mxu0 %v1401
    %4587 = vmatpush1.msra.mxu0 %v1400
    %4588 = vmatprep.subr.mxu0 %v1403
    %4589 = vmatpush1.msra.mxu0 %v1402
    %4590 = vmatprep.subr.mxu0 0.0
    %4591 = vmatpush1.msra.mxu0 0.0
    %4592 = vmatprep.subr.mxu0 0.0
    %4593 = vmatpush1.msra.mxu0 0.0
    %4594 = vmatprep.subr.mxu0 0.0
    %4595 = vmatpush1.msra.mxu0 0.0
    %4596 = vmatprep.subr.mxu0 0.0
    %4597 = vmatpush1.msra.mxu0 0.0
    %4598 = vmatprep.subr.mxu0 0.0
    %4599 = vmatpush1.msra.mxu0 0.0
    %4600 = vmatprep.subr.mxu0 0.0
    %4601 = vmatpush1.msra.mxu0 0.0
    %4602 = vmatprep.subr.mxu0 0.0
    %4603 = vmatpush1.msra.mxu0 0.0
    %4604 = vmatprep.subr.mxu0 0.0
    %4605 = vmatpush1.msra.mxu0 0.0
    %4606 = vmatprep.subr.mxu0 0.0
    %4607 = vmatpush1.msra.mxu0 0.0
    %4608 = vmatprep.subr.mxu0 0.0
    %4609 = vmatpush1.msra.mxu0 0.0
    %4610 = vmatprep.subr.mxu0 0.0
    %4611 = vmatpush1.msra.mxu0 0.0
    %4612 = vmatprep.subr.mxu0 0.0
    %4613 = vmatpush1.msra.mxu0 0.0
    %4614 = vmatprep.subr.mxu0 0.0
    %4615 = vmatpush1.msra.mxu0 0.0
    %4616 = vmatprep.subr.mxu0 0.0
    %4617 = vmatpush1.msra.mxu0 0.0
    %4618 = vmatprep.subr.mxu0 0.0
    %4619 = vmatpush1.msra.mxu0 0.0
    %4620 = vmatprep.subr.mxu0 0.0
    %4621 = vmatpush1.msra.mxu0 0.0
    %4622 = vmatprep.mubr.f32.mxu0 0.0
    %4623 = vmatmul.mubr.f32.gmra.mrb[0].mxu0 %v4556
    %v4624 = vpop.f32.mrb[0].mxu0
    %v4625 = vadd.f32 %v1409, %v4624
    %v4626 = vpop.f32.mrb[0].mxu0
    %v4627 = vadd.f32 %v1413, %v4626
    %4628 = vdwg.mxu0
    %v4629 = vxor.u32 %v4625, 2147483648
    %v4630 = vxor.u32 %v4627, 2147483648
    %v4631 = vmul.f32 %v4629, 1.442695
    %v4632 = vpow.pop %v4631
    %v4633 = vmul.f32 %v4630, 1.442695
    %v4634 = vpow.pop %v4633
    %v4635 = vadd.f32 %v4632, 1.0
    %v4636 = vadd.f32 %v4634, 1.0
    %v4637 = vrcp.pop %v4635
    %v4638 = vmul.f32 1.0, %v4637
    %v4639 = vrcp.pop %v4636
    %v4640 = vmul.f32 1.0, %v4639
    %v4641 = vmul.f32 %v1503, %v4638
    %v4642 = vmul.f32 %v1510, %v4640
    %v4643 = vadd.f32 %v4641, %v4642
    %v4645 = vrot.slane %v4643, 2
    %v4647 = vmul.f32 %v4554, %v4645
    %v4649 = vrot.slane %v4647, 6
    %4651 = vmatprep.subr.mxu0 %v1516
    %4652 = vmatpush1.msra.mxu0 %v1515
    %4653 = vmatprep.subr.mxu0 %v1518
    %4654 = vmatpush1.msra.mxu0 %v1517
    %4655 = vmatprep.subr.mxu0 %v1520
    %4656 = vmatpush1.msra.mxu0 %v1519
    %4657 = vmatprep.subr.mxu0 %v1522
    %4658 = vmatpush1.msra.mxu0 %v1521
    %4659 = vmatprep.subr.mxu0 %v1524
    %4660 = vmatpush1.msra.mxu0 %v1523
    %4661 = vmatprep.subr.mxu0 %v1526
    %4662 = vmatpush1.msra.mxu0 %v1525
    %4663 = vmatprep.subr.mxu0 %v1528
    %4664 = vmatpush1.msra.mxu0 %v1527
    %4665 = vmatprep.subr.mxu0 %v1530
    %4666 = vmatpush1.msra.mxu0 %v1529
    %4667 = vmatprep.subr.mxu0 %v1532
    %4668 = vmatpush1.msra.mxu0 %v1531
    %4669 = vmatprep.subr.mxu0 %v1534
    %4670 = vmatpush1.msra.mxu0 %v1533
    %4671 = vmatprep.subr.mxu0 %v1536
    %4672 = vmatpush1.msra.mxu0 %v1535
    %4673 = vmatprep.subr.mxu0 %v1538
    %4674 = vmatpush1.msra.mxu0 %v1537
    %4675 = vmatprep.subr.mxu0 %v1540
    %4676 = vmatpush1.msra.mxu0 %v1539
    %4677 = vmatprep.subr.mxu0 %v1542
    %4678 = vmatpush1.msra.mxu0 %v1541
    %4679 = vmatprep.subr.mxu0 %v1544
    %4680 = vmatpush1.msra.mxu0 %v1543
    %4681 = vmatprep.subr.mxu0 %v1546
    %4682 = vmatpush1.msra.mxu0 %v1545
    %4683 = vmatprep.subr.mxu0 0.0
    %4684 = vmatpush1.msra.mxu0 0.0
    %4685 = vmatprep.subr.mxu0 0.0
    %4686 = vmatpush1.msra.mxu0 0.0
    %4687 = vmatprep.subr.mxu0 0.0
    %4688 = vmatpush1.msra.mxu0 0.0
    %4689 = vmatprep.subr.mxu0 0.0
    %4690 = vmatpush1.msra.mxu0 0.0
    %4691 = vmatprep.subr.mxu0 0.0
    %4692 = vmatpush1.msra.mxu0 0.0
    %4693 = vmatprep.subr.mxu0 0.0
    %4694 = vmatpush1.msra.mxu0 0.0
    %4695 = vmatprep.subr.mxu0 0.0
    %4696 = vmatpush1.msra.mxu0 0.0
    %4697 = vmatprep.subr.mxu0 0.0
    %4698 = vmatpush1.msra.mxu0 0.0
    %4699 = vmatprep.subr.mxu0 0.0
    %4700 = vmatpush1.msra.mxu0 0.0
    %4701 = vmatprep.subr.mxu0 0.0
    %4702 = vmatpush1.msra.mxu0 0.0
    %4703 = vmatprep.subr.mxu0 0.0
    %4704 = vmatpush1.msra.mxu0 0.0
    %4705 = vmatprep.subr.mxu0 0.0
    %4706 = vmatpush1.msra.mxu0 0.0
    %4707 = vmatprep.subr.mxu0 0.0
    %4708 = vmatpush1.msra.mxu0 0.0
    %4709 = vmatprep.subr.mxu0 0.0
    %4710 = vmatpush1.msra.mxu0 0.0
    %4711 = vmatprep.subr.mxu0 0.0
    %4712 = vmatpush1.msra.mxu0 0.0
    %4713 = vmatprep.subr.mxu0 0.0
    %4714 = vmatpush1.msra.mxu0 0.0
    %4715 = vmatprep.mubr.f32.mxu0 0.0
    %4716 = vmatmul.mubr.f32.gmra.mrb[0].mxu0 %v4649
    %v4717 = vpop.f32.mrb[0].mxu0
    %v4718 = vadd.f32 %v1552, %v4717
    %v4719 = vpop.f32.mrb[0].mxu0
    %v4720 = vadd.f32 %v1556, %v4719
    %4721 = vdwg.mxu0
    %4722 = vmatprep.subr.mxu0 %v1631
    %4723 = vmatpush1.msra.mxu0 %v1630
    %4724 = vmatprep.subr.mxu0 %v1633
    %4725 = vmatpush1.msra.mxu0 %v1632
    %4726 = vmatprep.subr.mxu0 %v1635
    %4727 = vmatpush1.msra.mxu0 %v1634
    %4728 = vmatprep.subr.mxu0 %v1637
    %4729 = vmatpush1.msra.mxu0 %v1636
    %4730 = vmatprep.subr.mxu0 %v1639
    %4731 = vmatpush1.msra.mxu0 %v1638
    %4732 = vmatprep.subr.mxu0 %v1641
    %4733 = vmatpush1.msra.mxu0 %v1640
    %4734 = vmatprep.subr.mxu0 %v1643
    %4735 = vmatpush1.msra.mxu0 %v1642
    %4736 = vmatprep.subr.mxu0 %v1645
    %4737 = vmatpush1.msra.mxu0 %v1644
    %4738 = vmatprep.subr.mxu0 %v1647
    %4739 = vmatpush1.msra.mxu0 %v1646
    %4740 = vmatprep.subr.mxu0 %v1649
    %4741 = vmatpush1.msra.mxu0 %v1648
    %4742 = vmatprep.subr.mxu0 %v1651
    %4743 = vmatpush1.msra.mxu0 %v1650
    %4744 = vmatprep.subr.mxu0 %v1653
    %4745 = vmatpush1.msra.mxu0 %v1652
    %4746 = vmatprep.subr.mxu0 %v1655
    %4747 = vmatpush1.msra.mxu0 %v1654
    %4748 = vmatprep.subr.mxu0 %v1657
    %4749 = vmatpush1.msra.mxu0 %v1656
    %4750 = vmatprep.subr.mxu0 %v1659
    %4751 = vmatpush1.msra.mxu0 %v1658
    %4752 = vmatprep.subr.mxu0 %v1661
    %4753 = vmatpush1.msra.mxu0 %v1660
    %4754 = vmatprep.subr.mxu0 %v1663
    %4755 = vmatpush1.msra.mxu0 %v1662
    %4756 = vmatprep.subr.mxu0 %v1665
    %4757 = vmatpush1.msra.mxu0 %v1664
    %4758 = vmatprep.subr.mxu0 %v1667
    %4759 = vmatpush1.msra.mxu0 %v1666
    %4760 = vmatprep.subr.mxu0 %v1669
    %4761 = vmatpush1.msra.mxu0 %v1668
    %4762 = vmatprep.subr.mxu0 %v1671
    %4763 = vmatpush1.msra.mxu0 %v1670
    %4764 = vmatprep.subr.mxu0 %v1673
    %4765 = vmatpush1.msra.mxu0 %v1672
    %4766 = vmatprep.subr.mxu0 %v1675
    %4767 = vmatpush1.msra.mxu0 %v1674
    %4768 = vmatprep.subr.mxu0 %v1677
    %4769 = vmatpush1.msra.mxu0 %v1676
    %4770 = vmatprep.subr.mxu0 %v1679
    %4771 = vmatpush1.msra.mxu0 %v1678
    %4772 = vmatprep.subr.mxu0 %v1681
    %4773 = vmatpush1.msra.mxu0 %v1680
    %4774 = vmatprep.subr.mxu0 %v1683
    %4775 = vmatpush1.msra.mxu0 %v1682
    %4776 = vmatprep.subr.mxu0 %v1685
    %4777 = vmatpush1.msra.mxu0 %v1684
    %4778 = vmatprep.subr.mxu0 %v1687
    %4779 = vmatpush1.msra.mxu0 %v1686
    %4780 = vmatprep.subr.mxu0 %v1689
    %4781 = vmatpush1.msra.mxu0 %v1688
    %4782 = vmatprep.subr.mxu0 %v1691
    %4783 = vmatpush1.msra.mxu0 %v1690
    %4784 = vmatprep.subr.mxu0 %v1693
    %4785 = vmatpush1.msra.mxu0 %v1692
    %4786 = vmatprep.mubr.f32.mxu0 %v4720
    %4787 = vmatmul.mubr.f32.gmra.mrb[0].mxu0 %v4718
    %v4788 = vpop.f32.mrb[0].mxu0
    %v4789 = vadd.f32 %v1699, %v4788
    %v4790 = vpop.f32.mrb[0].mxu0
    %v4791 = vadd.f32 %v1703, %v4790
    %4792 = vdwg.mxu0
    %v4793 = vtanh.pop %v4789
    %v4794 = vxor.u32 %v4791, 2147483648
    %v4795 = vmul.f32 %v4794, 1.442695
    %v4796 = vpow.pop %v4795
    %v4797 = vadd.f32 %v4796, 1.0
    %v4798 = vrcp.pop %v4797
    %v4799 = vmul.f32 1.0, %v4798
    %v4800 = vmul.f32 %v4793, %v4799
    %v4802 = vrot.slane %v4800, 2
    %v4803 = vld [vmem:[#allocation23] sm:$0xff]
    %v4804 = vld [vmem:[#allocation23 + $0x8] sm:$0xff]
    %v4805 = vld [vmem:[#allocation23 + $0x10] sm:$0xff]
    %v4806 = vld [vmem:[#allocation23 + $0x18] sm:$0xff]
    %v4807 = vld [vmem:[#allocation23 + $0x20] sm:$0xff]
    %v4808 = vld [vmem:[#allocation23 + $0x28] sm:$0xff]
    %v4809 = vld [vmem:[#allocation23 + $0x30] sm:$0xff]
    %v4810 = vld [vmem:[#allocation23 + $0x38] sm:$0xff]
    %v4811 = vld [vmem:[#allocation23 + $0x40] sm:$0xff]
    %v4812 = vld [vmem:[#allocation23 + $0x48] sm:$0xff]
    %v4813 = vld [vmem:[#allocation23 + $0x50] sm:$0xff]
    %v4814 = vld [vmem:[#allocation23 + $0x58] sm:$0xff]
    %v4815 = vld [vmem:[#allocation23 + $0x60] sm:$0xff]
    %v4816 = vld [vmem:[#allocation23 + $0x68] sm:$0xff]
    %v4817 = vld [vmem:[#allocation23 + $0x70] sm:$0xff]
    %v4818 = vld [vmem:[#allocation23 + $0x78] sm:$0xff]
    %v4819 = vld [vmem:[%s21] sm:$0x1]
    %v4821 = vlaneseq
    %v4822 = vshrl.u32 %v4821, 7
    %v4823 = vsub.s32 0, %v4822
    %v4824 = vrot.slane %v4819, %v4823
    %v4826 = vrot.slane %v4802, 6
    %4828 = vmatprep.subr.mxu0 0.0
    %4829 = vmatpush1.msra.mxu0 %v4803
    %4830 = vmatprep.subr.mxu0 0.0
    %4831 = vmatpush1.msra.mxu0 %v4804
    %4832 = vmatprep.subr.mxu0 0.0
    %4833 = vmatpush1.msra.mxu0 %v4805
    %4834 = vmatprep.subr.mxu0 0.0
    %4835 = vmatpush1.msra.mxu0 %v4806
    %4836 = vmatprep.subr.mxu0 0.0
    %4837 = vmatpush1.msra.mxu0 %v4807
    %4838 = vmatprep.subr.mxu0 0.0
    %4839 = vmatpush1.msra.mxu0 %v4808
    %4840 = vmatprep.subr.mxu0 0.0
    %4841 = vmatpush1.msra.mxu0 %v4809
    %4842 = vmatprep.subr.mxu0 0.0
    %4843 = vmatpush1.msra.mxu0 %v4810
    %4844 = vmatprep.subr.mxu0 0.0
    %4845 = vmatpush1.msra.mxu0 %v4811
    %4846 = vmatprep.subr.mxu0 0.0
    %4847 = vmatpush1.msra.mxu0 %v4812
    %4848 = vmatprep.subr.mxu0 0.0
    %4849 = vmatpush1.msra.mxu0 %v4813
    %4850 = vmatprep.subr.mxu0 0.0
    %4851 = vmatpush1.msra.mxu0 %v4814
    %4852 = vmatprep.subr.mxu0 0.0
    %4853 = vmatpush1.msra.mxu0 %v4815
    %4854 = vmatprep.subr.mxu0 0.0
    %4855 = vmatpush1.msra.mxu0 %v4816
    %4856 = vmatprep.subr.mxu0 0.0
    %4857 = vmatpush1.msra.mxu0 %v4817
    %4858 = vmatprep.subr.mxu0 0.0
    %4859 = vmatpush1.msra.mxu0 %v4818
    %4860 = vmatprep.subr.mxu0 0.0
    %4861 = vmatpush1.msra.mxu0 0.0
    %4862 = vmatprep.subr.mxu0 0.0
    %4863 = vmatpush1.msra.mxu0 0.0
    %4864 = vmatprep.subr.mxu0 0.0
    %4865 = vmatpush1.msra.mxu0 0.0
    %4866 = vmatprep.subr.mxu0 0.0
    %4867 = vmatpush1.msra.mxu0 0.0
    %4868 = vmatprep.subr.mxu0 0.0
    %4869 = vmatpush1.msra.mxu0 0.0
    %4870 = vmatprep.subr.mxu0 0.0
    %4871 = vmatpush1.msra.mxu0 0.0
    %4872 = vmatprep.subr.mxu0 0.0
    %4873 = vmatpush1.msra.mxu0 0.0
    %4874 = vmatprep.subr.mxu0 0.0
    %4875 = vmatpush1.msra.mxu0 0.0
    %4876 = vmatprep.subr.mxu0 0.0
    %4877 = vmatpush1.msra.mxu0 0.0
    %4878 = vmatprep.subr.mxu0 0.0
    %4879 = vmatpush1.msra.mxu0 0.0
    %4880 = vmatprep.subr.mxu0 0.0
    %4881 = vmatpush1.msra.mxu0 0.0
    %4882 = vmatprep.subr.mxu0 0.0
    %4883 = vmatpush1.msra.mxu0 0.0
    %4884 = vmatprep.subr.mxu0 0.0
    %4885 = vmatpush1.msra.mxu0 0.0
    %4886 = vmatprep.subr.mxu0 0.0
    %4887 = vmatpush1.msra.mxu0 0.0
    %4888 = vmatprep.subr.mxu0 0.0
    %4889 = vmatpush1.msra.mxu0 0.0
    %4890 = vmatprep.subr.mxu0 0.0
    %4891 = vmatpush1.msra.mxu0 0.0
    %4892 = vmatprep.mubr.f32.mxu0 0.0
    %4893 = vmatmul.mubr.f32.gmra.mrb[0].mxu0 %v4826
    %v4894 = vpop.f32.mrb[0].mxu0
    %v4895 = vadd.f32 %v4824, %v4894
    %v4896 = vpop.f32.mrb[0].mxu0
    %4897 = vdwg.mxu0
    %v4898 = vmax.f32 %v4895, 0.0
    %v4899 = vld [vmem:[#allocation25] sm:$0xff]
    %v4900 = vld [vmem:[#allocation25 + $0x8] sm:$0xff]
    %v4901 = vld [vmem:[#allocation25 + $0x10] sm:$0xff]
    %v4902 = vld [vmem:[#allocation25 + $0x18] sm:$0xff]
    %v4903 = vld [vmem:[#allocation25 + $0x20] sm:$0xff]
    %v4904 = vld [vmem:[#allocation25 + $0x28] sm:$0xff]
    %v4905 = vld [vmem:[#allocation25 + $0x30] sm:$0xff]
    %v4906 = vld [vmem:[#allocation25 + $0x38] sm:$0xff]
    %v4907 = vld [vmem:[#allocation25 + $0x40] sm:$0xff]
    %v4908 = vld [vmem:[#allocation25 + $0x48] sm:$0xff]
    %v4909 = vld [vmem:[#allocation25 + $0x50] sm:$0xff]
    %v4910 = vld [vmem:[#allocation25 + $0x58] sm:$0xff]
    %v4911 = vld [vmem:[#allocation25 + $0x60] sm:$0xff]
    %v4912 = vld [vmem:[#allocation25 + $0x68] sm:$0xff]
    %v4913 = vld [vmem:[#allocation25 + $0x70] sm:$0xff]
    %v4914 = vld [vmem:[#allocation25 + $0x78] sm:$0xff]
    %v4915 = vld [vmem:[%s23] sm:$0x1]
    %v4917 = vlaneseq
    %v4918 = vshrl.u32 %v4917, 7
    %v4919 = vsub.s32 0, %v4918
    %v4920 = vrot.slane %v4915, %v4919
    %4922 = vmatprep.subr.mxu0 0.0
    %4923 = vmatpush1.msra.mxu0 %v4899
    %4924 = vmatprep.subr.mxu0 0.0
    %4925 = vmatpush1.msra.mxu0 %v4900
    %4926 = vmatprep.subr.mxu0 0.0
    %4927 = vmatpush1.msra.mxu0 %v4901
    %4928 = vmatprep.subr.mxu0 0.0
    %4929 = vmatpush1.msra.mxu0 %v4902
    %4930 = vmatprep.subr.mxu0 0.0
    %4931 = vmatpush1.msra.mxu0 %v4903
    %4932 = vmatprep.subr.mxu0 0.0
    %4933 = vmatpush1.msra.mxu0 %v4904
    %4934 = vmatprep.subr.mxu0 0.0
    %4935 = vmatpush1.msra.mxu0 %v4905
    %4936 = vmatprep.subr.mxu0 0.0
    %4937 = vmatpush1.msra.mxu0 %v4906
    %4938 = vmatprep.subr.mxu0 0.0
    %4939 = vmatpush1.msra.mxu0 %v4907
    %4940 = vmatprep.subr.mxu0 0.0
    %4941 = vmatpush1.msra.mxu0 %v4908
    %4942 = vmatprep.subr.mxu0 0.0
    %4943 = vmatpush1.msra.mxu0 %v4909
    %4944 = vmatprep.subr.mxu0 0.0
    %4945 = vmatpush1.msra.mxu0 %v4910
    %4946 = vmatprep.subr.mxu0 0.0
    %4947 = vmatpush1.msra.mxu0 %v4911
    %4948 = vmatprep.subr.mxu0 0.0
    %4949 = vmatpush1.msra.mxu0 %v4912
    %4950 = vmatprep.subr.mxu0 0.0
    %4951 = vmatpush1.msra.mxu0 %v4913
    %4952 = vmatprep.subr.mxu0 0.0
    %4953 = vmatpush1.msra.mxu0 %v4914
    %4954 = vmatprep.subr.mxu0 0.0
    %4955 = vmatpush1.msra.mxu0 0.0
    %4956 = vmatprep.subr.mxu0 0.0
    %4957 = vmatpush1.msra.mxu0 0.0
    %4958 = vmatprep.subr.mxu0 0.0
    %4959 = vmatpush1.msra.mxu0 0.0
    %4960 = vmatprep.subr.mxu0 0.0
    %4961 = vmatpush1.msra.mxu0 0.0
    %4962 = vmatprep.subr.mxu0 0.0
    %4963 = vmatpush1.msra.mxu0 0.0
    %4964 = vmatprep.subr.mxu0 0.0
    %4965 = vmatpush1.msra.mxu0 0.0
    %4966 = vmatprep.subr.mxu0 0.0
    %4967 = vmatpush1.msra.mxu0 0.0
    %4968 = vmatprep.subr.mxu0 0.0
    %4969 = vmatpush1.msra.mxu0 0.0
    %4970 = vmatprep.subr.mxu0 0.0
    %4971 = vmatpush1.msra.mxu0 0.0
    %4972 = vmatprep.subr.mxu0 0.0
    %4973 = vmatpush1.msra.mxu0 0.0
    %4974 = vmatprep.subr.mxu0 0.0
    %4975 = vmatpush1.msra.mxu0 0.0
    %4976 = vmatprep.subr.mxu0 0.0
    %4977 = vmatpush1.msra.mxu0 0.0
    %4978 = vmatprep.subr.mxu0 0.0
    %4979 = vmatpush1.msra.mxu0 0.0
    %4980 = vmatprep.subr.mxu0 0.0
    %4981 = vmatpush1.msra.mxu0 0.0
    %4982 = vmatprep.subr.mxu0 0.0
    %4983 = vmatpush1.msra.mxu0 0.0
    %4984 = vmatprep.subr.mxu0 0.0
    %4985 = vmatpush1.msra.mxu0 0.0
    %4986 = vmatprep.mubr.f32.mxu0 0.0
    %4987 = vmatmul.mubr.f32.gmra.mrb[0].mxu0 %v4898
    %v4988 = vpop.f32.mrb[0].mxu0
    %v4989 = vadd.f32 %v4920, %v4988
    %v4990 = vpop.f32.mrb[0].mxu0
    %4991 = vdwg.mxu0
    %4992 = vst [vmem:[#allocation26] sm:$0x3] %v4989
    // Predicated region
    $region158: #{tpu_custom_call.1} parent=1 // pred_check
      _
    $region159: #{tpu_custom_call.1} parent=1 // pred_check_branch
      %4994 = sbr.rel (0) target = $region161
    $region160: #{tpu_custom_call.1} parent=1 // pred_region
      %s4996 = ssub.s32 32, 32
      %4997 = vsyncadd [#allocation4], %s4996
      %s4999 = sshll.u32 [#allocation26], 4
      %s5000 = int_to_ptr.vmem [resolvable:$true] %s4999
      %5002 = dma.vmem_to_hbm [thread:$0]  %s5000, 32, %s24, [#allocation4]
    $region161: #{tpu_custom_call.1} parent=1 // pred_fallthru
      _
    // Predicated region
    $region162: #{tpu_custom_call.1} parent=1 // pred_check
      _
    $region163: #{tpu_custom_call.1} parent=1 // pred_check_branch
      %5004 = sbr.rel (0) target = $region165
    $region164: #{tpu_custom_call.1} parent=1 // pred_region
      %5005 = dma.done [#allocation4], 32
    $region165: #{tpu_custom_call.1} parent=1 // pred_fallthru
      _
    %5006 = vsyncpa [#allocation3], 1
    %5007 = vsyncpa [#allocation6], 1
    %5008 = vsyncpa [#allocation9], 1
    %5009 = vsyncpa [#allocation12], 1
    %5010 = vsyncpa [#allocation15], 1
    %5011 = vsyncpa [#allocation18], 1
    %5012 = vsyncpa [#allocation21], 1
    %5013 = vsyncpa [#allocation24], 1
    %5014 = vsyncpa [#allocation4], 1

</llo_original>
